<compile_context>
chip_gen: v6e
topology: v6e:2x2x1
jax: 0.10.0
libtpu: 0.0.40
codegen_flags: <defaults>
</compile_context>

<pallas_src>
import functools
import math

import jax
import jax.numpy as jnp
from jax import lax
from jax.experimental import pallas as pl
from jax.experimental.pallas import tpu as pltpu

_GELU_C = math.sqrt(2.0 / math.pi)


# ---------------------------------------------------------------------------
# Kernel 1: RMSNorm (SuryaADETRDecoderRMSNorm)
# ---------------------------------------------------------------------------
def _rmsnorm_kernel(x_ref, w_ref, o_ref, *, eps, clamp_min, clamp_max):
    x = x_ref[0].astype(jnp.float32)                    # (L, H)
    w = w_ref[...].astype(jnp.float32)                  # (1, H)
    var = jnp.mean(x * x, axis=-1, keepdims=True)
    var = jnp.maximum(var, eps)
    out = x * lax.rsqrt(var)
    out = out * (1.0 + w)
    out = jnp.clip(out, clamp_min, clamp_max)
    out = jnp.where(jnp.isnan(out), 0.0, out)
    o_ref[0] = out.astype(o_ref.dtype)


def rmsnorm(x, w, eps=1e-6):
    B, L, H = x.shape
    fi = jnp.finfo(x.dtype)
    kern = functools.partial(_rmsnorm_kernel, eps=float(eps),
                             clamp_min=float(fi.min), clamp_max=float(fi.max))
    return pl.pallas_call(
        kern,
        out_shape=jax.ShapeDtypeStruct((B, L, H), x.dtype),
        grid=(B,),
        in_specs=[pl.BlockSpec((1, L, H), lambda b: (b, 0, 0)),
                  pl.BlockSpec((1, H), lambda b: (0, 0))],
        out_specs=pl.BlockSpec((1, L, H), lambda b: (b, 0, 0)),
        compiler_params=pltpu.CompilerParams(dimension_semantics=("parallel",)),
    )(x, w.reshape(1, H))


# ---------------------------------------------------------------------------
# Kernel 2: Linear (x @ W + b)   (W stored as (in, out))
# ---------------------------------------------------------------------------
def _linear_kernel(x_ref, w_ref, b_ref, o_ref):
    y = jnp.dot(x_ref[0].astype(jnp.float32), w_ref[...],
                preferred_element_type=jnp.float32)
    o_ref[0] = (y + b_ref[...].astype(jnp.float32)).astype(o_ref.dtype)


def linear(x, w, b=None):
    B, L, K = x.shape
    N = w.shape[1]
    if b is None:
        b = jnp.zeros((N,), x.dtype)
    return pl.pallas_call(
        _linear_kernel,
        out_shape=jax.ShapeDtypeStruct((B, L, N), x.dtype),
        grid=(B,),
        in_specs=[pl.BlockSpec((1, L, K), lambda i: (i, 0, 0)),
                  pl.BlockSpec((K, N), lambda i: (0, 0)),
                  pl.BlockSpec((1, N), lambda i: (0, 0))],
        out_specs=pl.BlockSpec((1, L, N), lambda i: (i, 0, 0)),
        compiler_params=pltpu.CompilerParams(dimension_semantics=("parallel",)),
    )(x, w, b.reshape(1, N))


# ---------------------------------------------------------------------------
# Kernel 3: self-attention with fused RoPE table generation (GQA)
# ---------------------------------------------------------------------------
def _self_attn_rope_kernel(pos_ref, inv_ref, q_ref, k_ref, v_ref, mask_ref, o_ref,
                           *, num_heads, n_rep, head_dim, scale):
    half = head_dim // 2
    num_kv_heads = num_heads // n_rep

    # Fused rotary embedding: cos/sin on the half dim only (half the EUP work),
    # int32 positions cast in-kernel, nothing ever written back to HBM.
    pos = pos_ref[0].astype(jnp.float32)                # (S, 1)
    inv = inv_ref[...].astype(jnp.float32)              # (1, half)
    freqs = pos * inv                                   # (S, half)
    cos_h = jnp.cos(freqs)
    sin_h = jnp.sin(freqs)

    mask = mask_ref[0, 0].astype(jnp.float32)           # (S, S) additive mask
    q_all = q_ref[0].astype(jnp.float32)                # (S, nH*D) lane-dense
    k_all = k_ref[0].astype(jnp.float32)                # (S, nKV*D)
    v_all = v_ref[0].astype(jnp.float32)

    def rope(x):                                        # x: (S, head_dim)
        x1 = x[:, :half]
        x2 = x[:, half:]
        return jnp.concatenate([x1 * cos_h - x2 * sin_h,
                                x2 * cos_h + x1 * sin_h], axis=-1)

    # Rotate each KV head once, reuse across its query-head group (repeat_kv).
    k_rot = [rope(k_all[:, g * head_dim:(g + 1) * head_dim])
             for g in range(num_kv_heads)]
    v_grp = [v_all[:, g * head_dim:(g + 1) * head_dim]
             for g in range(num_kv_heads)]

    outs = []
    for h in range(num_heads):                          # static unroll
        g = h // n_rep
        qh = rope(q_all[:, h * head_dim:(h + 1) * head_dim])
        s = lax.dot_general(qh, k_rot[g], (((1,), (1,)), ((), ())),
                            preferred_element_type=jnp.float32) * scale + mask
        m = jnp.max(s, axis=-1, keepdims=True)
        p = jnp.exp(s - m)
        p = p / jnp.sum(p, axis=-1, keepdims=True)
        outs.append(jnp.dot(p, v_grp[g], preferred_element_type=jnp.float32))
    # Single lane-dense (S, nH*D) store -> dense HBM writeback.
    o_ref[0] = jnp.concatenate(outs, axis=-1).astype(o_ref.dtype)


def self_attention(q, k, v, position_ids, inv_freq, attn_mask,
                   *, num_heads, num_kv_heads, head_dim):
    B, S, _ = q.shape
    n_rep = num_heads // num_kv_heads
    half = head_dim // 2
    scale = float(head_dim) ** -0.5
    out_dim = num_heads * head_dim
    kv_dim = num_kv_heads * head_dim
    pos = position_ids.reshape(B, S, 1)                  # stays int32
    inv2 = inv_freq.reshape(1, half).astype(jnp.float32)
    kern = functools.partial(_self_attn_rope_kernel, num_heads=num_heads,
                             n_rep=n_rep, head_dim=head_dim, scale=scale)
    cost = pl.CostEstimate(
        flops=int(4 * B * num_heads * S * S * head_dim),
        transcendentals=int(2 * B * S * half + B * num_heads * S * S),
        bytes_accessed=int(4 * (q.size + k.size + v.size + attn_mask.size
                                + B * S * out_dim) + 4 * pos.size + 4 * inv2.size),
    )
    return pl.pallas_call(
        kern,
        out_shape=jax.ShapeDtypeStruct((B, S, out_dim), q.dtype),
        grid=(B,),
        in_specs=[
            pl.BlockSpec((1, S, 1), lambda b: (b, 0, 0)),
            pl.BlockSpec((1, half), lambda b: (0, 0)),
            pl.BlockSpec((1, S, out_dim), lambda b: (b, 0, 0)),
            pl.BlockSpec((1, S, kv_dim), lambda b: (b, 0, 0)),
            pl.BlockSpec((1, S, kv_dim), lambda b: (b, 0, 0)),
            pl.BlockSpec((1, 1, S, S), lambda b: (b, 0, 0, 0)),
        ],
        out_specs=pl.BlockSpec((1, S, out_dim), lambda b: (b, 0, 0)),
        compiler_params=pltpu.CompilerParams(dimension_semantics=("parallel",)),
        cost_estimate=cost,
    )(pos, inv2, q, k, v, attn_mask)


# ---------------------------------------------------------------------------
# Kernel 4: cross-attention (GQA, no RoPE, no mask)
# ---------------------------------------------------------------------------
def _cross_attn_kernel(q_ref, k_ref, v_ref, o_ref, *, num_heads, n_rep,
                       head_dim, scale):
    q_all = q_ref[0].astype(jnp.float32)                # (S, nH*D)
    k_all = k_ref[0].astype(jnp.float32)                # (V, nKV*D)
    v_all = v_ref[0].astype(jnp.float32)
    outs = []
    for h in range(num_heads):
        g = h // n_rep
        qh = q_all[:, h * head_dim:(h + 1) * head_dim]
        kh = k_all[:, g * head_dim:(g + 1) * head_dim]
        vh = v_all[:, g * head_dim:(g + 1) * head_dim]
        s = lax.dot_general(qh, kh, (((1,), (1,)), ((), ())),
                            preferred_element_type=jnp.float32) * scale
        m = jnp.max(s, axis=-1, keepdims=True)
        p = jnp.exp(s - m)
        p = p / jnp.sum(p, axis=-1, keepdims=True)
        outs.append(jnp.dot(p, vh, preferred_element_type=jnp.float32))
    o_ref[0] = jnp.concatenate(outs, axis=-1).astype(o_ref.dtype)


def cross_attention(q, k, v, *, num_heads, num_kv_heads, head_dim):
    B, S, _ = q.shape
    _, V, _ = k.shape
    n_rep = num_heads // num_kv_heads
    scale = float(head_dim) ** -0.5
    out_dim = num_heads * head_dim
    kv_dim = num_kv_heads * head_dim
    kern = functools.partial(_cross_attn_kernel, num_heads=num_heads,
                             n_rep=n_rep, head_dim=head_dim, scale=scale)
    cost = pl.CostEstimate(
        flops=int(4 * B * num_heads * S * V * head_dim),
        transcendentals=int(B * num_heads * S * V),
        bytes_accessed=int(4 * (q.size + k.size + v.size + B * S * out_dim)),
    )
    return pl.pallas_call(
        kern,
        out_shape=jax.ShapeDtypeStruct((B, S, out_dim), q.dtype),
        grid=(B,),
        in_specs=[
            pl.BlockSpec((1, S, out_dim), lambda b: (b, 0, 0)),
            pl.BlockSpec((1, V, kv_dim), lambda b: (b, 0, 0)),
            pl.BlockSpec((1, V, kv_dim), lambda b: (b, 0, 0)),
        ],
        out_specs=pl.BlockSpec((1, S, out_dim), lambda b: (b, 0, 0)),
        compiler_params=pltpu.CompilerParams(dimension_semantics=("parallel",)),
        cost_estimate=cost,
    )(q, k, v)


# ---------------------------------------------------------------------------
# Kernel 5: gated MLP (SuryaADETRDecoderMlp, gelu_pytorch_tanh)
# ---------------------------------------------------------------------------
def _mlp_kernel(x_ref, gate_ref, up_ref, down_ref, o_ref):
    x = x_ref[0].astype(jnp.float32)                    # (L, H)
    g = jnp.dot(x, gate_ref[...], preferred_element_type=jnp.float32)
    u = jnp.dot(x, up_ref[...], preferred_element_type=jnp.float32)
    g = 0.5 * g * (1.0 + jnp.tanh(_GELU_C * (g + 0.044715 * g * g * g)))
    h = g * u
    o_ref[0] = jnp.dot(h, down_ref[...],
                       preferred_element_type=jnp.float32).astype(o_ref.dtype)


def mlp(x, gate_w, up_w, down_w):
    B, L, H = x.shape
    I = gate_w.shape[1]
    return pl.pallas_call(
        _mlp_kernel,
        out_shape=jax.ShapeDtypeStruct((B, L, H), x.dtype),
        grid=(B,),
        in_specs=[pl.BlockSpec((1, L, H), lambda b: (b, 0, 0)),
                  pl.BlockSpec((H, I), lambda b: (0, 0)),
                  pl.BlockSpec((H, I), lambda b: (0, 0)),
                  pl.BlockSpec((I, H), lambda b: (0, 0))],
        out_specs=pl.BlockSpec((1, L, H), lambda b: (b, 0, 0)),
        compiler_params=pltpu.CompilerParams(dimension_semantics=("parallel",)),
    )(x, gate_w, up_w, down_w)


# ---------------------------------------------------------------------------
# Full decoder layer built from the Pallas kernels
# ---------------------------------------------------------------------------
def pallas_decoder_layer(p, activations, position_ids, attention_mask,
                         encoder_hidden_states, *, cfg):
    nH = cfg["num_attention_heads"]
    nKV = cfg["num_key_value_heads"]
    D = cfg["head_dim"]
    eps = cfg["rms_norm_eps"]
    hidden = activations

    # Cross-attention block.
    ci = rmsnorm(hidden, p["cross_norm_w"], eps)
    q = linear(ci, p["cq_w"])
    k = linear(encoder_hidden_states, p["ck_w"])
    v = linear(encoder_hidden_states, p["cv_w"])
    attn = cross_attention(q, k, v, num_heads=nH, num_kv_heads=nKV, head_dim=D)
    attn = linear(attn, p["co_w"], p["co_b"])
    hidden = attn + hidden

    # Temporal (self) attention block with fused RoPE.
    ti = rmsnorm(hidden, p["temporal_norm_w"], eps)
    q = linear(ti, p["sq_w"])
    k = linear(ti, p["sk_w"])
    v = linear(ti, p["sv_w"])
    attn = self_attention(q, k, v, position_ids, p["inv_freq"], attention_mask,
                          num_heads=nH, num_kv_heads=nKV, head_dim=D)
    attn = linear(attn, p["so_w"], p["so_b"])
    hidden = attn + hidden

    # MLP block.
    block_input = hidden
    normed = rmsnorm(block_input, p["channel_norm_w"], eps)
    mlp_out = mlp(normed, p["gate_w"], p["up_w"], p["down_w"])
    return mlp_out + block_input


# ---------------------------------------------------------------------------
# Pure-JAX reference mirroring the PyTorch module
# ---------------------------------------------------------------------------
_HI = lax.Precision.HIGHEST


def _ref_rmsnorm(x, w, eps):
    xf = x.astype(jnp.float32)
    var = jnp.mean(xf * xf, axis=-1, keepdims=True)
    var = jnp.maximum(var, eps)
    out = xf * lax.rsqrt(var)
    out = out * (1.0 + w.astype(jnp.float32))
    fi = jnp.finfo(x.dtype)
    out = jnp.clip(out, float(fi.min), float(fi.max))
    out = jnp.where(jnp.isnan(out), 0.0, out)
    return out.astype(x.dtype)


def _ref_linear(x, w, b=None):
    y = jnp.einsum('...k,kn->...n', x, w, precision=_HI)
    return y if b is None else y + b


def _ref_gelu_tanh(x):
    return 0.5 * x * (1.0 + jnp.tanh(_GELU_C * (x + 0.044715 * x * x * x)))


def _ref_rotate_half(x):
    h = x.shape[-1] // 2
    return jnp.concatenate([-x[..., h:], x[..., :h]], axis=-1)


def _ref_rope_cos_sin(position_ids, inv_freq, dtype):
    freqs = (position_ids[:, :, None].astype(jnp.float32)
             * inv_freq[None, None, :].astype(jnp.float32))
    emb = jnp.concatenate([freqs, freqs], axis=-1)
    return jnp.cos(emb).astype(dtype), jnp.sin(emb).astype(dtype)


def _ref_sdpa(q, k, v, mask, scale):
    s = jnp.einsum('bhsd,bhtd->bhst', q, k, precision=_HI) * scale
    if mask is not None:
        s = s + mask
    p = jax.nn.softmax(s, axis=-1)
    return jnp.einsum('bhst,bhtd->bhsd', p, v, precision=_HI)


def _split_heads(x, n, d):
    B, L, _ = x.shape
    return x.reshape(B, L, n, d).transpose(0, 2, 1, 3)


def _merge_heads(x):
    B, H, L, D = x.shape
    return x.transpose(0, 2, 1, 3).reshape(B, L, H * D)


def reference_decoder_layer(p, activations, position_ids, attention_mask,
                            encoder_hidden_states, *, cfg):
    nH = cfg["num_attention_heads"]
    nKV = cfg["num_key_value_heads"]
    D = cfg["head_dim"]
    eps = cfg["rms_norm_eps"]
    n_rep = nH // nKV
    scale = float(D) ** -0.5
    hidden = activations

    ci = _ref_rmsnorm(hidden, p["cross_norm_w"], eps)
    q = _split_heads(_ref_linear(ci, p["cq_w"]), nH, D)
    k = _split_heads(_ref_linear(encoder_hidden_states, p["ck_w"]), nKV, D)
    v = _split_heads(_ref_linear(encoder_hidden_states, p["cv_w"]), nKV, D)
    k = jnp.repeat(k, n_rep, axis=1)
    v = jnp.repeat(v, n_rep, axis=1)
    attn = _ref_sdpa(q, k, v, None, scale)
    attn = _ref_linear(_merge_heads(attn), p["co_w"], p["co_b"])
    hidden = attn + hidden

    ti = _ref_rmsnorm(hidden, p["temporal_norm_w"], eps)
    q = _split_heads(_ref_linear(ti, p["sq_w"]), nH, D)
    k = _split_heads(_ref_linear(ti, p["sk_w"]), nKV, D)
    v = _split_heads(_ref_linear(ti, p["sv_w"]), nKV, D)
    cos, sin = _ref_rope_cos_sin(position_ids, p["inv_freq"], v.dtype)
    cos = cos[:, None, :, :]
    sin = sin[:, None, :, :]
    q = q * cos + _ref_rotate_half(q) * sin
    k = k * cos + _ref_rotate_half(k) * sin
    k = jnp.repeat(k, n_rep, axis=1)
    v = jnp.repeat(v, n_rep, axis=1)
    mask = attention_mask[:, :, :, :k.shape[-2]]
    attn = _ref_sdpa(q, k, v, mask, scale)
    attn = _ref_linear(_merge_heads(attn), p["so_w"], p["so_b"])
    hidden = attn + hidden

    block_input = hidden
    n = _ref_rmsnorm(block_input, p["channel_norm_w"], eps)
    m = _ref_linear(_ref_gelu_tanh(_ref_linear(n, p["gate_w"]))
                    * _ref_linear(n, p["up_w"]), p["down_w"])
    return m + block_input


def make_inv_freq(dim, base=10000.0):
    exponents = jnp.arange(0, dim, 2, dtype=jnp.float32) / dim
    return (1.0 / (base ** exponents)).astype(jnp.float32)


# ---------------------------------------------------------------------------
# Test
# ---------------------------------------------------------------------------
if __name__ == "__main__":
    B, S, V = 2, 8, 16
    H, I = 128, 256
    nH, nKV, D = 4, 2, 32
    cfg = dict(hidden_size=H, intermediate_size=I, num_attention_heads=nH,
               num_key_value_heads=nKV, head_dim=D, rms_norm_eps=1e-6,
               rope_theta=10000.0)

    key = jax.random.PRNGKey(0)
    ks = jax.random.split(key, 24)

    def nrm(k, shape, scale):
        return scale * jax.random.normal(k, shape, dtype=jnp.float32)

    p = {
        "cross_norm_w":    nrm(ks[0], (H,), 0.1),
        "temporal_norm_w": nrm(ks[1], (H,), 0.1),
        "channel_norm_w":  nrm(ks[2], (H,), 0.1),
        "cq_w": nrm(ks[3], (H, nH * D), H ** -0.5),
        "ck_w": nrm(ks[4], (H, nKV * D), H ** -0.5),
        "cv_w": nrm(ks[5], (H, nKV * D), H ** -0.5),
        "co_w": nrm(ks[6], (nH * D, H), (nH * D) ** -0.5),
        "co_b": nrm(ks[7], (H,), 0.02),
        "sq_w": nrm(ks[8], (H, nH * D), H ** -0.5),
        "sk_w": nrm(ks[9], (H, nKV * D), H ** -0.5),
        "sv_w": nrm(ks[10], (H, nKV * D), H ** -0.5),
        "so_w": nrm(ks[11], (nH * D, H), (nH * D) ** -0.5),
        "so_b": nrm(ks[12], (H,), 0.02),
        "gate_w": nrm(ks[13], (H, I), H ** -0.5),
        "up_w":   nrm(ks[14], (H, I), H ** -0.5),
        "down_w": nrm(ks[15], (I, H), I ** -0.5),
        "inv_freq": make_inv_freq(D, cfg["rope_theta"]),
    }

    activations = nrm(ks[16], (B, S, H), 1.0)
    encoder_hidden_states = nrm(ks[17], (B, V, H), 1.0)
    position_ids = jax.random.randint(ks[18], (B, S), 0, 512, dtype=jnp.int32)
    causal = jnp.tril(jnp.ones((S, S), dtype=bool))
    attention_mask = jnp.where(causal, 0.0, -1e9).astype(jnp.float32)
    attention_mask = jnp.broadcast_to(attention_mask[None, None], (B, 1, S, S))

    @jax.jit
    def fwd(p, activations, position_ids, attention_mask, encoder_hidden_states):
        return pallas_decoder_layer(p, activations, position_ids, attention_mask,
                                    encoder_hidden_states, cfg=cfg)

    out = fwd(p, activations, position_ids, attention_mask, encoder_hidden_states)
    out = jax.block_until_ready(out)

    ref = reference_decoder_layer(p, activations, position_ids, attention_mask,
                                  encoder_hidden_states, cfg=cfg)

    assert out.shape == (B, S, H) and out.dtype == activations.dtype
    err = float(jnp.max(jnp.abs(out - ref)))
    assert err < 5e-3, f"max abs error {err}"
    print("KERNEL_OK")
</pallas_src>

<mosaic_0001>
module attributes {stable_mosaic.version = 11 : i64} {
  func.func @_linear_kernel(%arg0: i32, %arg1: memref<1x16x128xf32, #tpu.memory_space<vmem>>, %arg2: memref<128x64xf32, #tpu.memory_space<vmem>>, %arg3: memref<1x64xf32, #tpu.memory_space<vmem>>, %arg4: memref<1x16x64xf32, #tpu.memory_space<vmem>>) attributes {dimension_semantics = [#tpu.dimension_semantics<parallel>], iteration_bounds = array<i64: 2>, scalar_prefetch = 0 : i64, scratch_operands = 0 : i64, tpu.core_type = #tpu.core_type<tc>, window_params = [{transform_indices = @transform_0, window_bounds = array<i64: 1, 16, 128>}, {pipeline_mode = #tpu.pipeline_mode<synchronous>, transform_indices = @transform_1, window_bounds = array<i64: 128, 64>}, {pipeline_mode = #tpu.pipeline_mode<synchronous>, transform_indices = @transform_2, window_bounds = array<i64: 1, 64>}, {transform_indices = @transform_3, window_bounds = array<i64: 1, 16, 64>}]} {
    %c0 = arith.constant 0 : index
    %c0_0 = arith.constant 0 : index
    %c0_1 = arith.constant 0 : index
    %0 = vector.load %arg1[%c0, %c0_0, %c0_1] : memref<1x16x128xf32, #tpu.memory_space<vmem>>, vector<1x16x128xf32>
    %1 = vector.shape_cast %0 : vector<1x16x128xf32> to vector<16x128xf32>
    %c0_2 = arith.constant 0 : index
    %c0_3 = arith.constant 0 : index
    %2 = vector.load %arg2[%c0_2, %c0_3] : memref<128x64xf32, #tpu.memory_space<vmem>>, vector<128x64xf32>
    %cst = arith.constant dense<0.000000e+00> : vector<16x64xf32>
    %3 = tpu.matmul %1, %2, %cst {dimension_numbers = #tpu.dot_dimension_numbers<[1], [0], [0], [1], [0, 0, 1, 1], [], []>} : vector<16x128xf32>, vector<128x64xf32>, vector<16x64xf32> -> vector<16x64xf32>
    %c0_4 = arith.constant 0 : index
    %c0_5 = arith.constant 0 : index
    %4 = vector.load %arg3[%c0_4, %c0_5] : memref<1x64xf32, #tpu.memory_space<vmem>>, vector<1x64xf32>
    %5 = vector.broadcast %4 : vector<1x64xf32> to vector<16x64xf32>
    %6 = arith.addf %3, %5 : vector<16x64xf32>
    %c0_6 = arith.constant 0 : index
    %c0_7 = arith.constant 0 : index
    %c0_8 = arith.constant 0 : index
    %7 = vector.load %arg4[%c0_6, %c0_7, %c0_8] : memref<1x16x64xf32, #tpu.memory_space<vmem>>, vector<1x16x64xf32>
    %8 = vector.shape_cast %7 : vector<1x16x64xf32> to vector<16x64xf32>
    %9 = vector.shape_cast %6 : vector<16x64xf32> to vector<1x16x64xf32>
    tpu.vector_store %arg4[%c0_6, %c0_7, %c0_8], %9 {strides = array<i32>} : memref<1x16x64xf32, #tpu.memory_space<vmem>>, vector<1x16x64xf32>,
    return
  }
  func.func @transform_0(%arg0: i32) -> (i32, i32, i32) {
    %c0_i32 = arith.constant 0 : i32
    %c0_i32_0 = arith.constant 0 : i32
    %c0_i32_1 = arith.constant 0 : i32
    return %arg0, %c0_i32, %c0_i32_0 : i32, i32, i32
  }
  func.func @transform_1(%arg0: i32) -> (i32, i32) {
    %c0_i32 = arith.constant 0 : i32
    %c0_i32_0 = arith.constant 0 : i32
    %c0_i32_1 = arith.constant 0 : i32
    return %c0_i32, %c0_i32_0 : i32, i32
  }
  func.func @transform_2(%arg0: i32) -> (i32, i32) {
    %c0_i32 = arith.constant 0 : i32
    %c0_i32_0 = arith.constant 0 : i32
    %c0_i32_1 = arith.constant 0 : i32
    return %c0_i32, %c0_i32_0 : i32, i32
  }
  func.func @transform_3(%arg0: i32) -> (i32, i32, i32) {
    %c0_i32 = arith.constant 0 : i32
    %c0_i32_0 = arith.constant 0 : i32
    %c0_i32_1 = arith.constant 0 : i32
    return %arg0, %c0_i32, %c0_i32_0 : i32, i32, i32
  }
}

module attributes {stable_mosaic.version = 11 : i64} {
  func.func @_rmsnorm_kernel(%arg0: i32, %arg1: memref<1x8x128xf32, #tpu.memory_space<vmem>>, %arg2: memref<1x128xf32, #tpu.memory_space<vmem>>, %arg3: memref<1x8x128xf32, #tpu.memory_space<vmem>>) attributes {dimension_semantics = [#tpu.dimension_semantics<parallel>], iteration_bounds = array<i64: 2>, scalar_prefetch = 0 : i64, scratch_operands = 0 : i64, tpu.core_type = #tpu.core_type<tc>, window_params = [{transform_indices = @transform_0, window_bounds = array<i64: 1, 8, 128>}, {pipeline_mode = #tpu.pipeline_mode<synchronous>, transform_indices = @transform_1, window_bounds = array<i64: 1, 128>}, {transform_indices = @transform_2, window_bounds = array<i64: 1, 8, 128>}]} {
    %c0 = arith.constant 0 : index
    %c0_0 = arith.constant 0 : index
    %c0_1 = arith.constant 0 : index
    %0 = vector.load %arg1[%c0, %c0_0, %c0_1] : memref<1x8x128xf32, #tpu.memory_space<vmem>>, vector<1x8x128xf32>
    %1 = vector.shape_cast %0 : vector<1x8x128xf32> to vector<8x128xf32>
    %c0_2 = arith.constant 0 : index
    %c0_3 = arith.constant 0 : index
    %2 = vector.load %arg2[%c0_2, %c0_3] : memref<1x128xf32, #tpu.memory_space<vmem>>, vector<1x128xf32>
    %3 = arith.mulf %1, %1 : vector<8x128xf32>
    %cst = arith.constant dense<0.000000e+00> : vector<8xf32>
    %4 = vector.multi_reduction <add>, %3, %cst [1] : vector<8x128xf32> to vector<8xf32>
    %5 = vector.shape_cast %4 : vector<8xf32> to vector<8x1xf32>
    %cst_4 = arith.constant 1.280000e+02 : f32
    %6 = vector.broadcast %cst_4 : f32 to vector<8x1xf32>
    %7 = arith.divf %5, %6 : vector<8x1xf32>
    %cst_5 = arith.constant 9.99999997E-7 : f32
    %8 = vector.broadcast %cst_5 : f32 to vector<8x1xf32>
    %9 = arith.maximumf %7, %8 : vector<8x1xf32>
    %10 = math.rsqrt %9 : vector<8x1xf32>
    %11 = vector.broadcast %10 : vector<8x1xf32> to vector<8x128xf32>
    %12 = arith.mulf %1, %11 : vector<8x128xf32>
    %cst_6 = arith.constant 1.000000e+00 : f32
    %13 = vector.broadcast %cst_6 : f32 to vector<1x128xf32>
    %14 = arith.addf %13, %2 : vector<1x128xf32>
    %15 = vector.broadcast %14 : vector<1x128xf32> to vector<8x128xf32>
    %16 = arith.mulf %12, %15 : vector<8x128xf32>
    %cst_7 = arith.constant -3.40282347E+38 : f32
    %cst_8 = arith.constant 3.40282347E+38 : f32
    %17 = vector.broadcast %cst_7 : f32 to vector<8x128xf32>
    %18 = arith.maximumf %17, %16 : vector<8x128xf32>
    %19 = vector.broadcast %cst_8 : f32 to vector<8x128xf32>
    %20 = arith.minimumf %19, %18 : vector<8x128xf32>
    %21 = arith.cmpf one, %20, %20 : vector<8x128xf32>
    %cst_9 = arith.constant 0.000000e+00 : f32
    %22 = vector.broadcast %cst_9 : f32 to vector<8x128xf32>
    %23 = arith.select %21, %22, %20 : vector<8x128xi1>, vector<8x128xf32>
    %c0_10 = arith.constant 0 : index
    %c0_11 = arith.constant 0 : index
    %c0_12 = arith.constant 0 : index
    %24 = vector.load %arg3[%c0_10, %c0_11, %c0_12] : memref<1x8x128xf32, #tpu.memory_space<vmem>>, vector<1x8x128xf32>
    %25 = vector.shape_cast %24 : vector<1x8x128xf32> to vector<8x128xf32>
    %26 = vector.shape_cast %23 : vector<8x128xf32> to vector<1x8x128xf32>
    tpu.vector_store %arg3[%c0_10, %c0_11, %c0_12], %26 {strides = array<i32>} : memref<1x8x128xf32, #tpu.memory_space<vmem>>, vector<1x8x128xf32>,
    return
  }
  func.func @transform_0(%arg0: i32) -> (i32, i32, i32) {
    %c0_i32 = arith.constant 0 : i32
    %c0_i32_0 = arith.constant 0 : i32
    %c0_i32_1 = arith.constant 0 : i32
    return %arg0, %c0_i32, %c0_i32_0 : i32, i32, i32
  }
  func.func @transform_1(%arg0: i32) -> (i32, i32) {
    %c0_i32 = arith.constant 0 : i32
    %c0_i32_0 = arith.constant 0 : i32
    %c0_i32_1 = arith.constant 0 : i32
    return %c0_i32, %c0_i32_0 : i32, i32
  }
  func.func @transform_2(%arg0: i32) -> (i32, i32, i32) {
    %c0_i32 = arith.constant 0 : i32
    %c0_i32_0 = arith.constant 0 : i32
    %c0_i32_1 = arith.constant 0 : i32
    return %arg0, %c0_i32, %c0_i32_0 : i32, i32, i32
  }
}

module attributes {stable_mosaic.version = 11 : i64} {
  func.func @_linear_kernel(%arg0: i32, %arg1: memref<1x8x128xf32, #tpu.memory_space<vmem>>, %arg2: memref<128x128xf32, #tpu.memory_space<vmem>>, %arg3: memref<1x128xf32, #tpu.memory_space<vmem>>, %arg4: memref<1x8x128xf32, #tpu.memory_space<vmem>>) attributes {dimension_semantics = [#tpu.dimension_semantics<parallel>], iteration_bounds = array<i64: 2>, scalar_prefetch = 0 : i64, scratch_operands = 0 : i64, tpu.core_type = #tpu.core_type<tc>, window_params = [{transform_indices = @transform_0, window_bounds = array<i64: 1, 8, 128>}, {pipeline_mode = #tpu.pipeline_mode<synchronous>, transform_indices = @transform_1, window_bounds = array<i64: 128, 128>}, {pipeline_mode = #tpu.pipeline_mode<synchronous>, transform_indices = @transform_2, window_bounds = array<i64: 1, 128>}, {transform_indices = @transform_3, window_bounds = array<i64: 1, 8, 128>}]} {
    %c0 = arith.constant 0 : index
    %c0_0 = arith.constant 0 : index
    %c0_1 = arith.constant 0 : index
    %0 = vector.load %arg1[%c0, %c0_0, %c0_1] : memref<1x8x128xf32, #tpu.memory_space<vmem>>, vector<1x8x128xf32>
    %1 = vector.shape_cast %0 : vector<1x8x128xf32> to vector<8x128xf32>
    %c0_2 = arith.constant 0 : index
    %c0_3 = arith.constant 0 : index
    %2 = vector.load %arg2[%c0_2, %c0_3] : memref<128x128xf32, #tpu.memory_space<vmem>>, vector<128x128xf32>
    %cst = arith.constant dense<0.000000e+00> : vector<8x128xf32>
    %3 = tpu.matmul %1, %2, %cst {dimension_numbers = #tpu.dot_dimension_numbers<[1], [0], [0], [1], [0, 0, 1, 1], [], []>} : vector<8x128xf32>, vector<128x128xf32>, vector<8x128xf32> -> vector<8x128xf32>
    %c0_4 = arith.constant 0 : index
    %c0_5 = arith.constant 0 : index
    %4 = vector.load %arg3[%c0_4, %c0_5] : memref<1x128xf32, #tpu.memory_space<vmem>>, vector<1x128xf32>
    %5 = vector.broadcast %4 : vector<1x128xf32> to vector<8x128xf32>
    %6 = arith.addf %3, %5 : vector<8x128xf32>
    %c0_6 = arith.constant 0 : index
    %c0_7 = arith.constant 0 : index
    %c0_8 = arith.constant 0 : index
    %7 = vector.load %arg4[%c0_6, %c0_7, %c0_8] : memref<1x8x128xf32, #tpu.memory_space<vmem>>, vector<1x8x128xf32>
    %8 = vector.shape_cast %7 : vector<1x8x128xf32> to vector<8x128xf32>
    %9 = vector.shape_cast %6 : vector<8x128xf32> to vector<1x8x128xf32>
    tpu.vector_store %arg4[%c0_6, %c0_7, %c0_8], %9 {strides = array<i32>} : memref<1x8x128xf32, #tpu.memory_space<vmem>>, vector<1x8x128xf32>,
    return
  }
  func.func @transform_0(%arg0: i32) -> (i32, i32, i32) {
    %c0_i32 = arith.constant 0 : i32
    %c0_i32_0 = arith.constant 0 : i32
    %c0_i32_1 = arith.constant 0 : i32
    return %arg0, %c0_i32, %c0_i32_0 : i32, i32, i32
  }
  func.func @transform_1(%arg0: i32) -> (i32, i32) {
    %c0_i32 = arith.constant 0 : i32
    %c0_i32_0 = arith.constant 0 : i32
    %c0_i32_1 = arith.constant 0 : i32
    return %c0_i32, %c0_i32_0 : i32, i32
  }
  func.func @transform_2(%arg0: i32) -> (i32, i32) {
    %c0_i32 = arith.constant 0 : i32
    %c0_i32_0 = arith.constant 0 : i32
    %c0_i32_1 = arith.constant 0 : i32
    return %c0_i32, %c0_i32_0 : i32, i32
  }
  func.func @transform_3(%arg0: i32) -> (i32, i32, i32) {
    %c0_i32 = arith.constant 0 : i32
    %c0_i32_0 = arith.constant 0 : i32
    %c0_i32_1 = arith.constant 0 : i32
    return %arg0, %c0_i32, %c0_i32_0 : i32, i32, i32
  }
}

module attributes {stable_mosaic.version = 11 : i64} {
  func.func @_cross_attn_kernel(%arg0: i32, %arg1: memref<1x8x128xf32, #tpu.memory_space<vmem>>, %arg2: memref<1x16x64xf32, #tpu.memory_space<vmem>>, %arg3: memref<1x16x64xf32, #tpu.memory_space<vmem>>, %arg4: memref<1x8x128xf32, #tpu.memory_space<vmem>>) attributes {dimension_semantics = [#tpu.dimension_semantics<parallel>], iteration_bounds = array<i64: 2>, scalar_prefetch = 0 : i64, scratch_operands = 0 : i64, tpu.core_type = #tpu.core_type<tc>, window_params = [{transform_indices = @transform_0, window_bounds = array<i64: 1, 8, 128>}, {transform_indices = @transform_1, window_bounds = array<i64: 1, 16, 64>}, {transform_indices = @transform_2, window_bounds = array<i64: 1, 16, 64>}, {transform_indices = @transform_3, window_bounds = array<i64: 1, 8, 128>}]} {
    %c0 = arith.constant 0 : index
    %c0_0 = arith.constant 0 : index
    %c0_1 = arith.constant 0 : index
    %0 = vector.load %arg1[%c0, %c0_0, %c0_1] : memref<1x8x128xf32, #tpu.memory_space<vmem>>, vector<1x8x128xf32>
    %1 = vector.shape_cast %0 : vector<1x8x128xf32> to vector<8x128xf32>
    %c0_2 = arith.constant 0 : index
    %c0_3 = arith.constant 0 : index
    %c0_4 = arith.constant 0 : index
    %2 = vector.load %arg2[%c0_2, %c0_3, %c0_4] : memref<1x16x64xf32, #tpu.memory_space<vmem>>, vector<1x16x64xf32>
    %3 = vector.shape_cast %2 : vector<1x16x64xf32> to vector<16x64xf32>
    %c0_5 = arith.constant 0 : index
    %c0_6 = arith.constant 0 : index
    %c0_7 = arith.constant 0 : index
    %4 = vector.load %arg3[%c0_5, %c0_6, %c0_7] : memref<1x16x64xf32, #tpu.memory_space<vmem>>, vector<1x16x64xf32>
    %5 = vector.shape_cast %4 : vector<1x16x64xf32> to vector<16x64xf32>
    %6 = vector.extract_strided_slice %1 {offsets = [0, 0], sizes = [8, 32], strides = [1, 1]} : vector<8x128xf32> to vector<8x32xf32>
    %7 = vector.extract_strided_slice %3 {offsets = [0, 0], sizes = [16, 32], strides = [1, 1]} : vector<16x64xf32> to vector<16x32xf32>
    %8 = vector.extract_strided_slice %5 {offsets = [0, 0], sizes = [16, 32], strides = [1, 1]} : vector<16x64xf32> to vector<16x32xf32>
    %cst = arith.constant dense<0.000000e+00> : vector<8x16xf32>
    %9 = tpu.matmul %6, %7, %cst {dimension_numbers = #tpu.dot_dimension_numbers<[1], [1], [0], [0], [0, 0, 1, 0], [], []>} : vector<8x32xf32>, vector<16x32xf32>, vector<8x16xf32> -> vector<8x16xf32>
    %cst_8 = arith.constant 0.176776692 : f32
    %10 = vector.broadcast %cst_8 : f32 to vector<8x16xf32>
    %11 = arith.mulf %9, %10 : vector<8x16xf32>
    %cst_9 = arith.constant dense<0xFF800000> : vector<8xf32>
    %12 = vector.multi_reduction <maximumf>, %11, %cst_9 [1] : vector<8x16xf32> to vector<8xf32>
    %13 = vector.shape_cast %12 : vector<8xf32> to vector<8x1xf32>
    %14 = vector.broadcast %13 : vector<8x1xf32> to vector<8x16xf32>
    %15 = arith.subf %11, %14 : vector<8x16xf32>
    %16 = math.exp %15 : vector<8x16xf32>
    %cst_10 = arith.constant dense<0.000000e+00> : vector<8xf32>
    %17 = vector.multi_reduction <add>, %16, %cst_10 [1] : vector<8x16xf32> to vector<8xf32>
    %18 = vector.shape_cast %17 : vector<8xf32> to vector<8x1xf32>
    %19 = vector.broadcast %18 : vector<8x1xf32> to vector<8x16xf32>
    %20 = arith.divf %16, %19 : vector<8x16xf32>
    %cst_11 = arith.constant dense<0.000000e+00> : vector<8x32xf32>
    %21 = tpu.matmul %20, %8, %cst_11 {dimension_numbers = #tpu.dot_dimension_numbers<[1], [0], [0], [1], [0, 0, 1, 1], [], []>} : vector<8x16xf32>, vector<16x32xf32>, vector<8x32xf32> -> vector<8x32xf32>
    %22 = vector.extract_strided_slice %1 {offsets = [0, 32], sizes = [8, 32], strides = [1, 1]} : vector<8x128xf32> to vector<8x32xf32>
    %23 = vector.extract_strided_slice %3 {offsets = [0, 0], sizes = [16, 32], strides = [1, 1]} : vector<16x64xf32> to vector<16x32xf32>
    %24 = vector.extract_strided_slice %5 {offsets = [0, 0], sizes = [16, 32], strides = [1, 1]} : vector<16x64xf32> to vector<16x32xf32>
    %cst_12 = arith.constant dense<0.000000e+00> : vector<8x16xf32>
    %25 = tpu.matmul %22, %23, %cst_12 {dimension_numbers = #tpu.dot_dimension_numbers<[1], [1], [0], [0], [0, 0, 1, 0], [], []>} : vector<8x32xf32>, vector<16x32xf32>, vector<8x16xf32> -> vector<8x16xf32>
    %cst_13 = arith.constant 0.176776692 : f32
    %26 = vector.broadcast %cst_13 : f32 to vector<8x16xf32>
    %27 = arith.mulf %25, %26 : vector<8x16xf32>
    %cst_14 = arith.constant dense<0xFF800000> : vector<8xf32>
    %28 = vector.multi_reduction <maximumf>, %27, %cst_14 [1] : vector<8x16xf32> to vector<8xf32>
    %29 = vector.shape_cast %28 : vector<8xf32> to vector<8x1xf32>
    %30 = vector.broadcast %29 : vector<8x1xf32> to vector<8x16xf32>
    %31 = arith.subf %27, %30 : vector<8x16xf32>
    %32 = math.exp %31 : vector<8x16xf32>
    %cst_15 = arith.constant dense<0.000000e+00> : vector<8xf32>
    %33 = vector.multi_reduction <add>, %32, %cst_15 [1] : vector<8x16xf32> to vector<8xf32>
    %34 = vector.shape_cast %33 : vector<8xf32> to vector<8x1xf32>
    %35 = vector.broadcast %34 : vector<8x1xf32> to vector<8x16xf32>
    %36 = arith.divf %32, %35 : vector<8x16xf32>
    %cst_16 = arith.constant dense<0.000000e+00> : vector<8x32xf32>
    %37 = tpu.matmul %36, %24, %cst_16 {dimension_numbers = #tpu.dot_dimension_numbers<[1], [0], [0], [1], [0, 0, 1, 1], [], []>} : vector<8x16xf32>, vector<16x32xf32>, vector<8x32xf32> -> vector<8x32xf32>
    %38 = vector.extract_strided_slice %1 {offsets = [0, 64], sizes = [8, 32], strides = [1, 1]} : vector<8x128xf32> to vector<8x32xf32>
    %39 = vector.extract_strided_slice %3 {offsets = [0, 32], sizes = [16, 32], strides = [1, 1]} : vector<16x64xf32> to vector<16x32xf32>
    %40 = vector.extract_strided_slice %5 {offsets = [0, 32], sizes = [16, 32], strides = [1, 1]} : vector<16x64xf32> to vector<16x32xf32>
    %cst_17 = arith.constant dense<0.000000e+00> : vector<8x16xf32>
    %41 = tpu.matmul %38, %39, %cst_17 {dimension_numbers = #tpu.dot_dimension_numbers<[1], [1], [0], [0], [0, 0, 1, 0], [], []>} : vector<8x32xf32>, vector<16x32xf32>, vector<8x16xf32> -> vector<8x16xf32>
    %cst_18 = arith.constant 0.176776692 : f32
    %42 = vector.broadcast %cst_18 : f32 to vector<8x16xf32>
    %43 = arith.mulf %41, %42 : vector<8x16xf32>
    %cst_19 = arith.constant dense<0xFF800000> : vector<8xf32>
    %44 = vector.multi_reduction <maximumf>, %43, %cst_19 [1] : vector<8x16xf32> to vector<8xf32>
    %45 = vector.shape_cast %44 : vector<8xf32> to vector<8x1xf32>
    %46 = vector.broadcast %45 : vector<8x1xf32> to vector<8x16xf32>
    %47 = arith.subf %43, %46 : vector<8x16xf32>
    %48 = math.exp %47 : vector<8x16xf32>
    %cst_20 = arith.constant dense<0.000000e+00> : vector<8xf32>
    %49 = vector.multi_reduction <add>, %48, %cst_20 [1] : vector<8x16xf32> to vector<8xf32>
    %50 = vector.shape_cast %49 : vector<8xf32> to vector<8x1xf32>
    %51 = vector.broadcast %50 : vector<8x1xf32> to vector<8x16xf32>
    %52 = arith.divf %48, %51 : vector<8x16xf32>
    %cst_21 = arith.constant dense<0.000000e+00> : vector<8x32xf32>
    %53 = tpu.matmul %52, %40, %cst_21 {dimension_numbers = #tpu.dot_dimension_numbers<[1], [0], [0], [1], [0, 0, 1, 1], [], []>} : vector<8x16xf32>, vector<16x32xf32>, vector<8x32xf32> -> vector<8x32xf32>
    %54 = vector.extract_strided_slice %1 {offsets = [0, 96], sizes = [8, 32], strides = [1, 1]} : vector<8x128xf32> to vector<8x32xf32>
    %55 = vector.extract_strided_slice %3 {offsets = [0, 32], sizes = [16, 32], strides = [1, 1]} : vector<16x64xf32> to vector<16x32xf32>
    %56 = vector.extract_strided_slice %5 {offsets = [0, 32], sizes = [16, 32], strides = [1, 1]} : vector<16x64xf32> to vector<16x32xf32>
    %cst_22 = arith.constant dense<0.000000e+00> : vector<8x16xf32>
    %57 = tpu.matmul %54, %55, %cst_22 {dimension_numbers = #tpu.dot_dimension_numbers<[1], [1], [0], [0], [0, 0, 1, 0], [], []>} : vector<8x32xf32>, vector<16x32xf32>, vector<8x16xf32> -> vector<8x16xf32>
    %cst_23 = arith.constant 0.176776692 : f32
    %58 = vector.broadcast %cst_23 : f32 to vector<8x16xf32>
    %59 = arith.mulf %57, %58 : vector<8x16xf32>
    %cst_24 = arith.constant dense<0xFF800000> : vector<8xf32>
    %60 = vector.multi_reduction <maximumf>, %59, %cst_24 [1] : vector<8x16xf32> to vector<8xf32>
    %61 = vector.shape_cast %60 : vector<8xf32> to vector<8x1xf32>
    %62 = vector.broadcast %61 : vector<8x1xf32> to vector<8x16xf32>
    %63 = arith.subf %59, %62 : vector<8x16xf32>
    %64 = math.exp %63 : vector<8x16xf32>
    %cst_25 = arith.constant dense<0.000000e+00> : vector<8xf32>
    %65 = vector.multi_reduction <add>, %64, %cst_25 [1] : vector<8x16xf32> to vector<8xf32>
    %66 = vector.shape_cast %65 : vector<8xf32> to vector<8x1xf32>
    %67 = vector.broadcast %66 : vector<8x1xf32> to vector<8x16xf32>
    %68 = arith.divf %64, %67 : vector<8x16xf32>
    %cst_26 = arith.constant dense<0.000000e+00> : vector<8x32xf32>
    %69 = tpu.matmul %68, %56, %cst_26 {dimension_numbers = #tpu.dot_dimension_numbers<[1], [0], [0], [1], [0, 0, 1, 1], [], []>} : vector<8x16xf32>, vector<16x32xf32>, vector<8x32xf32> -> vector<8x32xf32>
    %70 = tpu.concatenate %21, %37, %53, %69 in 1 : vector<8x32xf32>, vector<8x32xf32>, vector<8x32xf32>, vector<8x32xf32> -> vector<8x128xf32>
    %c0_27 = arith.constant 0 : index
    %c0_28 = arith.constant 0 : index
    %c0_29 = arith.constant 0 : index
    %71 = vector.load %arg4[%c0_27, %c0_28, %c0_29] : memref<1x8x128xf32, #tpu.memory_space<vmem>>, vector<1x8x128xf32>
    %72 = vector.shape_cast %71 : vector<1x8x128xf32> to vector<8x128xf32>
    %73 = vector.shape_cast %70 : vector<8x128xf32> to vector<1x8x128xf32>
    tpu.vector_store %arg4[%c0_27, %c0_28, %c0_29], %73 {strides = array<i32>} : memref<1x8x128xf32, #tpu.memory_space<vmem>>, vector<1x8x128xf32>,
    return
  }
  func.func @transform_0(%arg0: i32) -> (i32, i32, i32) {
    %c0_i32 = arith.constant 0 : i32
    %c0_i32_0 = arith.constant 0 : i32
    %c0_i32_1 = arith.constant 0 : i32
    return %arg0, %c0_i32, %c0_i32_0 : i32, i32, i32
  }
  func.func @transform_1(%arg0: i32) -> (i32, i32, i32) {
    %c0_i32 = arith.constant 0 : i32
    %c0_i32_0 = arith.constant 0 : i32
    %c0_i32_1 = arith.constant 0 : i32
    return %arg0, %c0_i32, %c0_i32_0 : i32, i32, i32
  }
  func.func @transform_2(%arg0: i32) -> (i32, i32, i32) {
    %c0_i32 = arith.constant 0 : i32
    %c0_i32_0 = arith.constant 0 : i32
    %c0_i32_1 = arith.constant 0 : i32
    return %arg0, %c0_i32, %c0_i32_0 : i32, i32, i32
  }
  func.func @transform_3(%arg0: i32) -> (i32, i32, i32) {
    %c0_i32 = arith.constant 0 : i32
    %c0_i32_0 = arith.constant 0 : i32
    %c0_i32_1 = arith.constant 0 : i32
    return %arg0, %c0_i32, %c0_i32_0 : i32, i32, i32
  }
}

module attributes {stable_mosaic.version = 11 : i64} {
  func.func @_linear_kernel(%arg0: i32, %arg1: memref<1x8x128xf32, #tpu.memory_space<vmem>>, %arg2: memref<128x64xf32, #tpu.memory_space<vmem>>, %arg3: memref<1x64xf32, #tpu.memory_space<vmem>>, %arg4: memref<1x8x64xf32, #tpu.memory_space<vmem>>) attributes {dimension_semantics = [#tpu.dimension_semantics<parallel>], iteration_bounds = array<i64: 2>, scalar_prefetch = 0 : i64, scratch_operands = 0 : i64, tpu.core_type = #tpu.core_type<tc>, window_params = [{transform_indices = @transform_0, window_bounds = array<i64: 1, 8, 128>}, {pipeline_mode = #tpu.pipeline_mode<synchronous>, transform_indices = @transform_1, window_bounds = array<i64: 128, 64>}, {pipeline_mode = #tpu.pipeline_mode<synchronous>, transform_indices = @transform_2, window_bounds = array<i64: 1, 64>}, {transform_indices = @transform_3, window_bounds = array<i64: 1, 8, 64>}]} {
    %c0 = arith.constant 0 : index
    %c0_0 = arith.constant 0 : index
    %c0_1 = arith.constant 0 : index
    %0 = vector.load %arg1[%c0, %c0_0, %c0_1] : memref<1x8x128xf32, #tpu.memory_space<vmem>>, vector<1x8x128xf32>
    %1 = vector.shape_cast %0 : vector<1x8x128xf32> to vector<8x128xf32>
    %c0_2 = arith.constant 0 : index
    %c0_3 = arith.constant 0 : index
    %2 = vector.load %arg2[%c0_2, %c0_3] : memref<128x64xf32, #tpu.memory_space<vmem>>, vector<128x64xf32>
    %cst = arith.constant dense<0.000000e+00> : vector<8x64xf32>
    %3 = tpu.matmul %1, %2, %cst {dimension_numbers = #tpu.dot_dimension_numbers<[1], [0], [0], [1], [0, 0, 1, 1], [], []>} : vector<8x128xf32>, vector<128x64xf32>, vector<8x64xf32> -> vector<8x64xf32>
    %c0_4 = arith.constant 0 : index
    %c0_5 = arith.constant 0 : index
    %4 = vector.load %arg3[%c0_4, %c0_5] : memref<1x64xf32, #tpu.memory_space<vmem>>, vector<1x64xf32>
    %5 = vector.broadcast %4 : vector<1x64xf32> to vector<8x64xf32>
    %6 = arith.addf %3, %5 : vector<8x64xf32>
    %c0_6 = arith.constant 0 : index
    %c0_7 = arith.constant 0 : index
    %c0_8 = arith.constant 0 : index
    %7 = vector.load %arg4[%c0_6, %c0_7, %c0_8] : memref<1x8x64xf32, #tpu.memory_space<vmem>>, vector<1x8x64xf32>
    %8 = vector.shape_cast %7 : vector<1x8x64xf32> to vector<8x64xf32>
    %9 = vector.shape_cast %6 : vector<8x64xf32> to vector<1x8x64xf32>
    tpu.vector_store %arg4[%c0_6, %c0_7, %c0_8], %9 {strides = array<i32>} : memref<1x8x64xf32, #tpu.memory_space<vmem>>, vector<1x8x64xf32>,
    return
  }
  func.func @transform_0(%arg0: i32) -> (i32, i32, i32) {
    %c0_i32 = arith.constant 0 : i32
    %c0_i32_0 = arith.constant 0 : i32
    %c0_i32_1 = arith.constant 0 : i32
    return %arg0, %c0_i32, %c0_i32_0 : i32, i32, i32
  }
  func.func @transform_1(%arg0: i32) -> (i32, i32) {
    %c0_i32 = arith.constant 0 : i32
    %c0_i32_0 = arith.constant 0 : i32
    %c0_i32_1 = arith.constant 0 : i32
    return %c0_i32, %c0_i32_0 : i32, i32
  }
  func.func @transform_2(%arg0: i32) -> (i32, i32) {
    %c0_i32 = arith.constant 0 : i32
    %c0_i32_0 = arith.constant 0 : i32
    %c0_i32_1 = arith.constant 0 : i32
    return %c0_i32, %c0_i32_0 : i32, i32
  }
  func.func @transform_3(%arg0: i32) -> (i32, i32, i32) {
    %c0_i32 = arith.constant 0 : i32
    %c0_i32_0 = arith.constant 0 : i32
    %c0_i32_1 = arith.constant 0 : i32
    return %arg0, %c0_i32, %c0_i32_0 : i32, i32, i32
  }
}

module attributes {stable_mosaic.version = 11 : i64} {
  func.func @_mlp_kernel(%arg0: i32, %arg1: memref<1x8x128xf32, #tpu.memory_space<vmem>>, %arg2: memref<128x256xf32, #tpu.memory_space<vmem>>, %arg3: memref<128x256xf32, #tpu.memory_space<vmem>>, %arg4: memref<256x128xf32, #tpu.memory_space<vmem>>, %arg5: memref<1x8x128xf32, #tpu.memory_space<vmem>>) attributes {dimension_semantics = [#tpu.dimension_semantics<parallel>], iteration_bounds = array<i64: 2>, scalar_prefetch = 0 : i64, scratch_operands = 0 : i64, tpu.core_type = #tpu.core_type<tc>, window_params = [{transform_indices = @transform_0, window_bounds = array<i64: 1, 8, 128>}, {pipeline_mode = #tpu.pipeline_mode<synchronous>, transform_indices = @transform_1, window_bounds = array<i64: 128, 256>}, {pipeline_mode = #tpu.pipeline_mode<synchronous>, transform_indices = @transform_2, window_bounds = array<i64: 128, 256>}, {pipeline_mode = #tpu.pipeline_mode<synchronous>, transform_indices = @transform_3, window_bounds = array<i64: 256, 128>}, {transform_indices = @transform_4, window_bounds = array<i64: 1, 8, 128>}]} {
    %c0 = arith.constant 0 : index
    %c0_0 = arith.constant 0 : index
    %c0_1 = arith.constant 0 : index
    %0 = vector.load %arg1[%c0, %c0_0, %c0_1] : memref<1x8x128xf32, #tpu.memory_space<vmem>>, vector<1x8x128xf32>
    %1 = vector.shape_cast %0 : vector<1x8x128xf32> to vector<8x128xf32>
    %c0_2 = arith.constant 0 : index
    %c0_3 = arith.constant 0 : index
    %2 = vector.load %arg2[%c0_2, %c0_3] : memref<128x256xf32, #tpu.memory_space<vmem>>, vector<128x256xf32>
    %cst = arith.constant dense<0.000000e+00> : vector<8x256xf32>
    %3 = tpu.matmul %1, %2, %cst {dimension_numbers = #tpu.dot_dimension_numbers<[1], [0], [0], [1], [0, 0, 1, 1], [], []>} : vector<8x128xf32>, vector<128x256xf32>, vector<8x256xf32> -> vector<8x256xf32>
    %c0_4 = arith.constant 0 : index
    %c0_5 = arith.constant 0 : index
    %4 = vector.load %arg3[%c0_4, %c0_5] : memref<128x256xf32, #tpu.memory_space<vmem>>, vector<128x256xf32>
    %cst_6 = arith.constant dense<0.000000e+00> : vector<8x256xf32>
    %5 = tpu.matmul %1, %4, %cst_6 {dimension_numbers = #tpu.dot_dimension_numbers<[1], [0], [0], [1], [0, 0, 1, 1], [], []>} : vector<8x128xf32>, vector<128x256xf32>, vector<8x256xf32> -> vector<8x256xf32>
    %cst_7 = arith.constant 5.000000e-01 : f32
    %6 = vector.broadcast %cst_7 : f32 to vector<8x256xf32>
    %7 = arith.mulf %6, %3 : vector<8x256xf32>
    %cst_8 = arith.constant 4.471500e-02 : f32
    %8 = vector.broadcast %cst_8 : f32 to vector<8x256xf32>
    %9 = arith.mulf %8, %3 : vector<8x256xf32>
    %10 = arith.mulf %9, %3 : vector<8x256xf32>
    %11 = arith.mulf %10, %3 : vector<8x256xf32>
    %12 = arith.addf %3, %11 : vector<8x256xf32>
    %cst_9 = arith.constant 0.797884583 : f32
    %13 = vector.broadcast %cst_9 : f32 to vector<8x256xf32>
    %14 = arith.mulf %13, %12 : vector<8x256xf32>
    %15 = math.tanh %14 : vector<8x256xf32>
    %cst_10 = arith.constant 1.000000e+00 : f32
    %16 = vector.broadcast %cst_10 : f32 to vector<8x256xf32>
    %17 = arith.addf %16, %15 : vector<8x256xf32>
    %18 = arith.mulf %7, %17 : vector<8x256xf32>
    %19 = arith.mulf %18, %5 : vector<8x256xf32>
    %c0_11 = arith.constant 0 : index
    %c0_12 = arith.constant 0 : index
    %20 = vector.load %arg4[%c0_11, %c0_12] : memref<256x128xf32, #tpu.memory_space<vmem>>, vector<256x128xf32>
    %cst_13 = arith.constant dense<0.000000e+00> : vector<8x128xf32>
    %21 = tpu.matmul %19, %20, %cst_13 {dimension_numbers = #tpu.dot_dimension_numbers<[1], [0], [0], [1], [0, 0, 1, 1], [], []>} : vector<8x256xf32>, vector<256x128xf32>, vector<8x128xf32> -> vector<8x128xf32>
    %c0_14 = arith.constant 0 : index
    %c0_15 = arith.constant 0 : index
    %c0_16 = arith.constant 0 : index
    %22 = vector.load %arg5[%c0_14, %c0_15, %c0_16] : memref<1x8x128xf32, #tpu.memory_space<vmem>>, vector<1x8x128xf32>
    %23 = vector.shape_cast %22 : vector<1x8x128xf32> to vector<8x128xf32>
    %24 = vector.shape_cast %21 : vector<8x128xf32> to vector<1x8x128xf32>
    tpu.vector_store %arg5[%c0_14, %c0_15, %c0_16], %24 {strides = array<i32>} : memref<1x8x128xf32, #tpu.memory_space<vmem>>, vector<1x8x128xf32>,
    return
  }
  func.func @transform_0(%arg0: i32) -> (i32, i32, i32) {
    %c0_i32 = arith.constant 0 : i32
    %c0_i32_0 = arith.constant 0 : i32
    %c0_i32_1 = arith.constant 0 : i32
    return %arg0, %c0_i32, %c0_i32_0 : i32, i32, i32
  }
  func.func @transform_1(%arg0: i32) -> (i32, i32) {
    %c0_i32 = arith.constant 0 : i32
    %c0_i32_0 = arith.constant 0 : i32
    %c0_i32_1 = arith.constant 0 : i32
    return %c0_i32, %c0_i32_0 : i32, i32
  }
  func.func @transform_2(%arg0: i32) -> (i32, i32) {
    %c0_i32 = arith.constant 0 : i32
    %c0_i32_0 = arith.constant 0 : i32
    %c0_i32_1 = arith.constant 0 : i32
    return %c0_i32, %c0_i32_0 : i32, i32
  }
  func.func @transform_3(%arg0: i32) -> (i32, i32) {
    %c0_i32 = arith.constant 0 : i32
    %c0_i32_0 = arith.constant 0 : i32
    %c0_i32_1 = arith.constant 0 : i32
    return %c0_i32, %c0_i32_0 : i32, i32
  }
  func.func @transform_4(%arg0: i32) -> (i32, i32, i32) {
    %c0_i32 = arith.constant 0 : i32
    %c0_i32_0 = arith.constant 0 : i32
    %c0_i32_1 = arith.constant 0 : i32
    return %arg0, %c0_i32, %c0_i32_0 : i32, i32, i32
  }
}

module attributes {stable_mosaic.version = 11 : i64} {
  func.func @_self_attn_rope_kernel(%arg0: i32, %arg1: memref<1x8x1xi32, #tpu.memory_space<vmem>>, %arg2: memref<1x16xf32, #tpu.memory_space<vmem>>, %arg3: memref<1x8x128xf32, #tpu.memory_space<vmem>>, %arg4: memref<1x8x64xf32, #tpu.memory_space<vmem>>, %arg5: memref<1x8x64xf32, #tpu.memory_space<vmem>>, %arg6: memref<1x1x8x8xf32, #tpu.memory_space<vmem>>, %arg7: memref<1x8x128xf32, #tpu.memory_space<vmem>>) attributes {dimension_semantics = [#tpu.dimension_semantics<parallel>], iteration_bounds = array<i64: 2>, scalar_prefetch = 0 : i64, scratch_operands = 0 : i64, tpu.core_type = #tpu.core_type<tc>, window_params = [{transform_indices = @transform_0, window_bounds = array<i64: 1, 8, 1>}, {pipeline_mode = #tpu.pipeline_mode<synchronous>, transform_indices = @transform_1, window_bounds = array<i64: 1, 16>}, {transform_indices = @transform_2, window_bounds = array<i64: 1, 8, 128>}, {transform_indices = @transform_3, window_bounds = array<i64: 1, 8, 64>}, {transform_indices = @transform_4, window_bounds = array<i64: 1, 8, 64>}, {transform_indices = @transform_5, window_bounds = array<i64: 1, 1, 8, 8>}, {transform_indices = @transform_6, window_bounds = array<i64: 1, 8, 128>}]} {
    %c0 = arith.constant 0 : index
    %c0_0 = arith.constant 0 : index
    %c0_1 = arith.constant 0 : index
    %0 = vector.load %arg1[%c0, %c0_0, %c0_1] : memref<1x8x1xi32, #tpu.memory_space<vmem>>, vector<1x8x1xi32>
    %1 = vector.shape_cast %0 : vector<1x8x1xi32> to vector<8x1xi32>
    %2 = arith.sitofp %1 : vector<8x1xi32> to vector<8x1xf32>
    %c0_2 = arith.constant 0 : index
    %c0_3 = arith.constant 0 : index
    %3 = vector.load %arg2[%c0_2, %c0_3] : memref<1x16xf32, #tpu.memory_space<vmem>>, vector<1x16xf32>
    %4 = vector.broadcast %2 : vector<8x1xf32> to vector<8x16xf32>
    %5 = vector.broadcast %3 : vector<1x16xf32> to vector<8x16xf32>
    %6 = arith.mulf %4, %5 : vector<8x16xf32>
    %7 = math.cos %6 : vector<8x16xf32>
    %8 = math.sin %6 : vector<8x16xf32>
    %c0_4 = arith.constant 0 : index
    %c0_5 = arith.constant 0 : index
    %c0_6 = arith.constant 0 : index
    %c0_7 = arith.constant 0 : index
    %9 = vector.load %arg6[%c0_4, %c0_5, %c0_6, %c0_7] : memref<1x1x8x8xf32, #tpu.memory_space<vmem>>, vector<1x1x8x8xf32>
    %10 = vector.shape_cast %9 : vector<1x1x8x8xf32> to vector<8x8xf32>
    %c0_8 = arith.constant 0 : index
    %c0_9 = arith.constant 0 : index
    %c0_10 = arith.constant 0 : index
    %11 = vector.load %arg3[%c0_8, %c0_9, %c0_10] : memref<1x8x128xf32, #tpu.memory_space<vmem>>, vector<1x8x128xf32>
    %12 = vector.shape_cast %11 : vector<1x8x128xf32> to vector<8x128xf32>
    %c0_11 = arith.constant 0 : index
    %c0_12 = arith.constant 0 : index
    %c0_13 = arith.constant 0 : index
    %13 = vector.load %arg4[%c0_11, %c0_12, %c0_13] : memref<1x8x64xf32, #tpu.memory_space<vmem>>, vector<1x8x64xf32>
    %14 = vector.shape_cast %13 : vector<1x8x64xf32> to vector<8x64xf32>
    %c0_14 = arith.constant 0 : index
    %c0_15 = arith.constant 0 : index
    %c0_16 = arith.constant 0 : index
    %15 = vector.load %arg5[%c0_14, %c0_15, %c0_16] : memref<1x8x64xf32, #tpu.memory_space<vmem>>, vector<1x8x64xf32>
    %16 = vector.shape_cast %15 : vector<1x8x64xf32> to vector<8x64xf32>
    %17 = vector.extract_strided_slice %14 {offsets = [0, 0], sizes = [8, 32], strides = [1, 1]} : vector<8x64xf32> to vector<8x32xf32>
    %18 = vector.extract_strided_slice %17 {offsets = [0, 0], sizes = [8, 16], strides = [1, 1]} : vector<8x32xf32> to vector<8x16xf32>
    %19 = vector.extract_strided_slice %17 {offsets = [0, 16], sizes = [8, 16], strides = [1, 1]} : vector<8x32xf32> to vector<8x16xf32>
    %20 = arith.mulf %18, %7 : vector<8x16xf32>
    %21 = arith.mulf %19, %8 : vector<8x16xf32>
    %22 = arith.subf %20, %21 : vector<8x16xf32>
    %23 = arith.mulf %19, %7 : vector<8x16xf32>
    %24 = arith.mulf %18, %8 : vector<8x16xf32>
    %25 = arith.addf %23, %24 : vector<8x16xf32>
    %26 = tpu.concatenate %22, %25 in 1 : vector<8x16xf32>, vector<8x16xf32> -> vector<8x32xf32>
    %27 = vector.extract_strided_slice %14 {offsets = [0, 32], sizes = [8, 32], strides = [1, 1]} : vector<8x64xf32> to vector<8x32xf32>
    %28 = vector.extract_strided_slice %27 {offsets = [0, 0], sizes = [8, 16], strides = [1, 1]} : vector<8x32xf32> to vector<8x16xf32>
    %29 = vector.extract_strided_slice %27 {offsets = [0, 16], sizes = [8, 16], strides = [1, 1]} : vector<8x32xf32> to vector<8x16xf32>
    %30 = arith.mulf %28, %7 : vector<8x16xf32>
    %31 = arith.mulf %29, %8 : vector<8x16xf32>
    %32 = arith.subf %30, %31 : vector<8x16xf32>
    %33 = arith.mulf %29, %7 : vector<8x16xf32>
    %34 = arith.mulf %28, %8 : vector<8x16xf32>
    %35 = arith.addf %33, %34 : vector<8x16xf32>
    %36 = tpu.concatenate %32, %35 in 1 : vector<8x16xf32>, vector<8x16xf32> -> vector<8x32xf32>
    %37 = vector.extract_strided_slice %16 {offsets = [0, 0], sizes = [8, 32], strides = [1, 1]} : vector<8x64xf32> to vector<8x32xf32>
    %38 = vector.extract_strided_slice %16 {offsets = [0, 32], sizes = [8, 32], strides = [1, 1]} : vector<8x64xf32> to vector<8x32xf32>
    %39 = vector.extract_strided_slice %12 {offsets = [0, 0], sizes = [8, 32], strides = [1, 1]} : vector<8x128xf32> to vector<8x32xf32>
    %40 = vector.extract_strided_slice %39 {offsets = [0, 0], sizes = [8, 16], strides = [1, 1]} : vector<8x32xf32> to vector<8x16xf32>
    %41 = vector.extract_strided_slice %39 {offsets = [0, 16], sizes = [8, 16], strides = [1, 1]} : vector<8x32xf32> to vector<8x16xf32>
    %42 = arith.mulf %40, %7 : vector<8x16xf32>
    %43 = arith.mulf %41, %8 : vector<8x16xf32>
    %44 = arith.subf %42, %43 : vector<8x16xf32>
    %45 = arith.mulf %41, %7 : vector<8x16xf32>
    %46 = arith.mulf %40, %8 : vector<8x16xf32>
    %47 = arith.addf %45, %46 : vector<8x16xf32>
    %48 = tpu.concatenate %44, %47 in 1 : vector<8x16xf32>, vector<8x16xf32> -> vector<8x32xf32>
    %cst = arith.constant dense<0.000000e+00> : vector<8x8xf32>
    %49 = tpu.matmul %48, %26, %cst {dimension_numbers = #tpu.dot_dimension_numbers<[1], [1], [0], [0], [0, 0, 1, 0], [], []>} : vector<8x32xf32>, vector<8x32xf32>, vector<8x8xf32> -> vector<8x8xf32>
    %cst_17 = arith.constant 0.176776692 : f32
    %50 = vector.broadcast %cst_17 : f32 to vector<8x8xf32>
    %51 = arith.mulf %49, %50 : vector<8x8xf32>
    %52 = arith.addf %51, %10 : vector<8x8xf32>
    %cst_18 = arith.constant dense<0xFF800000> : vector<8xf32>
    %53 = vector.multi_reduction <maximumf>, %52, %cst_18 [1] : vector<8x8xf32> to vector<8xf32>
    %54 = vector.shape_cast %53 : vector<8xf32> to vector<8x1xf32>
    %55 = vector.broadcast %54 : vector<8x1xf32> to vector<8x8xf32>
    %56 = arith.subf %52, %55 : vector<8x8xf32>
    %57 = math.exp %56 : vector<8x8xf32>
    %cst_19 = arith.constant dense<0.000000e+00> : vector<8xf32>
    %58 = vector.multi_reduction <add>, %57, %cst_19 [1] : vector<8x8xf32> to vector<8xf32>
    %59 = vector.shape_cast %58 : vector<8xf32> to vector<8x1xf32>
    %60 = vector.broadcast %59 : vector<8x1xf32> to vector<8x8xf32>
    %61 = arith.divf %57, %60 : vector<8x8xf32>
    %cst_20 = arith.constant dense<0.000000e+00> : vector<8x32xf32>
    %62 = tpu.matmul %61, %37, %cst_20 {dimension_numbers = #tpu.dot_dimension_numbers<[1], [0], [0], [1], [0, 0, 1, 1], [], []>} : vector<8x8xf32>, vector<8x32xf32>, vector<8x32xf32> -> vector<8x32xf32>
    %63 = vector.extract_strided_slice %12 {offsets = [0, 32], sizes = [8, 32], strides = [1, 1]} : vector<8x128xf32> to vector<8x32xf32>
    %64 = vector.extract_strided_slice %63 {offsets = [0, 0], sizes = [8, 16], strides = [1, 1]} : vector<8x32xf32> to vector<8x16xf32>
    %65 = vector.extract_strided_slice %63 {offsets = [0, 16], sizes = [8, 16], strides = [1, 1]} : vector<8x32xf32> to vector<8x16xf32>
    %66 = arith.mulf %64, %7 : vector<8x16xf32>
    %67 = arith.mulf %65, %8 : vector<8x16xf32>
    %68 = arith.subf %66, %67 : vector<8x16xf32>
    %69 = arith.mulf %65, %7 : vector<8x16xf32>
    %70 = arith.mulf %64, %8 : vector<8x16xf32>
    %71 = arith.addf %69, %70 : vector<8x16xf32>
    %72 = tpu.concatenate %68, %71 in 1 : vector<8x16xf32>, vector<8x16xf32> -> vector<8x32xf32>
    %cst_21 = arith.constant dense<0.000000e+00> : vector<8x8xf32>
    %73 = tpu.matmul %72, %26, %cst_21 {dimension_numbers = #tpu.dot_dimension_numbers<[1], [1], [0], [0], [0, 0, 1, 0], [], []>} : vector<8x32xf32>, vector<8x32xf32>, vector<8x8xf32> -> vector<8x8xf32>
    %cst_22 = arith.constant 0.176776692 : f32
    %74 = vector.broadcast %cst_22 : f32 to vector<8x8xf32>
    %75 = arith.mulf %73, %74 : vector<8x8xf32>
    %76 = arith.addf %75, %10 : vector<8x8xf32>
    %cst_23 = arith.constant dense<0xFF800000> : vector<8xf32>
    %77 = vector.multi_reduction <maximumf>, %76, %cst_23 [1] : vector<8x8xf32> to vector<8xf32>
    %78 = vector.shape_cast %77 : vector<8xf32> to vector<8x1xf32>
    %79 = vector.broadcast %78 : vector<8x1xf32> to vector<8x8xf32>
    %80 = arith.subf %76, %79 : vector<8x8xf32>
    %81 = math.exp %80 : vector<8x8xf32>
    %cst_24 = arith.constant dense<0.000000e+00> : vector<8xf32>
    %82 = vector.multi_reduction <add>, %81, %cst_24 [1] : vector<8x8xf32> to vector<8xf32>
    %83 = vector.shape_cast %82 : vector<8xf32> to vector<8x1xf32>
    %84 = vector.broadcast %83 : vector<8x1xf32> to vector<8x8xf32>
    %85 = arith.divf %81, %84 : vector<8x8xf32>
    %cst_25 = arith.constant dense<0.000000e+00> : vector<8x32xf32>
    %86 = tpu.matmul %85, %37, %cst_25 {dimension_numbers = #tpu.dot_dimension_numbers<[1], [0], [0], [1], [0, 0, 1, 1], [], []>} : vector<8x8xf32>, vector<8x32xf32>, vector<8x32xf32> -> vector<8x32xf32>
    %87 = vector.extract_strided_slice %12 {offsets = [0, 64], sizes = [8, 32], strides = [1, 1]} : vector<8x128xf32> to vector<8x32xf32>
    %88 = vector.extract_strided_slice %87 {offsets = [0, 0], sizes = [8, 16], strides = [1, 1]} : vector<8x32xf32> to vector<8x16xf32>
    %89 = vector.extract_strided_slice %87 {offsets = [0, 16], sizes = [8, 16], strides = [1, 1]} : vector<8x32xf32> to vector<8x16xf32>
    %90 = arith.mulf %88, %7 : vector<8x16xf32>
    %91 = arith.mulf %89, %8 : vector<8x16xf32>
    %92 = arith.subf %90, %91 : vector<8x16xf32>
    %93 = arith.mulf %89, %7 : vector<8x16xf32>
    %94 = arith.mulf %88, %8 : vector<8x16xf32>
    %95 = arith.addf %93, %94 : vector<8x16xf32>
    %96 = tpu.concatenate %92, %95 in 1 : vector<8x16xf32>, vector<8x16xf32> -> vector<8x32xf32>
    %cst_26 = arith.constant dense<0.000000e+00> : vector<8x8xf32>
    %97 = tpu.matmul %96, %36, %cst_26 {dimension_numbers = #tpu.dot_dimension_numbers<[1], [1], [0], [0], [0, 0, 1, 0], [], []>} : vector<8x32xf32>, vector<8x32xf32>, vector<8x8xf32> -> vector<8x8xf32>
    %cst_27 = arith.constant 0.176776692 : f32
    %98 = vector.broadcast %cst_27 : f32 to vector<8x8xf32>
    %99 = arith.mulf %97, %98 : vector<8x8xf32>
    %100 = arith.addf %99, %10 : vector<8x8xf32>
    %cst_28 = arith.constant dense<0xFF800000> : vector<8xf32>
    %101 = vector.multi_reduction <maximumf>, %100, %cst_28 [1] : vector<8x8xf32> to vector<8xf32>
    %102 = vector.shape_cast %101 : vector<8xf32> to vector<8x1xf32>
    %103 = vector.broadcast %102 : vector<8x1xf32> to vector<8x8xf32>
    %104 = arith.subf %100, %103 : vector<8x8xf32>
    %105 = math.exp %104 : vector<8x8xf32>
    %cst_29 = arith.constant dense<0.000000e+00> : vector<8xf32>
    %106 = vector.multi_reduction <add>, %105, %cst_29 [1] : vector<8x8xf32> to vector<8xf32>
    %107 = vector.shape_cast %106 : vector<8xf32> to vector<8x1xf32>
    %108 = vector.broadcast %107 : vector<8x1xf32> to vector<8x8xf32>
    %109 = arith.divf %105, %108 : vector<8x8xf32>
    %cst_30 = arith.constant dense<0.000000e+00> : vector<8x32xf32>
    %110 = tpu.matmul %109, %38, %cst_30 {dimension_numbers = #tpu.dot_dimension_numbers<[1], [0], [0], [1], [0, 0, 1, 1], [], []>} : vector<8x8xf32>, vector<8x32xf32>, vector<8x32xf32> -> vector<8x32xf32>
    %111 = vector.extract_strided_slice %12 {offsets = [0, 96], sizes = [8, 32], strides = [1, 1]} : vector<8x128xf32> to vector<8x32xf32>
    %112 = vector.extract_strided_slice %111 {offsets = [0, 0], sizes = [8, 16], strides = [1, 1]} : vector<8x32xf32> to vector<8x16xf32>
    %113 = vector.extract_strided_slice %111 {offsets = [0, 16], sizes = [8, 16], strides = [1, 1]} : vector<8x32xf32> to vector<8x16xf32>
    %114 = arith.mulf %112, %7 : vector<8x16xf32>
    %115 = arith.mulf %113, %8 : vector<8x16xf32>
    %116 = arith.subf %114, %115 : vector<8x16xf32>
    %117 = arith.mulf %113, %7 : vector<8x16xf32>
    %118 = arith.mulf %112, %8 : vector<8x16xf32>
    %119 = arith.addf %117, %118 : vector<8x16xf32>
    %120 = tpu.concatenate %116, %119 in 1 : vector<8x16xf32>, vector<8x16xf32> -> vector<8x32xf32>
    %cst_31 = arith.constant dense<0.000000e+00> : vector<8x8xf32>
    %121 = tpu.matmul %120, %36, %cst_31 {dimension_numbers = #tpu.dot_dimension_numbers<[1], [1], [0], [0], [0, 0, 1, 0], [], []>} : vector<8x32xf32>, vector<8x32xf32>, vector<8x8xf32> -> vector<8x8xf32>
    %cst_32 = arith.constant 0.176776692 : f32
    %122 = vector.broadcast %cst_32 : f32 to vector<8x8xf32>
    %123 = arith.mulf %121, %122 : vector<8x8xf32>
    %124 = arith.addf %123, %10 : vector<8x8xf32>
    %cst_33 = arith.constant dense<0xFF800000> : vector<8xf32>
    %125 = vector.multi_reduction <maximumf>, %124, %cst_33 [1] : vector<8x8xf32> to vector<8xf32>
    %126 = vector.shape_cast %125 : vector<8xf32> to vector<8x1xf32>
    %127 = vector.broadcast %126 : vector<8x1xf32> to vector<8x8xf32>
    %128 = arith.subf %124, %127 : vector<8x8xf32>
    %129 = math.exp %128 : vector<8x8xf32>
    %cst_34 = arith.constant dense<0.000000e+00> : vector<8xf32>
    %130 = vector.multi_reduction <add>, %129, %cst_34 [1] : vector<8x8xf32> to vector<8xf32>
    %131 = vector.shape_cast %130 : vector<8xf32> to vector<8x1xf32>
    %132 = vector.broadcast %131 : vector<8x1xf32> to vector<8x8xf32>
    %133 = arith.divf %129, %132 : vector<8x8xf32>
    %cst_35 = arith.constant dense<0.000000e+00> : vector<8x32xf32>
    %134 = tpu.matmul %133, %38, %cst_35 {dimension_numbers = #tpu.dot_dimension_numbers<[1], [0], [0], [1], [0, 0, 1, 1], [], []>} : vector<8x8xf32>, vector<8x32xf32>, vector<8x32xf32> -> vector<8x32xf32>
    %135 = tpu.concatenate %62, %86, %110, %134 in 1 : vector<8x32xf32>, vector<8x32xf32>, vector<8x32xf32>, vector<8x32xf32> -> vector<8x128xf32>
    %c0_36 = arith.constant 0 : index
    %c0_37 = arith.constant 0 : index
    %c0_38 = arith.constant 0 : index
    %136 = vector.load %arg7[%c0_36, %c0_37, %c0_38] : memref<1x8x128xf32, #tpu.memory_space<vmem>>, vector<1x8x128xf32>
    %137 = vector.shape_cast %136 : vector<1x8x128xf32> to vector<8x128xf32>
    %138 = vector.shape_cast %135 : vector<8x128xf32> to vector<1x8x128xf32>
    tpu.vector_store %arg7[%c0_36, %c0_37, %c0_38], %138 {strides = array<i32>} : memref<1x8x128xf32, #tpu.memory_space<vmem>>, vector<1x8x128xf32>,
    return
  }
  func.func @transform_0(%arg0: i32) -> (i32, i32, i32) {
    %c0_i32 = arith.constant 0 : i32
    %c0_i32_0 = arith.constant 0 : i32
    %c0_i32_1 = arith.constant 0 : i32
    return %arg0, %c0_i32, %c0_i32_0 : i32, i32, i32
  }
  func.func @transform_1(%arg0: i32) -> (i32, i32) {
    %c0_i32 = arith.constant 0 : i32
    %c0_i32_0 = arith.constant 0 : i32
    %c0_i32_1 = arith.constant 0 : i32
    return %c0_i32, %c0_i32_0 : i32, i32
  }
  func.func @transform_2(%arg0: i32) -> (i32, i32, i32) {
    %c0_i32 = arith.constant 0 : i32
    %c0_i32_0 = arith.constant 0 : i32
    %c0_i32_1 = arith.constant 0 : i32
    return %arg0, %c0_i32, %c0_i32_0 : i32, i32, i32
  }
  func.func @transform_3(%arg0: i32) -> (i32, i32, i32) {
    %c0_i32 = arith.constant 0 : i32
    %c0_i32_0 = arith.constant 0 : i32
    %c0_i32_1 = arith.constant 0 : i32
    return %arg0, %c0_i32, %c0_i32_0 : i32, i32, i32
  }
  func.func @transform_4(%arg0: i32) -> (i32, i32, i32) {
    %c0_i32 = arith.constant 0 : i32
    %c0_i32_0 = arith.constant 0 : i32
    %c0_i32_1 = arith.constant 0 : i32
    return %arg0, %c0_i32, %c0_i32_0 : i32, i32, i32
  }
  func.func @transform_5(%arg0: i32) -> (i32, i32, i32, i32) {
    %c0_i32 = arith.constant 0 : i32
    %c0_i32_0 = arith.constant 0 : i32
    %c0_i32_1 = arith.constant 0 : i32
    %c0_i32_2 = arith.constant 0 : i32
    return %arg0, %c0_i32, %c0_i32_0, %c0_i32_1 : i32, i32, i32, i32
  }
  func.func @transform_6(%arg0: i32) -> (i32, i32, i32) {
    %c0_i32 = arith.constant 0 : i32
    %c0_i32_0 = arith.constant 0 : i32
    %c0_i32_1 = arith.constant 0 : i32
    return %arg0, %c0_i32, %c0_i32_0 : i32, i32, i32
  }
}

</mosaic_0001>

<llo_original>
// kernel: fwd.14
$region0: #{fwd.14}
  #allocation0 [shape = 'u32[]', space=smem, size = 0x4, offset = 0x4, fixed_abs, tag = 'smem constant byte address 0x4 - core index']
  #allocation1 [shape = 'u32[144,128]{1,0:T(1,128)}', space=vmem, size = 0x12000, scoped, tag = 'internal scratch']
  %s0 = inlined_call_operand.vmem [shape: f32[2,8,128], index: 0, kind: input, shape index: {}]
  %s1 = inlined_call_operand.vmem [shape: f32[1,128], index: 1, kind: input, shape index: {}]
  %s2 = inlined_call_operand.vmem [shape: f32[2,8,128], index: 2, kind: output, shape index: {}]
  %s3 = sld [smem:[#allocation0]]
  $region41: #{fwd.14} parent=0
    _
  %s5 = ssub.s32 1, %s3
  %s6 = scalar_select 0, %s5, %s3
  loop: start=0, step=1, limit=4
  $region2: #{fwd.14} parent=0 // loop_pre_header
    _
  $region3: #{fwd.14} parent=0 // loop_header
    %s8 = sphi 0, %s12
    %p9 = scmp.ge.s32.totalorder %s8, 4
    %s18 = sphi 0, %s20
    %s21 = sphi 0, %s18
    %s22 = sphi 0, %s21
    %s38 = sphi 0, %s22
    %s42 = sphi 0, %s42
    %s44 = sphi 0, %s42
    %s45 = sphi 0, %s44
    %s59 = sphi 0, %s45
    %s65 = sphi 0, %s67
    %s68 = sphi 0, %s65
    %s69 = sphi 0, %s68
    %s85 = sphi 0, %s69
  $region4: #{fwd.14} parent=0 // loop_header_branch
    %11 = sbr.rel (%p9) target = $region8
  $region5: #{fwd.14} parent=0 // loop_body
    %s13 = ssub.s32 %s8, 1
    %s14 = ssub.s32 %s8, 2
    %s15 = sadd.s32 %s8, 1
    %s16 = ssub.s32 %s8, %s15
    %p17 = scmp.eq.s32.totalorder %s16, 0
    %s19 = sadd.s32 %s18, 1
    %s20 = scalar_select %p17, %s18, %s19
    %p23 = pneg %p17
    %p24 = scmp.eq.s32.totalorder %s8, 1
    %p25 = por %p23, %p24
    %p26 = scmp.ne.s32.totalorder %s18, %s21
    %p27 = scmp.eq.s32.totalorder %s8, 0
    %p28 = por %p26, %p27
    %p29 = scmp.ne.s32.totalorder %s18, %s21
    %p30 = scmp.eq.s32.totalorder %s13, 1
    %p31 = por %p29, %p30
    %p32 = scmp.ne.s32.totalorder %s21, %s22
    %p33 = scmp.eq.s32.totalorder %s13, 0
    %p34 = por %p32, %p33
    %p35 = scmp.ne.s32.totalorder %s21, %s22
    %p36 = scmp.eq.s32.totalorder %s14, 1
    %p37 = por %p35, %p36
    %p39 = scmp.ne.s32.totalorder %s22, %s38
    %p40 = scmp.eq.s32.totalorder %s14, 0
    %p41 = por %p39, %p40
    %s43 = sadd.s32 %s42, 1
    %p46 = scmp.eq.s32.totalorder %s8, 1
    %p47 = scmp.ne.s32.totalorder %s42, %s44
    %p48 = scmp.eq.s32.totalorder %s8, 0
    %p49 = por %p47, %p48
    %p50 = scmp.ne.s32.totalorder %s42, %s44
    %p51 = scmp.eq.s32.totalorder %s13, 1
    %p52 = por %p50, %p51
    %p53 = scmp.ne.s32.totalorder %s44, %s45
    %p54 = scmp.eq.s32.totalorder %s13, 0
    %p55 = por %p53, %p54
    %p56 = scmp.ne.s32.totalorder %s44, %s45
    %p57 = scmp.eq.s32.totalorder %s14, 1
    %p58 = por %p56, %p57
    %p60 = scmp.ne.s32.totalorder %s45, %s59
    %p61 = scmp.eq.s32.totalorder %s14, 0
    %p62 = por %p60, %p61
    %s63 = ssub.s32 %s8, %s15
    %p64 = scmp.eq.s32.totalorder %s63, 0
    %s66 = sadd.s32 %s65, 1
    %s67 = scalar_select %p64, %s65, %s66
    %p70 = pneg %p64
    %p71 = scmp.eq.s32.totalorder %s8, 1
    %p72 = por %p70, %p71
    %p73 = scmp.ne.s32.totalorder %s65, %s68
    %p74 = scmp.eq.s32.totalorder %s8, 0
    %p75 = por %p73, %p74
    %p76 = scmp.ne.s32.totalorder %s65, %s68
    %p77 = scmp.eq.s32.totalorder %s13, 1
    %p78 = por %p76, %p77
    %p79 = scmp.ne.s32.totalorder %s68, %s69
    %p80 = scmp.eq.s32.totalorder %s13, 0
    %p81 = por %p79, %p80
    %p82 = scmp.ne.s32.totalorder %s68, %s69
    %p83 = scmp.eq.s32.totalorder %s14, 1
    %p84 = por %p82, %p83
    %p86 = scmp.ne.s32.totalorder %s69, %s85
    %p87 = scmp.eq.s32.totalorder %s14, 0
    %p88 = por %p86, %p87
    %p89 = scmp.le.s32.totalorder 1, %s8
    %p90 = scmp.lt.s32.totalorder %s8, 3
    %p91 = pnand %p89, %p90
    %p92 = pneg %p91
    // Predicated region
    $region9: #{fwd.14} parent=5 // pred_check
      _
    $region10: #{fwd.14} parent=5 // pred_check_branch
      %94 = sbr.rel (%p91) target = $region12
    $region11: #{fwd.14} parent=5 // pred_region
      %s95 = ssub.s32 %s8, 1
      // Predicated region
      $region13: #{fwd.14} parent=11 // pred_check
        %p96 = pneg %p55
      $region14: #{fwd.14} parent=11 // pred_check_branch
        %98 = sbr.rel (%p96) target = $region16
      $region15: #{fwd.14} parent=11 // pred_region
        _
      $region16: #{fwd.14} parent=11 // pred_fallthru
        _
    $region12: #{fwd.14} parent=5 // pred_fallthru
      _
    %p99 = scmp.lt.s32.totalorder %s8, 2
    // Predicated region
    $region17: #{fwd.14} parent=5 // pred_check
      %p100 = pneg %p99
    $region18: #{fwd.14} parent=5 // pred_check_branch
      %102 = sbr.rel (%p100) target = $region20
    $region19: #{fwd.14} parent=5 // pred_region
      // Predicated region
      $region21: #{fwd.14} parent=19 // pred_check
        %p103 = pneg %p28
      $region22: #{fwd.14} parent=19 // pred_check_branch
        %105 = sbr.rel (%p103) target = $region24
      $region23: #{fwd.14} parent=19 // pred_region
        %p106 = scmp.lt.s32.totalorder %s8, 1
        %s107 = scalar_select %p106, %s8, 1
        %s108 = smul.addr %s107, 8
        %s109 = scalar_lea.vmem %s0, %s108
      $region24: #{fwd.14} parent=19 // pred_fallthru
        _
    $region20: #{fwd.14} parent=5 // pred_fallthru
      _
    %p110 = scmp.le.s32.totalorder 1, %s8
    %p111 = scmp.lt.s32.totalorder %s8, 3
    %p112 = pnand %p110, %p111
    %p113 = pneg %p112
    // Predicated region
    $region25: #{fwd.14} parent=5 // pred_check
      _
    $region26: #{fwd.14} parent=5 // pred_check_branch
      %115 = sbr.rel (%p112) target = $region28
    $region27: #{fwd.14} parent=5 // pred_region
      %s116 = ssub.s32 %s8, 1
      %p117 = scmp.lt.s32.totalorder %s13, 1
      %s118 = scalar_select %p117, %s13, 1
      %s119 = smul.addr %s118, 8
      %s120 = scalar_lea.vmem %s0, %s119
      %p121 = pneg %p34
      %p122 = pneg %p31
      %p123 = pneg %p55
      %p124 = pneg %p52
      %p125 = pneg %p81
      %p126 = pneg %p78
      %p127 = scmp.lt.s32.totalorder %s13, 1
      %s128 = scalar_select %p127, %s13, 1
      %s129 = smul.addr %s128, 8
      %s130 = scalar_lea.vmem %s2, %s129
      %p131 = scmp.lt.s32.totalorder %s13, 1
      %s132 = scalar_select %p131, %s13, 1
      %s133 = smul.addr %s132, 8
      %s134 = scalar_lea.vmem %s0, %s133
      %p135 = scmp.lt.s32.totalorder %s13, 1
      %s136 = scalar_select %p135, %s13, 1
      %s137 = smul.addr %s136, 8
      %s138 = scalar_lea.vmem %s2, %s137
      %v139 = vld [vmem:[%s134] sm:$0xff]
      %v140 = vld [vmem:[%s1] sm:$0x1]
      %v141 = vmul.f32 %v139, %v139
      %142 = vadd.xlane.f32.xlu0 %v141
      %v143 = vpop.xlane.xlu0 %142
      %v144 = vrcp.pop 128.0
      %v145 = vmul.f32 %v143, %v144
      %v146 = vmax.f32 %v145, 1e-06
      %v147 = vrsqrt.pop %v146
      %v148 = vmul.f32 %v139, %v147
      %v149 = vadd.f32 %v140, 1.0
      %v151 = vlaneseq
      %v152 = vshrl.u32 %v151, 7
      %v153 = vsub.s32 0, %v152
      %v154 = vrot.slane %v149, %v153
      %v156 = vmul.f32 %v148, %v154
      %v157 = vmax.f32 %v156, -3.4028235e+38
      %v158 = vmin.f32 %v157, 3.4028235e+38
      %vm159 = vcmp.ne.f32.partialorder %v158, %v158
      %v160 = vsel %vm159, 0.0, %v158
      %161 = vst [vmem:[%s138] sm:$0xff] %v160
      %p162 = scmp.lt.s32.totalorder %s13, 1
      %s163 = scalar_select %p162, %s13, 1
      %s164 = smul.addr %s163, 8
      %s165 = scalar_lea.vmem %s2, %s164
      // Predicated region
      $region29: #{fwd.14} parent=27 // pred_check
        %p166 = pneg %p78
      $region30: #{fwd.14} parent=27 // pred_check_branch
        %168 = sbr.rel (%p166) target = $region32
      $region31: #{fwd.14} parent=27 // pred_region
        _
      $region32: #{fwd.14} parent=27 // pred_fallthru
        _
    $region28: #{fwd.14} parent=5 // pred_fallthru
      _
    %p169 = scmp.le.s32.totalorder 2, %s8
    // Predicated region
    $region33: #{fwd.14} parent=5 // pred_check
      %p170 = pneg %p169
    $region34: #{fwd.14} parent=5 // pred_check_branch
      %172 = sbr.rel (%p170) target = $region36
    $region35: #{fwd.14} parent=5 // pred_region
      %s173 = ssub.s32 %s8, 2
      // Predicated region
      $region37: #{fwd.14} parent=35 // pred_check
        %p174 = pneg %p84
      $region38: #{fwd.14} parent=35 // pred_check_branch
        %176 = sbr.rel (%p174) target = $region40
      $region39: #{fwd.14} parent=35 // pred_region
        %p177 = scmp.lt.s32.totalorder %s14, 1
        %s178 = scalar_select %p177, %s14, 1
        %s179 = smul.addr %s178, 8
        %s180 = scalar_lea.vmem %s2, %s179
      $region40: #{fwd.14} parent=35 // pred_fallthru
        _
    $region36: #{fwd.14} parent=5 // pred_fallthru
      _
  $region6: #{fwd.14} parent=0 // loop_footer
    %s12 = sadd.s32 1, %s8
  $region7: #{fwd.14} parent=0 // loop_footer_branch
    %7 = sbr.rel target = $region3
  $region8: #{fwd.14} parent=0 // loop_exit
    _

// kernel: fwd.16
$region0: #{fwd.16}
  #allocation0 [shape = 'u32[]', space=smem, size = 0x4, offset = 0x4, fixed_abs, tag = 'smem constant byte address 0x4 - core index']
  #allocation1 [shape = 'u32[144,128]{1,0:T(1,128)}', space=vmem, size = 0x12000, scoped, tag = 'internal scratch']
  %s0 = inlined_call_operand.vmem [shape: f32[2,16,128], index: 0, kind: input, shape index: {}]
  %s1 = inlined_call_operand.vmem [shape: f32[128,64], index: 1, kind: input, shape index: {}]
  %s2 = inlined_call_operand.vmem [shape: f32[1,64], index: 2, kind: input, shape index: {}]
  %s3 = inlined_call_operand.vmem [shape: f32[2,16,64], index: 3, kind: output, shape index: {}]
  %s4 = sld [smem:[#allocation0]]
  $region45: #{fwd.16} parent=0
    _
  %s6 = ssub.s32 1, %s4
  %s7 = scalar_select 0, %s6, %s4
  loop: start=0, step=1, limit=4
  $region2: #{fwd.16} parent=0 // loop_pre_header
    _
  $region3: #{fwd.16} parent=0 // loop_header
    %s9 = sphi 0, %s13
    %p10 = scmp.ge.s32.totalorder %s9, 4
    %s19 = sphi 0, %s21
    %s22 = sphi 0, %s19
    %s23 = sphi 0, %s22
    %s39 = sphi 0, %s23
    %s43 = sphi 0, %s43
    %s45 = sphi 0, %s43
    %s46 = sphi 0, %s45
    %s60 = sphi 0, %s46
    %s64 = sphi 0, %s64
    %s66 = sphi 0, %s64
    %s67 = sphi 0, %s66
    %s81 = sphi 0, %s67
    %s87 = sphi 0, %s89
    %s90 = sphi 0, %s87
    %s91 = sphi 0, %s90
    %s107 = sphi 0, %s91
  $region4: #{fwd.16} parent=0 // loop_header_branch
    %12 = sbr.rel (%p10) target = $region8
  $region5: #{fwd.16} parent=0 // loop_body
    %s14 = ssub.s32 %s9, 1
    %s15 = ssub.s32 %s9, 2
    %s16 = sadd.s32 %s9, 1
    %s17 = ssub.s32 %s9, %s16
    %p18 = scmp.eq.s32.totalorder %s17, 0
    %s20 = sadd.s32 %s19, 1
    %s21 = scalar_select %p18, %s19, %s20
    %p24 = pneg %p18
    %p25 = scmp.eq.s32.totalorder %s9, 1
    %p26 = por %p24, %p25
    %p27 = scmp.ne.s32.totalorder %s19, %s22
    %p28 = scmp.eq.s32.totalorder %s9, 0
    %p29 = por %p27, %p28
    %p30 = scmp.ne.s32.totalorder %s19, %s22
    %p31 = scmp.eq.s32.totalorder %s14, 1
    %p32 = por %p30, %p31
    %p33 = scmp.ne.s32.totalorder %s22, %s23
    %p34 = scmp.eq.s32.totalorder %s14, 0
    %p35 = por %p33, %p34
    %p36 = scmp.ne.s32.totalorder %s22, %s23
    %p37 = scmp.eq.s32.totalorder %s15, 1
    %p38 = por %p36, %p37
    %p40 = scmp.ne.s32.totalorder %s23, %s39
    %p41 = scmp.eq.s32.totalorder %s15, 0
    %p42 = por %p40, %p41
    %s44 = sadd.s32 %s43, 1
    %p47 = scmp.eq.s32.totalorder %s9, 1
    %p48 = scmp.ne.s32.totalorder %s43, %s45
    %p49 = scmp.eq.s32.totalorder %s9, 0
    %p50 = por %p48, %p49
    %p51 = scmp.ne.s32.totalorder %s43, %s45
    %p52 = scmp.eq.s32.totalorder %s14, 1
    %p53 = por %p51, %p52
    %p54 = scmp.ne.s32.totalorder %s45, %s46
    %p55 = scmp.eq.s32.totalorder %s14, 0
    %p56 = por %p54, %p55
    %p57 = scmp.ne.s32.totalorder %s45, %s46
    %p58 = scmp.eq.s32.totalorder %s15, 1
    %p59 = por %p57, %p58
    %p61 = scmp.ne.s32.totalorder %s46, %s60
    %p62 = scmp.eq.s32.totalorder %s15, 0
    %p63 = por %p61, %p62
    %s65 = sadd.s32 %s64, 1
    %p68 = scmp.eq.s32.totalorder %s9, 1
    %p69 = scmp.ne.s32.totalorder %s64, %s66
    %p70 = scmp.eq.s32.totalorder %s9, 0
    %p71 = por %p69, %p70
    %p72 = scmp.ne.s32.totalorder %s64, %s66
    %p73 = scmp.eq.s32.totalorder %s14, 1
    %p74 = por %p72, %p73
    %p75 = scmp.ne.s32.totalorder %s66, %s67
    %p76 = scmp.eq.s32.totalorder %s14, 0
    %p77 = por %p75, %p76
    %p78 = scmp.ne.s32.totalorder %s66, %s67
    %p79 = scmp.eq.s32.totalorder %s15, 1
    %p80 = por %p78, %p79
    %p82 = scmp.ne.s32.totalorder %s67, %s81
    %p83 = scmp.eq.s32.totalorder %s15, 0
    %p84 = por %p82, %p83
    %s85 = ssub.s32 %s9, %s16
    %p86 = scmp.eq.s32.totalorder %s85, 0
    %s88 = sadd.s32 %s87, 1
    %s89 = scalar_select %p86, %s87, %s88
    %p92 = pneg %p86
    %p93 = scmp.eq.s32.totalorder %s9, 1
    %p94 = por %p92, %p93
    %p95 = scmp.ne.s32.totalorder %s87, %s90
    %p96 = scmp.eq.s32.totalorder %s9, 0
    %p97 = por %p95, %p96
    %p98 = scmp.ne.s32.totalorder %s87, %s90
    %p99 = scmp.eq.s32.totalorder %s14, 1
    %p100 = por %p98, %p99
    %p101 = scmp.ne.s32.totalorder %s90, %s91
    %p102 = scmp.eq.s32.totalorder %s14, 0
    %p103 = por %p101, %p102
    %p104 = scmp.ne.s32.totalorder %s90, %s91
    %p105 = scmp.eq.s32.totalorder %s15, 1
    %p106 = por %p104, %p105
    %p108 = scmp.ne.s32.totalorder %s91, %s107
    %p109 = scmp.eq.s32.totalorder %s15, 0
    %p110 = por %p108, %p109
    %p111 = scmp.le.s32.totalorder 1, %s9
    %p112 = scmp.lt.s32.totalorder %s9, 3
    %p113 = pnand %p111, %p112
    %p114 = pneg %p113
    // Predicated region
    $region9: #{fwd.16} parent=5 // pred_check
      _
    $region10: #{fwd.16} parent=5 // pred_check_branch
      %116 = sbr.rel (%p113) target = $region12
    $region11: #{fwd.16} parent=5 // pred_region
      %s117 = ssub.s32 %s9, 1
      // Predicated region
      $region13: #{fwd.16} parent=11 // pred_check
        %p118 = pneg %p56
      $region14: #{fwd.16} parent=11 // pred_check_branch
        %120 = sbr.rel (%p118) target = $region16
      $region15: #{fwd.16} parent=11 // pred_region
        _
      $region16: #{fwd.16} parent=11 // pred_fallthru
        _
      // Predicated region
      $region17: #{fwd.16} parent=11 // pred_check
        %p121 = pneg %p77
      $region18: #{fwd.16} parent=11 // pred_check_branch
        %123 = sbr.rel (%p121) target = $region20
      $region19: #{fwd.16} parent=11 // pred_region
        _
      $region20: #{fwd.16} parent=11 // pred_fallthru
        _
    $region12: #{fwd.16} parent=5 // pred_fallthru
      _
    %p124 = scmp.lt.s32.totalorder %s9, 2
    // Predicated region
    $region21: #{fwd.16} parent=5 // pred_check
      %p125 = pneg %p124
    $region22: #{fwd.16} parent=5 // pred_check_branch
      %127 = sbr.rel (%p125) target = $region24
    $region23: #{fwd.16} parent=5 // pred_region
      // Predicated region
      $region25: #{fwd.16} parent=23 // pred_check
        %p128 = pneg %p29
      $region26: #{fwd.16} parent=23 // pred_check_branch
        %130 = sbr.rel (%p128) target = $region28
      $region27: #{fwd.16} parent=23 // pred_region
        %p131 = scmp.lt.s32.totalorder %s9, 1
        %s132 = scalar_select %p131, %s9, 1
        %s133 = smul.addr %s132, 2
        %s134 = smul.addr %s133, 8
        %s135 = scalar_lea.vmem %s0, %s134
      $region28: #{fwd.16} parent=23 // pred_fallthru
        _
    $region24: #{fwd.16} parent=5 // pred_fallthru
      _
    %p136 = scmp.le.s32.totalorder 1, %s9
    %p137 = scmp.lt.s32.totalorder %s9, 3
    %p138 = pnand %p136, %p137
    %p139 = pneg %p138
    // Predicated region
    $region29: #{fwd.16} parent=5 // pred_check
      _
    $region30: #{fwd.16} parent=5 // pred_check_branch
      %141 = sbr.rel (%p138) target = $region32
    $region31: #{fwd.16} parent=5 // pred_region
      %s142 = ssub.s32 %s9, 1
      %p143 = scmp.lt.s32.totalorder %s14, 1
      %s144 = scalar_select %p143, %s14, 1
      %s145 = smul.addr %s144, 2
      %s146 = smul.addr %s145, 8
      %s147 = scalar_lea.vmem %s0, %s146
      %p148 = pneg %p35
      %p149 = pneg %p32
      %p150 = pneg %p56
      %p151 = pneg %p53
      %p152 = pneg %p77
      %p153 = pneg %p74
      %p154 = pneg %p103
      %p155 = pneg %p100
      %p156 = scmp.lt.s32.totalorder %s14, 1
      %s157 = scalar_select %p156, %s14, 1
      %s158 = smul.addr %s157, 2
      %s159 = smul.addr %s158, 8
      %s160 = scalar_lea.vmem %s3, %s159
      %p161 = scmp.lt.s32.totalorder %s14, 1
      %s162 = scalar_select %p161, %s14, 1
      %s163 = smul.addr %s162, 2
      %s164 = smul.addr %s163, 8
      %s165 = scalar_lea.vmem %s0, %s164
      %p166 = scmp.lt.s32.totalorder %s14, 1
      %s167 = scalar_select %p166, %s14, 1
      %s168 = smul.addr %s167, 2
      %s169 = smul.addr %s168, 8
      %s170 = scalar_lea.vmem %s3, %s169
      %v171 = vld [vmem:[%s165] sm:$0xff]
      %v172 = vld [vmem:[%s165 + $0x8] sm:$0xff]
      %v173 = vld [vmem:[%s1] sm:$0xff]
      %v174 = vld [vmem:[%s1 + $0x8] sm:$0xff]
      %v175 = vld [vmem:[%s1 + $0x10] sm:$0xff]
      %v176 = vld [vmem:[%s1 + $0x18] sm:$0xff]
      %v177 = vld [vmem:[%s1 + $0x20] sm:$0xff]
      %v178 = vld [vmem:[%s1 + $0x28] sm:$0xff]
      %v179 = vld [vmem:[%s1 + $0x30] sm:$0xff]
      %v180 = vld [vmem:[%s1 + $0x38] sm:$0xff]
      %v181 = vld [vmem:[%s1 + $0x40] sm:$0xff]
      %v182 = vld [vmem:[%s1 + $0x48] sm:$0xff]
      %v183 = vld [vmem:[%s1 + $0x50] sm:$0xff]
      %v184 = vld [vmem:[%s1 + $0x58] sm:$0xff]
      %v185 = vld [vmem:[%s1 + $0x60] sm:$0xff]
      %v186 = vld [vmem:[%s1 + $0x68] sm:$0xff]
      %v187 = vld [vmem:[%s1 + $0x70] sm:$0xff]
      %v188 = vld [vmem:[%s1 + $0x78] sm:$0xff]
      %v189 = vld [vmem:[%s2] sm:$0x1]
      %v191 = vlaneseq
      %v192 = vshrl.u32 %v191, 7
      %v193 = vsub.s32 0, %v192
      %v194 = vrot.slane %v189, %v193
      %196 = vmatprep.subr.mxu0 0.0
      %197 = vmatpush1.msra.mxu0 %v188
      %198 = vmatprep.subr.mxu0 0.0
      %199 = vmatpush1.msra.mxu0 %v187
      %200 = vmatprep.subr.mxu0 0.0
      %201 = vmatpush1.msra.mxu0 %v186
      %202 = vmatprep.subr.mxu0 0.0
      %203 = vmatpush1.msra.mxu0 %v185
      %204 = vmatprep.subr.mxu0 0.0
      %205 = vmatpush1.msra.mxu0 %v184
      %206 = vmatprep.subr.mxu0 0.0
      %207 = vmatpush1.msra.mxu0 %v183
      %208 = vmatprep.subr.mxu0 0.0
      %209 = vmatpush1.msra.mxu0 %v182
      %210 = vmatprep.subr.mxu0 0.0
      %211 = vmatpush1.msra.mxu0 %v181
      %212 = vmatprep.subr.mxu0 0.0
      %213 = vmatpush1.msra.mxu0 %v180
      %214 = vmatprep.subr.mxu0 0.0
      %215 = vmatpush1.msra.mxu0 %v179
      %216 = vmatprep.subr.mxu0 0.0
      %217 = vmatpush1.msra.mxu0 %v178
      %218 = vmatprep.subr.mxu0 0.0
      %219 = vmatpush1.msra.mxu0 %v177
      %220 = vmatprep.subr.mxu0 0.0
      %221 = vmatpush1.msra.mxu0 %v176
      %222 = vmatprep.subr.mxu0 0.0
      %223 = vmatpush1.msra.mxu0 %v175
      %224 = vmatprep.subr.mxu0 0.0
      %225 = vmatpush1.msra.mxu0 %v174
      %226 = vmatprep.subr.mxu0 0.0
      %227 = vmatpush1.msra.mxu0 %v173
      %228 = vmatprep.subr.mxu0 0.0
      %229 = vmatpush2.msra.mxu0 0.0
      %230 = vmatprep.subr.mxu0 0.0
      %231 = vmatpush2.msra.mxu0 0.0
      %232 = vmatprep.subr.mxu0 0.0
      %233 = vmatpush2.msra.mxu0 0.0
      %234 = vmatprep.subr.mxu0 0.0
      %235 = vmatpush2.msra.mxu0 0.0
      %236 = vmatprep.subr.mxu0 0.0
      %237 = vmatpush2.msra.mxu0 0.0
      %238 = vmatprep.subr.mxu0 0.0
      %239 = vmatpush2.msra.mxu0 0.0
      %240 = vmatprep.subr.mxu0 0.0
      %241 = vmatpush2.msra.mxu0 0.0
      %242 = vmatprep.subr.mxu0 0.0
      %243 = vmatpush2.msra.mxu0 0.0
      %244 = vmatprep.subr.mxu0 0.0
      %245 = vmatpush2.msra.mxu0 0.0
      %246 = vmatprep.subr.mxu0 0.0
      %247 = vmatpush2.msra.mxu0 0.0
      %248 = vmatprep.subr.mxu0 0.0
      %249 = vmatpush2.msra.mxu0 0.0
      %250 = vmatprep.subr.mxu0 0.0
      %251 = vmatpush2.msra.mxu0 0.0
      %252 = vmatprep.subr.mxu0 0.0
      %253 = vmatpush2.msra.mxu0 0.0
      %254 = vmatprep.subr.mxu0 0.0
      %255 = vmatpush2.msra.mxu0 0.0
      %256 = vmatprep.subr.mxu0 0.0
      %257 = vmatpush2.msra.mxu0 0.0
      %258 = vmatprep.subr.mxu0 0.0
      %259 = vmatpush2.msra.mxu0 0.0
      %260 = vmatprep.mubr.f32.mxu0 0.0
      %261 = vmatmul.mubr.f32.gmra.mxu0 %v171
      %v262 = vpop.f32.mrf.mxu0
      %v263 = vadd.f32 %v194, %v262
      %v264 = vpop.f32.mrf.mxu0
      %265 = vmatprep.mubr.f32.mxu0 0.0
      %266 = vmatmul.mubr.f32.gmra.mxu0 %v172
      %v267 = vpop.f32.mrf.mxu0
      %v268 = vadd.f32 %v194, %v267
      %v269 = vpop.f32.mrf.mxu0
      %270 = vdwg.mxu0
      %vm271 = vcmask 523264
      %272 = vst.msk [vmem:[%s170] sm:$0xff] %vm271, %v263
      %273 = vst.msk [vmem:[%s170 + $0x8] sm:$0xff] %vm271, %v268
      %p274 = scmp.lt.s32.totalorder %s14, 1
      %s275 = scalar_select %p274, %s14, 1
      %s276 = smul.addr %s275, 2
      %s277 = smul.addr %s276, 8
      %s278 = scalar_lea.vmem %s3, %s277
      // Predicated region
      $region33: #{fwd.16} parent=31 // pred_check
        %p279 = pneg %p100
      $region34: #{fwd.16} parent=31 // pred_check_branch
        %281 = sbr.rel (%p279) target = $region36
      $region35: #{fwd.16} parent=31 // pred_region
        _
      $region36: #{fwd.16} parent=31 // pred_fallthru
        _
    $region32: #{fwd.16} parent=5 // pred_fallthru
      _
    %p282 = scmp.le.s32.totalorder 2, %s9
    // Predicated region
    $region37: #{fwd.16} parent=5 // pred_check
      %p283 = pneg %p282
    $region38: #{fwd.16} parent=5 // pred_check_branch
      %285 = sbr.rel (%p283) target = $region40
    $region39: #{fwd.16} parent=5 // pred_region
      %s286 = ssub.s32 %s9, 2
      // Predicated region
      $region41: #{fwd.16} parent=39 // pred_check
        %p287 = pneg %p106
      $region42: #{fwd.16} parent=39 // pred_check_branch
        %289 = sbr.rel (%p287) target = $region44
      $region43: #{fwd.16} parent=39 // pred_region
        %p290 = scmp.lt.s32.totalorder %s15, 1
        %s291 = scalar_select %p290, %s15, 1
        %s292 = smul.addr %s291, 2
        %s293 = smul.addr %s292, 8
        %s294 = scalar_lea.vmem %s3, %s293
      $region44: #{fwd.16} parent=39 // pred_fallthru
        _
    $region40: #{fwd.16} parent=5 // pred_fallthru
      _
  $region6: #{fwd.16} parent=0 // loop_footer
    %s13 = sadd.s32 1, %s9
  $region7: #{fwd.16} parent=0 // loop_footer_branch
    %8 = sbr.rel target = $region3
  $region8: #{fwd.16} parent=0 // loop_exit
    _

// kernel: fwd.15
$region0: #{fwd.15}
  #allocation0 [shape = 'u32[]', space=smem, size = 0x4, offset = 0x4, fixed_abs, tag = 'smem constant byte address 0x4 - core index']
  #allocation1 [shape = 'u32[144,128]{1,0:T(1,128)}', space=vmem, size = 0x12000, scoped, tag = 'internal scratch']
  %s0 = inlined_call_operand.vmem [shape: f32[2,8,128], index: 0, kind: input, shape index: {}]
  %s1 = inlined_call_operand.vmem [shape: f32[128,128], index: 1, kind: input, shape index: {}]
  %s2 = inlined_call_operand.vmem [shape: f32[1,128], index: 2, kind: input, shape index: {}]
  %s3 = inlined_call_operand.vmem [shape: f32[2,8,128], index: 3, kind: output, shape index: {}]
  %s4 = sld [smem:[#allocation0]]
  $region45: #{fwd.15} parent=0
    _
  %s6 = ssub.s32 1, %s4
  %s7 = scalar_select 0, %s6, %s4
  loop: start=0, step=1, limit=4
  $region2: #{fwd.15} parent=0 // loop_pre_header
    _
  $region3: #{fwd.15} parent=0 // loop_header
    %s9 = sphi 0, %s13
    %p10 = scmp.ge.s32.totalorder %s9, 4
    %s19 = sphi 0, %s21
    %s22 = sphi 0, %s19
    %s23 = sphi 0, %s22
    %s39 = sphi 0, %s23
    %s43 = sphi 0, %s43
    %s45 = sphi 0, %s43
    %s46 = sphi 0, %s45
    %s60 = sphi 0, %s46
    %s64 = sphi 0, %s64
    %s66 = sphi 0, %s64
    %s67 = sphi 0, %s66
    %s81 = sphi 0, %s67
    %s87 = sphi 0, %s89
    %s90 = sphi 0, %s87
    %s91 = sphi 0, %s90
    %s107 = sphi 0, %s91
  $region4: #{fwd.15} parent=0 // loop_header_branch
    %12 = sbr.rel (%p10) target = $region8
  $region5: #{fwd.15} parent=0 // loop_body
    %s14 = ssub.s32 %s9, 1
    %s15 = ssub.s32 %s9, 2
    %s16 = sadd.s32 %s9, 1
    %s17 = ssub.s32 %s9, %s16
    %p18 = scmp.eq.s32.totalorder %s17, 0
    %s20 = sadd.s32 %s19, 1
    %s21 = scalar_select %p18, %s19, %s20
    %p24 = pneg %p18
    %p25 = scmp.eq.s32.totalorder %s9, 1
    %p26 = por %p24, %p25
    %p27 = scmp.ne.s32.totalorder %s19, %s22
    %p28 = scmp.eq.s32.totalorder %s9, 0
    %p29 = por %p27, %p28
    %p30 = scmp.ne.s32.totalorder %s19, %s22
    %p31 = scmp.eq.s32.totalorder %s14, 1
    %p32 = por %p30, %p31
    %p33 = scmp.ne.s32.totalorder %s22, %s23
    %p34 = scmp.eq.s32.totalorder %s14, 0
    %p35 = por %p33, %p34
    %p36 = scmp.ne.s32.totalorder %s22, %s23
    %p37 = scmp.eq.s32.totalorder %s15, 1
    %p38 = por %p36, %p37
    %p40 = scmp.ne.s32.totalorder %s23, %s39
    %p41 = scmp.eq.s32.totalorder %s15, 0
    %p42 = por %p40, %p41
    %s44 = sadd.s32 %s43, 1
    %p47 = scmp.eq.s32.totalorder %s9, 1
    %p48 = scmp.ne.s32.totalorder %s43, %s45
    %p49 = scmp.eq.s32.totalorder %s9, 0
    %p50 = por %p48, %p49
    %p51 = scmp.ne.s32.totalorder %s43, %s45
    %p52 = scmp.eq.s32.totalorder %s14, 1
    %p53 = por %p51, %p52
    %p54 = scmp.ne.s32.totalorder %s45, %s46
    %p55 = scmp.eq.s32.totalorder %s14, 0
    %p56 = por %p54, %p55
    %p57 = scmp.ne.s32.totalorder %s45, %s46
    %p58 = scmp.eq.s32.totalorder %s15, 1
    %p59 = por %p57, %p58
    %p61 = scmp.ne.s32.totalorder %s46, %s60
    %p62 = scmp.eq.s32.totalorder %s15, 0
    %p63 = por %p61, %p62
    %s65 = sadd.s32 %s64, 1
    %p68 = scmp.eq.s32.totalorder %s9, 1
    %p69 = scmp.ne.s32.totalorder %s64, %s66
    %p70 = scmp.eq.s32.totalorder %s9, 0
    %p71 = por %p69, %p70
    %p72 = scmp.ne.s32.totalorder %s64, %s66
    %p73 = scmp.eq.s32.totalorder %s14, 1
    %p74 = por %p72, %p73
    %p75 = scmp.ne.s32.totalorder %s66, %s67
    %p76 = scmp.eq.s32.totalorder %s14, 0
    %p77 = por %p75, %p76
    %p78 = scmp.ne.s32.totalorder %s66, %s67
    %p79 = scmp.eq.s32.totalorder %s15, 1
    %p80 = por %p78, %p79
    %p82 = scmp.ne.s32.totalorder %s67, %s81
    %p83 = scmp.eq.s32.totalorder %s15, 0
    %p84 = por %p82, %p83
    %s85 = ssub.s32 %s9, %s16
    %p86 = scmp.eq.s32.totalorder %s85, 0
    %s88 = sadd.s32 %s87, 1
    %s89 = scalar_select %p86, %s87, %s88
    %p92 = pneg %p86
    %p93 = scmp.eq.s32.totalorder %s9, 1
    %p94 = por %p92, %p93
    %p95 = scmp.ne.s32.totalorder %s87, %s90
    %p96 = scmp.eq.s32.totalorder %s9, 0
    %p97 = por %p95, %p96
    %p98 = scmp.ne.s32.totalorder %s87, %s90
    %p99 = scmp.eq.s32.totalorder %s14, 1
    %p100 = por %p98, %p99
    %p101 = scmp.ne.s32.totalorder %s90, %s91
    %p102 = scmp.eq.s32.totalorder %s14, 0
    %p103 = por %p101, %p102
    %p104 = scmp.ne.s32.totalorder %s90, %s91
    %p105 = scmp.eq.s32.totalorder %s15, 1
    %p106 = por %p104, %p105
    %p108 = scmp.ne.s32.totalorder %s91, %s107
    %p109 = scmp.eq.s32.totalorder %s15, 0
    %p110 = por %p108, %p109
    %p111 = scmp.le.s32.totalorder 1, %s9
    %p112 = scmp.lt.s32.totalorder %s9, 3
    %p113 = pnand %p111, %p112
    %p114 = pneg %p113
    // Predicated region
    $region9: #{fwd.15} parent=5 // pred_check
      _
    $region10: #{fwd.15} parent=5 // pred_check_branch
      %116 = sbr.rel (%p113) target = $region12
    $region11: #{fwd.15} parent=5 // pred_region
      %s117 = ssub.s32 %s9, 1
      // Predicated region
      $region13: #{fwd.15} parent=11 // pred_check
        %p118 = pneg %p56
      $region14: #{fwd.15} parent=11 // pred_check_branch
        %120 = sbr.rel (%p118) target = $region16
      $region15: #{fwd.15} parent=11 // pred_region
        _
      $region16: #{fwd.15} parent=11 // pred_fallthru
        _
      // Predicated region
      $region17: #{fwd.15} parent=11 // pred_check
        %p121 = pneg %p77
      $region18: #{fwd.15} parent=11 // pred_check_branch
        %123 = sbr.rel (%p121) target = $region20
      $region19: #{fwd.15} parent=11 // pred_region
        _
      $region20: #{fwd.15} parent=11 // pred_fallthru
        _
    $region12: #{fwd.15} parent=5 // pred_fallthru
      _
    %p124 = scmp.lt.s32.totalorder %s9, 2
    // Predicated region
    $region21: #{fwd.15} parent=5 // pred_check
      %p125 = pneg %p124
    $region22: #{fwd.15} parent=5 // pred_check_branch
      %127 = sbr.rel (%p125) target = $region24
    $region23: #{fwd.15} parent=5 // pred_region
      // Predicated region
      $region25: #{fwd.15} parent=23 // pred_check
        %p128 = pneg %p29
      $region26: #{fwd.15} parent=23 // pred_check_branch
        %130 = sbr.rel (%p128) target = $region28
      $region27: #{fwd.15} parent=23 // pred_region
        %p131 = scmp.lt.s32.totalorder %s9, 1
        %s132 = scalar_select %p131, %s9, 1
        %s133 = smul.addr %s132, 8
        %s134 = scalar_lea.vmem %s0, %s133
      $region28: #{fwd.15} parent=23 // pred_fallthru
        _
    $region24: #{fwd.15} parent=5 // pred_fallthru
      _
    %p135 = scmp.le.s32.totalorder 1, %s9
    %p136 = scmp.lt.s32.totalorder %s9, 3
    %p137 = pnand %p135, %p136
    %p138 = pneg %p137
    // Predicated region
    $region29: #{fwd.15} parent=5 // pred_check
      _
    $region30: #{fwd.15} parent=5 // pred_check_branch
      %140 = sbr.rel (%p137) target = $region32
    $region31: #{fwd.15} parent=5 // pred_region
      %s141 = ssub.s32 %s9, 1
      %p142 = scmp.lt.s32.totalorder %s14, 1
      %s143 = scalar_select %p142, %s14, 1
      %s144 = smul.addr %s143, 8
      %s145 = scalar_lea.vmem %s0, %s144
      %p146 = pneg %p35
      %p147 = pneg %p32
      %p148 = pneg %p56
      %p149 = pneg %p53
      %p150 = pneg %p77
      %p151 = pneg %p74
      %p152 = pneg %p103
      %p153 = pneg %p100
      %p154 = scmp.lt.s32.totalorder %s14, 1
      %s155 = scalar_select %p154, %s14, 1
      %s156 = smul.addr %s155, 8
      %s157 = scalar_lea.vmem %s3, %s156
      %p158 = scmp.lt.s32.totalorder %s14, 1
      %s159 = scalar_select %p158, %s14, 1
      %s160 = smul.addr %s159, 8
      %s161 = scalar_lea.vmem %s0, %s160
      %p162 = scmp.lt.s32.totalorder %s14, 1
      %s163 = scalar_select %p162, %s14, 1
      %s164 = smul.addr %s163, 8
      %s165 = scalar_lea.vmem %s3, %s164
      %v166 = vld [vmem:[%s161] sm:$0xff]
      %v167 = vld [vmem:[%s1] sm:$0xff]
      %v168 = vld [vmem:[%s1 + $0x8] sm:$0xff]
      %v169 = vld [vmem:[%s1 + $0x10] sm:$0xff]
      %v170 = vld [vmem:[%s1 + $0x18] sm:$0xff]
      %v171 = vld [vmem:[%s1 + $0x20] sm:$0xff]
      %v172 = vld [vmem:[%s1 + $0x28] sm:$0xff]
      %v173 = vld [vmem:[%s1 + $0x30] sm:$0xff]
      %v174 = vld [vmem:[%s1 + $0x38] sm:$0xff]
      %v175 = vld [vmem:[%s1 + $0x40] sm:$0xff]
      %v176 = vld [vmem:[%s1 + $0x48] sm:$0xff]
      %v177 = vld [vmem:[%s1 + $0x50] sm:$0xff]
      %v178 = vld [vmem:[%s1 + $0x58] sm:$0xff]
      %v179 = vld [vmem:[%s1 + $0x60] sm:$0xff]
      %v180 = vld [vmem:[%s1 + $0x68] sm:$0xff]
      %v181 = vld [vmem:[%s1 + $0x70] sm:$0xff]
      %v182 = vld [vmem:[%s1 + $0x78] sm:$0xff]
      %v183 = vld [vmem:[%s2] sm:$0x1]
      %v185 = vlaneseq
      %v186 = vshrl.u32 %v185, 7
      %v187 = vsub.s32 0, %v186
      %v188 = vrot.slane %v183, %v187
      %190 = vmatprep.subr.mxu0 0.0
      %191 = vmatpush1.msra.mxu0 %v182
      %192 = vmatprep.subr.mxu0 0.0
      %193 = vmatpush1.msra.mxu0 %v181
      %194 = vmatprep.subr.mxu0 0.0
      %195 = vmatpush1.msra.mxu0 %v180
      %196 = vmatprep.subr.mxu0 0.0
      %197 = vmatpush1.msra.mxu0 %v179
      %198 = vmatprep.subr.mxu0 0.0
      %199 = vmatpush1.msra.mxu0 %v178
      %200 = vmatprep.subr.mxu0 0.0
      %201 = vmatpush1.msra.mxu0 %v177
      %202 = vmatprep.subr.mxu0 0.0
      %203 = vmatpush1.msra.mxu0 %v176
      %204 = vmatprep.subr.mxu0 0.0
      %205 = vmatpush1.msra.mxu0 %v175
      %206 = vmatprep.subr.mxu0 0.0
      %207 = vmatpush1.msra.mxu0 %v174
      %208 = vmatprep.subr.mxu0 0.0
      %209 = vmatpush1.msra.mxu0 %v173
      %210 = vmatprep.subr.mxu0 0.0
      %211 = vmatpush1.msra.mxu0 %v172
      %212 = vmatprep.subr.mxu0 0.0
      %213 = vmatpush1.msra.mxu0 %v171
      %214 = vmatprep.subr.mxu0 0.0
      %215 = vmatpush1.msra.mxu0 %v170
      %216 = vmatprep.subr.mxu0 0.0
      %217 = vmatpush1.msra.mxu0 %v169
      %218 = vmatprep.subr.mxu0 0.0
      %219 = vmatpush1.msra.mxu0 %v168
      %220 = vmatprep.subr.mxu0 0.0
      %221 = vmatpush1.msra.mxu0 %v167
      %222 = vmatprep.subr.mxu0 0.0
      %223 = vmatpush2.msra.mxu0 0.0
      %224 = vmatprep.subr.mxu0 0.0
      %225 = vmatpush2.msra.mxu0 0.0
      %226 = vmatprep.subr.mxu0 0.0
      %227 = vmatpush2.msra.mxu0 0.0
      %228 = vmatprep.subr.mxu0 0.0
      %229 = vmatpush2.msra.mxu0 0.0
      %230 = vmatprep.subr.mxu0 0.0
      %231 = vmatpush2.msra.mxu0 0.0
      %232 = vmatprep.subr.mxu0 0.0
      %233 = vmatpush2.msra.mxu0 0.0
      %234 = vmatprep.subr.mxu0 0.0
      %235 = vmatpush2.msra.mxu0 0.0
      %236 = vmatprep.subr.mxu0 0.0
      %237 = vmatpush2.msra.mxu0 0.0
      %238 = vmatprep.subr.mxu0 0.0
      %239 = vmatpush2.msra.mxu0 0.0
      %240 = vmatprep.subr.mxu0 0.0
      %241 = vmatpush2.msra.mxu0 0.0
      %242 = vmatprep.subr.mxu0 0.0
      %243 = vmatpush2.msra.mxu0 0.0
      %244 = vmatprep.subr.mxu0 0.0
      %245 = vmatpush2.msra.mxu0 0.0
      %246 = vmatprep.subr.mxu0 0.0
      %247 = vmatpush2.msra.mxu0 0.0
      %248 = vmatprep.subr.mxu0 0.0
      %249 = vmatpush2.msra.mxu0 0.0
      %250 = vmatprep.subr.mxu0 0.0
      %251 = vmatpush2.msra.mxu0 0.0
      %252 = vmatprep.subr.mxu0 0.0
      %253 = vmatpush2.msra.mxu0 0.0
      %254 = vmatprep.mubr.f32.mxu0 0.0
      %255 = vmatmul.mubr.f32.gmra.mxu0 %v166
      %v256 = vpop.f32.mrf.mxu0
      %v257 = vadd.f32 %v188, %v256
      %v258 = vpop.f32.mrf.mxu0
      %259 = vdwg.mxu0
      %260 = vst [vmem:[%s165] sm:$0xff] %v257
      %p261 = scmp.lt.s32.totalorder %s14, 1
      %s262 = scalar_select %p261, %s14, 1
      %s263 = smul.addr %s262, 8
      %s264 = scalar_lea.vmem %s3, %s263
      // Predicated region
      $region33: #{fwd.15} parent=31 // pred_check
        %p265 = pneg %p100
      $region34: #{fwd.15} parent=31 // pred_check_branch
        %267 = sbr.rel (%p265) target = $region36
      $region35: #{fwd.15} parent=31 // pred_region
        _
      $region36: #{fwd.15} parent=31 // pred_fallthru
        _
    $region32: #{fwd.15} parent=5 // pred_fallthru
      _
    %p268 = scmp.le.s32.totalorder 2, %s9
    // Predicated region
    $region37: #{fwd.15} parent=5 // pred_check
      %p269 = pneg %p268
    $region38: #{fwd.15} parent=5 // pred_check_branch
      %271 = sbr.rel (%p269) target = $region40
    $region39: #{fwd.15} parent=5 // pred_region
      %s272 = ssub.s32 %s9, 2
      // Predicated region
      $region41: #{fwd.15} parent=39 // pred_check
        %p273 = pneg %p106
      $region42: #{fwd.15} parent=39 // pred_check_branch
        %275 = sbr.rel (%p273) target = $region44
      $region43: #{fwd.15} parent=39 // pred_region
        %p276 = scmp.lt.s32.totalorder %s15, 1
        %s277 = scalar_select %p276, %s15, 1
        %s278 = smul.addr %s277, 8
        %s279 = scalar_lea.vmem %s3, %s278
      $region44: #{fwd.15} parent=39 // pred_fallthru
        _
    $region40: #{fwd.15} parent=5 // pred_fallthru
      _
  $region6: #{fwd.15} parent=0 // loop_footer
    %s13 = sadd.s32 1, %s9
  $region7: #{fwd.15} parent=0 // loop_footer_branch
    %8 = sbr.rel target = $region3
  $region8: #{fwd.15} parent=0 // loop_exit
    _

// kernel: fwd.18
$region0: #{fwd.18}
  #allocation0 [shape = 'u32[]', space=smem, size = 0x4, offset = 0x4, fixed_abs, tag = 'smem constant byte address 0x4 - core index']
  #allocation1 [shape = 'u32[144,128]{1,0:T(1,128)}', space=vmem, size = 0x12000, scoped, tag = 'internal scratch']
  %s0 = inlined_call_operand.vmem [shape: f32[2,8,128], index: 0, kind: input, shape index: {}]
  %s1 = inlined_call_operand.vmem [shape: f32[2,16,64], index: 1, kind: input, shape index: {}]
  %s2 = inlined_call_operand.vmem [shape: f32[2,16,64], index: 2, kind: input, shape index: {}]
  %s3 = inlined_call_operand.vmem [shape: f32[2,8,128], index: 3, kind: output, shape index: {}]
  %s4 = sld [smem:[#allocation0]]
  $region45: #{fwd.18} parent=0
    _
  %s6 = ssub.s32 1, %s4
  %s7 = scalar_select 0, %s6, %s4
  loop: start=0, step=1, limit=4
  $region2: #{fwd.18} parent=0 // loop_pre_header
    _
  $region3: #{fwd.18} parent=0 // loop_header
    %s9 = sphi 0, %s13
    %p10 = scmp.ge.s32.totalorder %s9, 4
    %s19 = sphi 0, %s21
    %s22 = sphi 0, %s19
    %s23 = sphi 0, %s22
    %s39 = sphi 0, %s23
    %s45 = sphi 0, %s47
    %s48 = sphi 0, %s45
    %s49 = sphi 0, %s48
    %s65 = sphi 0, %s49
    %s71 = sphi 0, %s73
    %s74 = sphi 0, %s71
    %s75 = sphi 0, %s74
    %s91 = sphi 0, %s75
    %s97 = sphi 0, %s99
    %s100 = sphi 0, %s97
    %s101 = sphi 0, %s100
    %s117 = sphi 0, %s101
  $region4: #{fwd.18} parent=0 // loop_header_branch
    %12 = sbr.rel (%p10) target = $region8
  $region5: #{fwd.18} parent=0 // loop_body
    %s14 = ssub.s32 %s9, 1
    %s15 = ssub.s32 %s9, 2
    %s16 = sadd.s32 %s9, 1
    %s17 = ssub.s32 %s9, %s16
    %p18 = scmp.eq.s32.totalorder %s17, 0
    %s20 = sadd.s32 %s19, 1
    %s21 = scalar_select %p18, %s19, %s20
    %p24 = pneg %p18
    %p25 = scmp.eq.s32.totalorder %s9, 1
    %p26 = por %p24, %p25
    %p27 = scmp.ne.s32.totalorder %s19, %s22
    %p28 = scmp.eq.s32.totalorder %s9, 0
    %p29 = por %p27, %p28
    %p30 = scmp.ne.s32.totalorder %s19, %s22
    %p31 = scmp.eq.s32.totalorder %s14, 1
    %p32 = por %p30, %p31
    %p33 = scmp.ne.s32.totalorder %s22, %s23
    %p34 = scmp.eq.s32.totalorder %s14, 0
    %p35 = por %p33, %p34
    %p36 = scmp.ne.s32.totalorder %s22, %s23
    %p37 = scmp.eq.s32.totalorder %s15, 1
    %p38 = por %p36, %p37
    %p40 = scmp.ne.s32.totalorder %s23, %s39
    %p41 = scmp.eq.s32.totalorder %s15, 0
    %p42 = por %p40, %p41
    %s43 = ssub.s32 %s9, %s16
    %p44 = scmp.eq.s32.totalorder %s43, 0
    %s46 = sadd.s32 %s45, 1
    %s47 = scalar_select %p44, %s45, %s46
    %p50 = pneg %p44
    %p51 = scmp.eq.s32.totalorder %s9, 1
    %p52 = por %p50, %p51
    %p53 = scmp.ne.s32.totalorder %s45, %s48
    %p54 = scmp.eq.s32.totalorder %s9, 0
    %p55 = por %p53, %p54
    %p56 = scmp.ne.s32.totalorder %s45, %s48
    %p57 = scmp.eq.s32.totalorder %s14, 1
    %p58 = por %p56, %p57
    %p59 = scmp.ne.s32.totalorder %s48, %s49
    %p60 = scmp.eq.s32.totalorder %s14, 0
    %p61 = por %p59, %p60
    %p62 = scmp.ne.s32.totalorder %s48, %s49
    %p63 = scmp.eq.s32.totalorder %s15, 1
    %p64 = por %p62, %p63
    %p66 = scmp.ne.s32.totalorder %s49, %s65
    %p67 = scmp.eq.s32.totalorder %s15, 0
    %p68 = por %p66, %p67
    %s69 = ssub.s32 %s9, %s16
    %p70 = scmp.eq.s32.totalorder %s69, 0
    %s72 = sadd.s32 %s71, 1
    %s73 = scalar_select %p70, %s71, %s72
    %p76 = pneg %p70
    %p77 = scmp.eq.s32.totalorder %s9, 1
    %p78 = por %p76, %p77
    %p79 = scmp.ne.s32.totalorder %s71, %s74
    %p80 = scmp.eq.s32.totalorder %s9, 0
    %p81 = por %p79, %p80
    %p82 = scmp.ne.s32.totalorder %s71, %s74
    %p83 = scmp.eq.s32.totalorder %s14, 1
    %p84 = por %p82, %p83
    %p85 = scmp.ne.s32.totalorder %s74, %s75
    %p86 = scmp.eq.s32.totalorder %s14, 0
    %p87 = por %p85, %p86
    %p88 = scmp.ne.s32.totalorder %s74, %s75
    %p89 = scmp.eq.s32.totalorder %s15, 1
    %p90 = por %p88, %p89
    %p92 = scmp.ne.s32.totalorder %s75, %s91
    %p93 = scmp.eq.s32.totalorder %s15, 0
    %p94 = por %p92, %p93
    %s95 = ssub.s32 %s9, %s16
    %p96 = scmp.eq.s32.totalorder %s95, 0
    %s98 = sadd.s32 %s97, 1
    %s99 = scalar_select %p96, %s97, %s98
    %p102 = pneg %p96
    %p103 = scmp.eq.s32.totalorder %s9, 1
    %p104 = por %p102, %p103
    %p105 = scmp.ne.s32.totalorder %s97, %s100
    %p106 = scmp.eq.s32.totalorder %s9, 0
    %p107 = por %p105, %p106
    %p108 = scmp.ne.s32.totalorder %s97, %s100
    %p109 = scmp.eq.s32.totalorder %s14, 1
    %p110 = por %p108, %p109
    %p111 = scmp.ne.s32.totalorder %s100, %s101
    %p112 = scmp.eq.s32.totalorder %s14, 0
    %p113 = por %p111, %p112
    %p114 = scmp.ne.s32.totalorder %s100, %s101
    %p115 = scmp.eq.s32.totalorder %s15, 1
    %p116 = por %p114, %p115
    %p118 = scmp.ne.s32.totalorder %s101, %s117
    %p119 = scmp.eq.s32.totalorder %s15, 0
    %p120 = por %p118, %p119
    %p121 = scmp.le.s32.totalorder 1, %s9
    %p122 = scmp.lt.s32.totalorder %s9, 3
    %p123 = pnand %p121, %p122
    %p124 = pneg %p123
    // Predicated region
    $region9: #{fwd.18} parent=5 // pred_check
      _
    $region10: #{fwd.18} parent=5 // pred_check_branch
      %126 = sbr.rel (%p123) target = $region12
    $region11: #{fwd.18} parent=5 // pred_region
      %s127 = ssub.s32 %s9, 1
    $region12: #{fwd.18} parent=5 // pred_fallthru
      _
    %p128 = scmp.lt.s32.totalorder %s9, 2
    // Predicated region
    $region13: #{fwd.18} parent=5 // pred_check
      %p129 = pneg %p128
    $region14: #{fwd.18} parent=5 // pred_check_branch
      %131 = sbr.rel (%p129) target = $region16
    $region15: #{fwd.18} parent=5 // pred_region
      // Predicated region
      $region17: #{fwd.18} parent=15 // pred_check
        %p132 = pneg %p29
      $region18: #{fwd.18} parent=15 // pred_check_branch
        %134 = sbr.rel (%p132) target = $region20
      $region19: #{fwd.18} parent=15 // pred_region
        %p135 = scmp.lt.s32.totalorder %s9, 1
        %s136 = scalar_select %p135, %s9, 1
        %s137 = smul.addr %s136, 8
        %s138 = scalar_lea.vmem %s0, %s137
      $region20: #{fwd.18} parent=15 // pred_fallthru
        _
      // Predicated region
      $region21: #{fwd.18} parent=15 // pred_check
        %p139 = pneg %p55
      $region22: #{fwd.18} parent=15 // pred_check_branch
        %141 = sbr.rel (%p139) target = $region24
      $region23: #{fwd.18} parent=15 // pred_region
        %p142 = scmp.lt.s32.totalorder %s9, 1
        %s143 = scalar_select %p142, %s9, 1
        %s144 = smul.addr %s143, 2
        %s145 = smul.addr %s144, 8
        %s146 = scalar_lea.vmem %s1, %s145
      $region24: #{fwd.18} parent=15 // pred_fallthru
        _
      // Predicated region
      $region25: #{fwd.18} parent=15 // pred_check
        %p147 = pneg %p81
      $region26: #{fwd.18} parent=15 // pred_check_branch
        %149 = sbr.rel (%p147) target = $region28
      $region27: #{fwd.18} parent=15 // pred_region
        %p150 = scmp.lt.s32.totalorder %s9, 1
        %s151 = scalar_select %p150, %s9, 1
        %s152 = smul.addr %s151, 2
        %s153 = smul.addr %s152, 8
        %s154 = scalar_lea.vmem %s2, %s153
      $region28: #{fwd.18} parent=15 // pred_fallthru
        _
    $region16: #{fwd.18} parent=5 // pred_fallthru
      _
    %p155 = scmp.le.s32.totalorder 1, %s9
    %p156 = scmp.lt.s32.totalorder %s9, 3
    %p157 = pnand %p155, %p156
    %p158 = pneg %p157
    // Predicated region
    $region29: #{fwd.18} parent=5 // pred_check
      _
    $region30: #{fwd.18} parent=5 // pred_check_branch
      %160 = sbr.rel (%p157) target = $region32
    $region31: #{fwd.18} parent=5 // pred_region
      %s161 = ssub.s32 %s9, 1
      %p162 = scmp.lt.s32.totalorder %s14, 1
      %s163 = scalar_select %p162, %s14, 1
      %s164 = smul.addr %s163, 8
      %s165 = scalar_lea.vmem %s0, %s164
      %p166 = pneg %p35
      %p167 = pneg %p32
      %p168 = scmp.lt.s32.totalorder %s14, 1
      %s169 = scalar_select %p168, %s14, 1
      %s170 = smul.addr %s169, 2
      %s171 = smul.addr %s170, 8
      %s172 = scalar_lea.vmem %s1, %s171
      %p173 = pneg %p61
      %p174 = pneg %p58
      %p175 = scmp.lt.s32.totalorder %s14, 1
      %s176 = scalar_select %p175, %s14, 1
      %s177 = smul.addr %s176, 2
      %s178 = smul.addr %s177, 8
      %s179 = scalar_lea.vmem %s2, %s178
      %p180 = pneg %p87
      %p181 = pneg %p84
      %p182 = pneg %p113
      %p183 = pneg %p110
      %p184 = scmp.lt.s32.totalorder %s14, 1
      %s185 = scalar_select %p184, %s14, 1
      %s186 = smul.addr %s185, 8
      %s187 = scalar_lea.vmem %s3, %s186
      %p188 = scmp.lt.s32.totalorder %s14, 1
      %s189 = scalar_select %p188, %s14, 1
      %s190 = smul.addr %s189, 8
      %s191 = scalar_lea.vmem %s0, %s190
      %p192 = scmp.lt.s32.totalorder %s14, 1
      %s193 = scalar_select %p192, %s14, 1
      %s194 = smul.addr %s193, 2
      %s195 = smul.addr %s194, 8
      %s196 = scalar_lea.vmem %s1, %s195
      %p197 = scmp.lt.s32.totalorder %s14, 1
      %s198 = scalar_select %p197, %s14, 1
      %s199 = smul.addr %s198, 2
      %s200 = smul.addr %s199, 8
      %s201 = scalar_lea.vmem %s2, %s200
      %p202 = scmp.lt.s32.totalorder %s14, 1
      %s203 = scalar_select %p202, %s14, 1
      %s204 = smul.addr %s203, 8
      %s205 = scalar_lea.vmem %s3, %s204
      %v206 = vld [vmem:[%s191] sm:$0xff]
      %v207 = vld [vmem:[%s196] sm:$0xff]
      %v208 = vld [vmem:[%s196 + $0x8] sm:$0xff]
      %v209 = vld [vmem:[%s201] sm:$0xff]
      %v210 = vld [vmem:[%s201 + $0x8] sm:$0xff]
      %vm211 = vcmask 261120
      %v213 = vsel %vm211, %v206, 0
      %v216 = vsel %vm211, %v207, 0
      %v219 = vsel %vm211, %v208, 0
      %221 = vmatprep.subr.mxu0 0.0
      %222 = vmatpush1.xpose.msra.mxu0 0.0
      %223 = vmatprep.subr.mxu0 0.0
      %224 = vmatpush1.xpose.msra.mxu0 0.0
      %225 = vmatprep.subr.mxu0 0.0
      %226 = vmatpush1.xpose.msra.mxu0 0.0
      %227 = vmatprep.subr.mxu0 0.0
      %228 = vmatpush1.xpose.msra.mxu0 0.0
      %229 = vmatprep.subr.mxu0 0.0
      %230 = vmatpush1.xpose.msra.mxu0 0.0
      %231 = vmatprep.subr.mxu0 0.0
      %232 = vmatpush1.xpose.msra.mxu0 0.0
      %233 = vmatprep.subr.mxu0 0.0
      %234 = vmatpush1.xpose.msra.mxu0 0.0
      %235 = vmatprep.subr.mxu0 0.0
      %236 = vmatpush1.xpose.msra.mxu0 0.0
      %237 = vmatprep.subr.mxu0 0.0
      %238 = vmatpush1.xpose.msra.mxu0 0.0
      %239 = vmatprep.subr.mxu0 0.0
      %240 = vmatpush1.xpose.msra.mxu0 0.0
      %241 = vmatprep.subr.mxu0 0.0
      %242 = vmatpush1.xpose.msra.mxu0 0.0
      %243 = vmatprep.subr.mxu0 0.0
      %244 = vmatpush1.xpose.msra.mxu0 0.0
      %245 = vmatprep.subr.mxu0 0.0
      %246 = vmatpush1.xpose.msra.mxu0 0.0
      %247 = vmatprep.subr.mxu0 0.0
      %248 = vmatpush1.xpose.msra.mxu0 0.0
      %249 = vmatprep.subr.mxu0 0.0
      %250 = vmatpush1.xpose.msra.mxu0 %v219
      %251 = vmatprep.subr.mxu0 0.0
      %252 = vmatpush1.xpose.msra.mxu0 %v216
      %253 = vmatprep.subr.mxu0 0.0
      %254 = vmatpush2.xpose.msra.mxu0 0.0
      %255 = vmatprep.subr.mxu0 0.0
      %256 = vmatpush2.xpose.msra.mxu0 0.0
      %257 = vmatprep.subr.mxu0 0.0
      %258 = vmatpush2.xpose.msra.mxu0 0.0
      %259 = vmatprep.subr.mxu0 0.0
      %260 = vmatpush2.xpose.msra.mxu0 0.0
      %261 = vmatprep.subr.mxu0 0.0
      %262 = vmatpush2.xpose.msra.mxu0 0.0
      %263 = vmatprep.subr.mxu0 0.0
      %264 = vmatpush2.xpose.msra.mxu0 0.0
      %265 = vmatprep.subr.mxu0 0.0
      %266 = vmatpush2.xpose.msra.mxu0 0.0
      %267 = vmatprep.subr.mxu0 0.0
      %268 = vmatpush2.xpose.msra.mxu0 0.0
      %269 = vmatprep.subr.mxu0 0.0
      %270 = vmatpush2.xpose.msra.mxu0 0.0
      %271 = vmatprep.subr.mxu0 0.0
      %272 = vmatpush2.xpose.msra.mxu0 0.0
      %273 = vmatprep.subr.mxu0 0.0
      %274 = vmatpush2.xpose.msra.mxu0 0.0
      %275 = vmatprep.subr.mxu0 0.0
      %276 = vmatpush2.xpose.msra.mxu0 0.0
      %277 = vmatprep.subr.mxu0 0.0
      %278 = vmatpush2.xpose.msra.mxu0 0.0
      %279 = vmatprep.subr.mxu0 0.0
      %280 = vmatpush2.xpose.msra.mxu0 0.0
      %281 = vmatprep.subr.mxu0 0.0
      %282 = vmatpush2.xpose.msra.mxu0 0.0
      %283 = vmatprep.subr.mxu0 0.0
      %284 = vmatpush2.xpose.msra.mxu0 0.0
      %285 = vmatprep.mubr.f32.mxu0 0.0
      %286 = vmatmul.mubr.f32.gmra.mxu0 %v213
      %v287 = vpop.f32.mrf.mxu0
      %v288 = vadd.f32 0.0, %v287
      %v289 = vpop.f32.mrf.mxu0
      %290 = vdwg.mxu0
      %v291 = vmul.f32 %v288, 0.17677669
      %vm292 = vcmask 130048
      %v293 = vsel %vm292, %v291, -inf
      %294 = vmax.xlane.f32.xlu0 %v293
      %v295 = vpop.xlane.xlu0 %294
      %v296 = vsub.f32 %v291, %v295
      %v297 = vmul.f32 %v296, 1.442695
      %v298 = vpow.pop %v297
      %v299 = vsel %vm292, %v298, 0.0
      %300 = vadd.xlane.f32.xlu0 %v299
      %v301 = vpop.xlane.xlu0 %300
      %v302 = vrcp.pop %v301
      %v303 = vmul.f32 %v298, %v302
      %v305 = vsel %vm292, %v303, 0
      %307 = vmatprep.subr.mxu0 0.0
      %308 = vmatpush1.msra.mxu0 0.0
      %309 = vmatprep.subr.mxu0 0.0
      %310 = vmatpush1.msra.mxu0 0.0
      %311 = vmatprep.subr.mxu0 0.0
      %312 = vmatpush1.msra.mxu0 0.0
      %313 = vmatprep.subr.mxu0 0.0
      %314 = vmatpush1.msra.mxu0 0.0
      %315 = vmatprep.subr.mxu0 0.0
      %316 = vmatpush1.msra.mxu0 0.0
      %317 = vmatprep.subr.mxu0 0.0
      %318 = vmatpush1.msra.mxu0 0.0
      %319 = vmatprep.subr.mxu0 0.0
      %320 = vmatpush1.msra.mxu0 0.0
      %321 = vmatprep.subr.mxu0 0.0
      %322 = vmatpush1.msra.mxu0 0.0
      %323 = vmatprep.subr.mxu0 0.0
      %324 = vmatpush1.msra.mxu0 0.0
      %325 = vmatprep.subr.mxu0 0.0
      %326 = vmatpush1.msra.mxu0 0.0
      %327 = vmatprep.subr.mxu0 0.0
      %328 = vmatpush1.msra.mxu0 0.0
      %329 = vmatprep.subr.mxu0 0.0
      %330 = vmatpush1.msra.mxu0 0.0
      %331 = vmatprep.subr.mxu0 0.0
      %332 = vmatpush1.msra.mxu0 0.0
      %333 = vmatprep.subr.mxu0 0.0
      %334 = vmatpush1.msra.mxu0 0.0
      %335 = vmatprep.subr.mxu0 0.0
      %336 = vmatpush1.msra.mxu0 %v210
      %337 = vmatprep.subr.mxu0 0.0
      %338 = vmatpush1.msra.mxu0 %v209
      %339 = vmatprep.subr.mxu0 0.0
      %340 = vmatpush2.msra.mxu0 0.0
      %341 = vmatprep.subr.mxu0 0.0
      %342 = vmatpush2.msra.mxu0 0.0
      %343 = vmatprep.subr.mxu0 0.0
      %344 = vmatpush2.msra.mxu0 0.0
      %345 = vmatprep.subr.mxu0 0.0
      %346 = vmatpush2.msra.mxu0 0.0
      %347 = vmatprep.subr.mxu0 0.0
      %348 = vmatpush2.msra.mxu0 0.0
      %349 = vmatprep.subr.mxu0 0.0
      %350 = vmatpush2.msra.mxu0 0.0
      %351 = vmatprep.subr.mxu0 0.0
      %352 = vmatpush2.msra.mxu0 0.0
      %353 = vmatprep.subr.mxu0 0.0
      %354 = vmatpush2.msra.mxu0 0.0
      %355 = vmatprep.subr.mxu0 0.0
      %356 = vmatpush2.msra.mxu0 0.0
      %357 = vmatprep.subr.mxu0 0.0
      %358 = vmatpush2.msra.mxu0 0.0
      %359 = vmatprep.subr.mxu0 0.0
      %360 = vmatpush2.msra.mxu0 0.0
      %361 = vmatprep.subr.mxu0 0.0
      %362 = vmatpush2.msra.mxu0 0.0
      %363 = vmatprep.subr.mxu0 0.0
      %364 = vmatpush2.msra.mxu0 0.0
      %365 = vmatprep.subr.mxu0 0.0
      %366 = vmatpush2.msra.mxu0 0.0
      %367 = vmatprep.subr.mxu0 0.0
      %368 = vmatpush2.msra.mxu0 0.0
      %369 = vmatprep.subr.mxu0 0.0
      %370 = vmatpush2.msra.mxu0 0.0
      %371 = vmatprep.mubr.f32.mxu0 0.0
      %372 = vmatmul.mubr.f32.gmra.mxu0 %v305
      %v373 = vpop.f32.mrf.mxu0
      %v374 = vadd.f32 0.0, %v373
      %v375 = vpop.f32.mrf.mxu0
      %376 = vdwg.mxu0
      %377 = vrot.lane.b32.xlu0 %v206, 96
      %v378 = vpop.permute.xlu0 %377
      %v379 = vsel %vm211, %v378, 0
      %381 = vmatprep.subr.mxu0 0.0
      %382 = vmatpush1.xpose.msra.mxu0 0.0
      %383 = vmatprep.subr.mxu0 0.0
      %384 = vmatpush1.xpose.msra.mxu0 0.0
      %385 = vmatprep.subr.mxu0 0.0
      %386 = vmatpush1.xpose.msra.mxu0 0.0
      %387 = vmatprep.subr.mxu0 0.0
      %388 = vmatpush1.xpose.msra.mxu0 0.0
      %389 = vmatprep.subr.mxu0 0.0
      %390 = vmatpush1.xpose.msra.mxu0 0.0
      %391 = vmatprep.subr.mxu0 0.0
      %392 = vmatpush1.xpose.msra.mxu0 0.0
      %393 = vmatprep.subr.mxu0 0.0
      %394 = vmatpush1.xpose.msra.mxu0 0.0
      %395 = vmatprep.subr.mxu0 0.0
      %396 = vmatpush1.xpose.msra.mxu0 0.0
      %397 = vmatprep.subr.mxu0 0.0
      %398 = vmatpush1.xpose.msra.mxu0 0.0
      %399 = vmatprep.subr.mxu0 0.0
      %400 = vmatpush1.xpose.msra.mxu0 0.0
      %401 = vmatprep.subr.mxu0 0.0
      %402 = vmatpush1.xpose.msra.mxu0 0.0
      %403 = vmatprep.subr.mxu0 0.0
      %404 = vmatpush1.xpose.msra.mxu0 0.0
      %405 = vmatprep.subr.mxu0 0.0
      %406 = vmatpush1.xpose.msra.mxu0 0.0
      %407 = vmatprep.subr.mxu0 0.0
      %408 = vmatpush1.xpose.msra.mxu0 0.0
      %409 = vmatprep.subr.mxu0 0.0
      %410 = vmatpush1.xpose.msra.mxu0 %v219
      %411 = vmatprep.subr.mxu0 0.0
      %412 = vmatpush1.xpose.msra.mxu0 %v216
      %413 = vmatprep.subr.mxu0 0.0
      %414 = vmatpush2.xpose.msra.mxu0 0.0
      %415 = vmatprep.subr.mxu0 0.0
      %416 = vmatpush2.xpose.msra.mxu0 0.0
      %417 = vmatprep.subr.mxu0 0.0
      %418 = vmatpush2.xpose.msra.mxu0 0.0
      %419 = vmatprep.subr.mxu0 0.0
      %420 = vmatpush2.xpose.msra.mxu0 0.0
      %421 = vmatprep.subr.mxu0 0.0
      %422 = vmatpush2.xpose.msra.mxu0 0.0
      %423 = vmatprep.subr.mxu0 0.0
      %424 = vmatpush2.xpose.msra.mxu0 0.0
      %425 = vmatprep.subr.mxu0 0.0
      %426 = vmatpush2.xpose.msra.mxu0 0.0
      %427 = vmatprep.subr.mxu0 0.0
      %428 = vmatpush2.xpose.msra.mxu0 0.0
      %429 = vmatprep.subr.mxu0 0.0
      %430 = vmatpush2.xpose.msra.mxu0 0.0
      %431 = vmatprep.subr.mxu0 0.0
      %432 = vmatpush2.xpose.msra.mxu0 0.0
      %433 = vmatprep.subr.mxu0 0.0
      %434 = vmatpush2.xpose.msra.mxu0 0.0
      %435 = vmatprep.subr.mxu0 0.0
      %436 = vmatpush2.xpose.msra.mxu0 0.0
      %437 = vmatprep.subr.mxu0 0.0
      %438 = vmatpush2.xpose.msra.mxu0 0.0
      %439 = vmatprep.subr.mxu0 0.0
      %440 = vmatpush2.xpose.msra.mxu0 0.0
      %441 = vmatprep.subr.mxu0 0.0
      %442 = vmatpush2.xpose.msra.mxu0 0.0
      %443 = vmatprep.subr.mxu0 0.0
      %444 = vmatpush2.xpose.msra.mxu0 0.0
      %445 = vmatprep.mubr.f32.mxu0 0.0
      %446 = vmatmul.mubr.f32.gmra.mxu0 %v379
      %v447 = vpop.f32.mrf.mxu0
      %v448 = vadd.f32 0.0, %v447
      %v449 = vpop.f32.mrf.mxu0
      %450 = vdwg.mxu0
      %v451 = vmul.f32 %v448, 0.17677669
      %v452 = vsel %vm292, %v451, -inf
      %453 = vmax.xlane.f32.xlu0 %v452
      %v454 = vpop.xlane.xlu0 %453
      %v455 = vsub.f32 %v451, %v454
      %v456 = vmul.f32 %v455, 1.442695
      %v457 = vpow.pop %v456
      %v458 = vsel %vm292, %v457, 0.0
      %459 = vadd.xlane.f32.xlu0 %v458
      %v460 = vpop.xlane.xlu0 %459
      %v461 = vrcp.pop %v460
      %v462 = vmul.f32 %v457, %v461
      %v464 = vsel %vm292, %v462, 0
      %466 = vmatprep.subr.mxu0 0.0
      %467 = vmatpush1.msra.mxu0 0.0
      %468 = vmatprep.subr.mxu0 0.0
      %469 = vmatpush1.msra.mxu0 0.0
      %470 = vmatprep.subr.mxu0 0.0
      %471 = vmatpush1.msra.mxu0 0.0
      %472 = vmatprep.subr.mxu0 0.0
      %473 = vmatpush1.msra.mxu0 0.0
      %474 = vmatprep.subr.mxu0 0.0
      %475 = vmatpush1.msra.mxu0 0.0
      %476 = vmatprep.subr.mxu0 0.0
      %477 = vmatpush1.msra.mxu0 0.0
      %478 = vmatprep.subr.mxu0 0.0
      %479 = vmatpush1.msra.mxu0 0.0
      %480 = vmatprep.subr.mxu0 0.0
      %481 = vmatpush1.msra.mxu0 0.0
      %482 = vmatprep.subr.mxu0 0.0
      %483 = vmatpush1.msra.mxu0 0.0
      %484 = vmatprep.subr.mxu0 0.0
      %485 = vmatpush1.msra.mxu0 0.0
      %486 = vmatprep.subr.mxu0 0.0
      %487 = vmatpush1.msra.mxu0 0.0
      %488 = vmatprep.subr.mxu0 0.0
      %489 = vmatpush1.msra.mxu0 0.0
      %490 = vmatprep.subr.mxu0 0.0
      %491 = vmatpush1.msra.mxu0 0.0
      %492 = vmatprep.subr.mxu0 0.0
      %493 = vmatpush1.msra.mxu0 0.0
      %494 = vmatprep.subr.mxu0 0.0
      %495 = vmatpush1.msra.mxu0 %v210
      %496 = vmatprep.subr.mxu0 0.0
      %497 = vmatpush1.msra.mxu0 %v209
      %498 = vmatprep.subr.mxu0 0.0
      %499 = vmatpush2.msra.mxu0 0.0
      %500 = vmatprep.subr.mxu0 0.0
      %501 = vmatpush2.msra.mxu0 0.0
      %502 = vmatprep.subr.mxu0 0.0
      %503 = vmatpush2.msra.mxu0 0.0
      %504 = vmatprep.subr.mxu0 0.0
      %505 = vmatpush2.msra.mxu0 0.0
      %506 = vmatprep.subr.mxu0 0.0
      %507 = vmatpush2.msra.mxu0 0.0
      %508 = vmatprep.subr.mxu0 0.0
      %509 = vmatpush2.msra.mxu0 0.0
      %510 = vmatprep.subr.mxu0 0.0
      %511 = vmatpush2.msra.mxu0 0.0
      %512 = vmatprep.subr.mxu0 0.0
      %513 = vmatpush2.msra.mxu0 0.0
      %514 = vmatprep.subr.mxu0 0.0
      %515 = vmatpush2.msra.mxu0 0.0
      %516 = vmatprep.subr.mxu0 0.0
      %517 = vmatpush2.msra.mxu0 0.0
      %518 = vmatprep.subr.mxu0 0.0
      %519 = vmatpush2.msra.mxu0 0.0
      %520 = vmatprep.subr.mxu0 0.0
      %521 = vmatpush2.msra.mxu0 0.0
      %522 = vmatprep.subr.mxu0 0.0
      %523 = vmatpush2.msra.mxu0 0.0
      %524 = vmatprep.subr.mxu0 0.0
      %525 = vmatpush2.msra.mxu0 0.0
      %526 = vmatprep.subr.mxu0 0.0
      %527 = vmatpush2.msra.mxu0 0.0
      %528 = vmatprep.subr.mxu0 0.0
      %529 = vmatpush2.msra.mxu0 0.0
      %530 = vmatprep.mubr.f32.mxu0 0.0
      %531 = vmatmul.mubr.f32.gmra.mxu0 %v464
      %v532 = vpop.f32.mrf.mxu0
      %v533 = vadd.f32 0.0, %v532
      %v534 = vpop.f32.mrf.mxu0
      %535 = vdwg.mxu0
      %536 = vrot.lane.b32.xlu0 %v206, 64
      %v537 = vpop.permute.xlu0 %536
      %538 = vrot.lane.b32.xlu0 %v207, 96
      %v539 = vpop.permute.xlu0 %538
      %540 = vrot.lane.b32.xlu0 %v208, 96
      %v541 = vpop.permute.xlu0 %540
      %v542 = vsel %vm211, %v537, 0
      %v544 = vsel %vm211, %v539, 0
      %v546 = vsel %vm211, %v541, 0
      %548 = vmatprep.subr.mxu0 0.0
      %549 = vmatpush1.xpose.msra.mxu0 0.0
      %550 = vmatprep.subr.mxu0 0.0
      %551 = vmatpush1.xpose.msra.mxu0 0.0
      %552 = vmatprep.subr.mxu0 0.0
      %553 = vmatpush1.xpose.msra.mxu0 0.0
      %554 = vmatprep.subr.mxu0 0.0
      %555 = vmatpush1.xpose.msra.mxu0 0.0
      %556 = vmatprep.subr.mxu0 0.0
      %557 = vmatpush1.xpose.msra.mxu0 0.0
      %558 = vmatprep.subr.mxu0 0.0
      %559 = vmatpush1.xpose.msra.mxu0 0.0
      %560 = vmatprep.subr.mxu0 0.0
      %561 = vmatpush1.xpose.msra.mxu0 0.0
      %562 = vmatprep.subr.mxu0 0.0
      %563 = vmatpush1.xpose.msra.mxu0 0.0
      %564 = vmatprep.subr.mxu0 0.0
      %565 = vmatpush1.xpose.msra.mxu0 0.0
      %566 = vmatprep.subr.mxu0 0.0
      %567 = vmatpush1.xpose.msra.mxu0 0.0
      %568 = vmatprep.subr.mxu0 0.0
      %569 = vmatpush1.xpose.msra.mxu0 0.0
      %570 = vmatprep.subr.mxu0 0.0
      %571 = vmatpush1.xpose.msra.mxu0 0.0
      %572 = vmatprep.subr.mxu0 0.0
      %573 = vmatpush1.xpose.msra.mxu0 0.0
      %574 = vmatprep.subr.mxu0 0.0
      %575 = vmatpush1.xpose.msra.mxu0 0.0
      %576 = vmatprep.subr.mxu0 0.0
      %577 = vmatpush1.xpose.msra.mxu0 %v546
      %578 = vmatprep.subr.mxu0 0.0
      %579 = vmatpush1.xpose.msra.mxu0 %v544
      %580 = vmatprep.subr.mxu0 0.0
      %581 = vmatpush2.xpose.msra.mxu0 0.0
      %582 = vmatprep.subr.mxu0 0.0
      %583 = vmatpush2.xpose.msra.mxu0 0.0
      %584 = vmatprep.subr.mxu0 0.0
      %585 = vmatpush2.xpose.msra.mxu0 0.0
      %586 = vmatprep.subr.mxu0 0.0
      %587 = vmatpush2.xpose.msra.mxu0 0.0
      %588 = vmatprep.subr.mxu0 0.0
      %589 = vmatpush2.xpose.msra.mxu0 0.0
      %590 = vmatprep.subr.mxu0 0.0
      %591 = vmatpush2.xpose.msra.mxu0 0.0
      %592 = vmatprep.subr.mxu0 0.0
      %593 = vmatpush2.xpose.msra.mxu0 0.0
      %594 = vmatprep.subr.mxu0 0.0
      %595 = vmatpush2.xpose.msra.mxu0 0.0
      %596 = vmatprep.subr.mxu0 0.0
      %597 = vmatpush2.xpose.msra.mxu0 0.0
      %598 = vmatprep.subr.mxu0 0.0
      %599 = vmatpush2.xpose.msra.mxu0 0.0
      %600 = vmatprep.subr.mxu0 0.0
      %601 = vmatpush2.xpose.msra.mxu0 0.0
      %602 = vmatprep.subr.mxu0 0.0
      %603 = vmatpush2.xpose.msra.mxu0 0.0
      %604 = vmatprep.subr.mxu0 0.0
      %605 = vmatpush2.xpose.msra.mxu0 0.0
      %606 = vmatprep.subr.mxu0 0.0
      %607 = vmatpush2.xpose.msra.mxu0 0.0
      %608 = vmatprep.subr.mxu0 0.0
      %609 = vmatpush2.xpose.msra.mxu0 0.0
      %610 = vmatprep.subr.mxu0 0.0
      %611 = vmatpush2.xpose.msra.mxu0 0.0
      %612 = vmatprep.mubr.f32.mxu0 0.0
      %613 = vmatmul.mubr.f32.gmra.mxu0 %v542
      %v614 = vpop.f32.mrf.mxu0
      %v615 = vadd.f32 0.0, %v614
      %v616 = vpop.f32.mrf.mxu0
      %617 = vdwg.mxu0
      %v618 = vmul.f32 %v615, 0.17677669
      %v619 = vsel %vm292, %v618, -inf
      %620 = vmax.xlane.f32.xlu0 %v619
      %v621 = vpop.xlane.xlu0 %620
      %v622 = vsub.f32 %v618, %v621
      %v623 = vmul.f32 %v622, 1.442695
      %v624 = vpow.pop %v623
      %v625 = vsel %vm292, %v624, 0.0
      %626 = vadd.xlane.f32.xlu0 %v625
      %v627 = vpop.xlane.xlu0 %626
      %v628 = vrcp.pop %v627
      %v629 = vmul.f32 %v624, %v628
      %632 = vrot.lane.b32.xlu0 %v209, 96
      %v633 = vpop.permute.xlu0 %632
      %634 = vrot.lane.b32.xlu0 %v210, 96
      %v635 = vpop.permute.xlu0 %634
      %v639 = vsel %vm292, %v629, 0
      %641 = vmatprep.subr.mxu0 0.0
      %642 = vmatpush1.msra.mxu0 0.0
      %643 = vmatprep.subr.mxu0 0.0
      %644 = vmatpush1.msra.mxu0 0.0
      %645 = vmatprep.subr.mxu0 0.0
      %646 = vmatpush1.msra.mxu0 0.0
      %647 = vmatprep.subr.mxu0 0.0
      %648 = vmatpush1.msra.mxu0 0.0
      %649 = vmatprep.subr.mxu0 0.0
      %650 = vmatpush1.msra.mxu0 0.0
      %651 = vmatprep.subr.mxu0 0.0
      %652 = vmatpush1.msra.mxu0 0.0
      %653 = vmatprep.subr.mxu0 0.0
      %654 = vmatpush1.msra.mxu0 0.0
      %655 = vmatprep.subr.mxu0 0.0
      %656 = vmatpush1.msra.mxu0 0.0
      %657 = vmatprep.subr.mxu0 0.0
      %658 = vmatpush1.msra.mxu0 0.0
      %659 = vmatprep.subr.mxu0 0.0
      %660 = vmatpush1.msra.mxu0 0.0
      %661 = vmatprep.subr.mxu0 0.0
      %662 = vmatpush1.msra.mxu0 0.0
      %663 = vmatprep.subr.mxu0 0.0
      %664 = vmatpush1.msra.mxu0 0.0
      %665 = vmatprep.subr.mxu0 0.0
      %666 = vmatpush1.msra.mxu0 0.0
      %667 = vmatprep.subr.mxu0 0.0
      %668 = vmatpush1.msra.mxu0 0.0
      %669 = vmatprep.subr.mxu0 0.0
      %670 = vmatpush1.msra.mxu0 %v635
      %671 = vmatprep.subr.mxu0 0.0
      %672 = vmatpush1.msra.mxu0 %v633
      %673 = vmatprep.subr.mxu0 0.0
      %674 = vmatpush2.msra.mxu0 0.0
      %675 = vmatprep.subr.mxu0 0.0
      %676 = vmatpush2.msra.mxu0 0.0
      %677 = vmatprep.subr.mxu0 0.0
      %678 = vmatpush2.msra.mxu0 0.0
      %679 = vmatprep.subr.mxu0 0.0
      %680 = vmatpush2.msra.mxu0 0.0
      %681 = vmatprep.subr.mxu0 0.0
      %682 = vmatpush2.msra.mxu0 0.0
      %683 = vmatprep.subr.mxu0 0.0
      %684 = vmatpush2.msra.mxu0 0.0
      %685 = vmatprep.subr.mxu0 0.0
      %686 = vmatpush2.msra.mxu0 0.0
      %687 = vmatprep.subr.mxu0 0.0
      %688 = vmatpush2.msra.mxu0 0.0
      %689 = vmatprep.subr.mxu0 0.0
      %690 = vmatpush2.msra.mxu0 0.0
      %691 = vmatprep.subr.mxu0 0.0
      %692 = vmatpush2.msra.mxu0 0.0
      %693 = vmatprep.subr.mxu0 0.0
      %694 = vmatpush2.msra.mxu0 0.0
      %695 = vmatprep.subr.mxu0 0.0
      %696 = vmatpush2.msra.mxu0 0.0
      %697 = vmatprep.subr.mxu0 0.0
      %698 = vmatpush2.msra.mxu0 0.0
      %699 = vmatprep.subr.mxu0 0.0
      %700 = vmatpush2.msra.mxu0 0.0
      %701 = vmatprep.subr.mxu0 0.0
      %702 = vmatpush2.msra.mxu0 0.0
      %703 = vmatprep.subr.mxu0 0.0
      %704 = vmatpush2.msra.mxu0 0.0
      %705 = vmatprep.mubr.f32.mxu0 0.0
      %706 = vmatmul.mubr.f32.gmra.mxu0 %v639
      %v707 = vpop.f32.mrf.mxu0
      %v708 = vadd.f32 0.0, %v707
      %v709 = vpop.f32.mrf.mxu0
      %710 = vdwg.mxu0
      %711 = vrot.lane.b32.xlu0 %v206, 32
      %v712 = vpop.permute.xlu0 %711
      %v713 = vsel %vm211, %v712, 0
      %715 = vmatprep.subr.mxu0 0.0
      %716 = vmatpush1.xpose.msra.mxu0 0.0
      %717 = vmatprep.subr.mxu0 0.0
      %718 = vmatpush1.xpose.msra.mxu0 0.0
      %719 = vmatprep.subr.mxu0 0.0
      %720 = vmatpush1.xpose.msra.mxu0 0.0
      %721 = vmatprep.subr.mxu0 0.0
      %722 = vmatpush1.xpose.msra.mxu0 0.0
      %723 = vmatprep.subr.mxu0 0.0
      %724 = vmatpush1.xpose.msra.mxu0 0.0
      %725 = vmatprep.subr.mxu0 0.0
      %726 = vmatpush1.xpose.msra.mxu0 0.0
      %727 = vmatprep.subr.mxu0 0.0
      %728 = vmatpush1.xpose.msra.mxu0 0.0
      %729 = vmatprep.subr.mxu0 0.0
      %730 = vmatpush1.xpose.msra.mxu0 0.0
      %731 = vmatprep.subr.mxu0 0.0
      %732 = vmatpush1.xpose.msra.mxu0 0.0
      %733 = vmatprep.subr.mxu0 0.0
      %734 = vmatpush1.xpose.msra.mxu0 0.0
      %735 = vmatprep.subr.mxu0 0.0
      %736 = vmatpush1.xpose.msra.mxu0 0.0
      %737 = vmatprep.subr.mxu0 0.0
      %738 = vmatpush1.xpose.msra.mxu0 0.0
      %739 = vmatprep.subr.mxu0 0.0
      %740 = vmatpush1.xpose.msra.mxu0 0.0
      %741 = vmatprep.subr.mxu0 0.0
      %742 = vmatpush1.xpose.msra.mxu0 0.0
      %743 = vmatprep.subr.mxu0 0.0
      %744 = vmatpush1.xpose.msra.mxu0 %v546
      %745 = vmatprep.subr.mxu0 0.0
      %746 = vmatpush1.xpose.msra.mxu0 %v544
      %747 = vmatprep.subr.mxu0 0.0
      %748 = vmatpush2.xpose.msra.mxu0 0.0
      %749 = vmatprep.subr.mxu0 0.0
      %750 = vmatpush2.xpose.msra.mxu0 0.0
      %751 = vmatprep.subr.mxu0 0.0
      %752 = vmatpush2.xpose.msra.mxu0 0.0
      %753 = vmatprep.subr.mxu0 0.0
      %754 = vmatpush2.xpose.msra.mxu0 0.0
      %755 = vmatprep.subr.mxu0 0.0
      %756 = vmatpush2.xpose.msra.mxu0 0.0
      %757 = vmatprep.subr.mxu0 0.0
      %758 = vmatpush2.xpose.msra.mxu0 0.0
      %759 = vmatprep.subr.mxu0 0.0
      %760 = vmatpush2.xpose.msra.mxu0 0.0
      %761 = vmatprep.subr.mxu0 0.0
      %762 = vmatpush2.xpose.msra.mxu0 0.0
      %763 = vmatprep.subr.mxu0 0.0
      %764 = vmatpush2.xpose.msra.mxu0 0.0
      %765 = vmatprep.subr.mxu0 0.0
      %766 = vmatpush2.xpose.msra.mxu0 0.0
      %767 = vmatprep.subr.mxu0 0.0
      %768 = vmatpush2.xpose.msra.mxu0 0.0
      %769 = vmatprep.subr.mxu0 0.0
      %770 = vmatpush2.xpose.msra.mxu0 0.0
      %771 = vmatprep.subr.mxu0 0.0
      %772 = vmatpush2.xpose.msra.mxu0 0.0
      %773 = vmatprep.subr.mxu0 0.0
      %774 = vmatpush2.xpose.msra.mxu0 0.0
      %775 = vmatprep.subr.mxu0 0.0
      %776 = vmatpush2.xpose.msra.mxu0 0.0
      %777 = vmatprep.subr.mxu0 0.0
      %778 = vmatpush2.xpose.msra.mxu0 0.0
      %779 = vmatprep.mubr.f32.mxu0 0.0
      %780 = vmatmul.mubr.f32.gmra.mxu0 %v713
      %v781 = vpop.f32.mrf.mxu0
      %v782 = vadd.f32 0.0, %v781
      %v783 = vpop.f32.mrf.mxu0
      %784 = vdwg.mxu0
      %v785 = vmul.f32 %v782, 0.17677669
      %v786 = vsel %vm292, %v785, -inf
      %787 = vmax.xlane.f32.xlu0 %v786
      %v788 = vpop.xlane.xlu0 %787
      %v789 = vsub.f32 %v785, %v788
      %v790 = vmul.f32 %v789, 1.442695
      %v791 = vpow.pop %v790
      %v792 = vsel %vm292, %v791, 0.0
      %793 = vadd.xlane.f32.xlu0 %v792
      %v794 = vpop.xlane.xlu0 %793
      %v795 = vrcp.pop %v794
      %v796 = vmul.f32 %v791, %v795
      %v798 = vsel %vm292, %v796, 0
      %800 = vmatprep.subr.mxu0 0.0
      %801 = vmatpush1.msra.mxu0 0.0
      %802 = vmatprep.subr.mxu0 0.0
      %803 = vmatpush1.msra.mxu0 0.0
      %804 = vmatprep.subr.mxu0 0.0
      %805 = vmatpush1.msra.mxu0 0.0
      %806 = vmatprep.subr.mxu0 0.0
      %807 = vmatpush1.msra.mxu0 0.0
      %808 = vmatprep.subr.mxu0 0.0
      %809 = vmatpush1.msra.mxu0 0.0
      %810 = vmatprep.subr.mxu0 0.0
      %811 = vmatpush1.msra.mxu0 0.0
      %812 = vmatprep.subr.mxu0 0.0
      %813 = vmatpush1.msra.mxu0 0.0
      %814 = vmatprep.subr.mxu0 0.0
      %815 = vmatpush1.msra.mxu0 0.0
      %816 = vmatprep.subr.mxu0 0.0
      %817 = vmatpush1.msra.mxu0 0.0
      %818 = vmatprep.subr.mxu0 0.0
      %819 = vmatpush1.msra.mxu0 0.0
      %820 = vmatprep.subr.mxu0 0.0
      %821 = vmatpush1.msra.mxu0 0.0
      %822 = vmatprep.subr.mxu0 0.0
      %823 = vmatpush1.msra.mxu0 0.0
      %824 = vmatprep.subr.mxu0 0.0
      %825 = vmatpush1.msra.mxu0 0.0
      %826 = vmatprep.subr.mxu0 0.0
      %827 = vmatpush1.msra.mxu0 0.0
      %828 = vmatprep.subr.mxu0 0.0
      %829 = vmatpush1.msra.mxu0 %v635
      %830 = vmatprep.subr.mxu0 0.0
      %831 = vmatpush1.msra.mxu0 %v633
      %832 = vmatprep.subr.mxu0 0.0
      %833 = vmatpush2.msra.mxu0 0.0
      %834 = vmatprep.subr.mxu0 0.0
      %835 = vmatpush2.msra.mxu0 0.0
      %836 = vmatprep.subr.mxu0 0.0
      %837 = vmatpush2.msra.mxu0 0.0
      %838 = vmatprep.subr.mxu0 0.0
      %839 = vmatpush2.msra.mxu0 0.0
      %840 = vmatprep.subr.mxu0 0.0
      %841 = vmatpush2.msra.mxu0 0.0
      %842 = vmatprep.subr.mxu0 0.0
      %843 = vmatpush2.msra.mxu0 0.0
      %844 = vmatprep.subr.mxu0 0.0
      %845 = vmatpush2.msra.mxu0 0.0
      %846 = vmatprep.subr.mxu0 0.0
      %847 = vmatpush2.msra.mxu0 0.0
      %848 = vmatprep.subr.mxu0 0.0
      %849 = vmatpush2.msra.mxu0 0.0
      %850 = vmatprep.subr.mxu0 0.0
      %851 = vmatpush2.msra.mxu0 0.0
      %852 = vmatprep.subr.mxu0 0.0
      %853 = vmatpush2.msra.mxu0 0.0
      %854 = vmatprep.subr.mxu0 0.0
      %855 = vmatpush2.msra.mxu0 0.0
      %856 = vmatprep.subr.mxu0 0.0
      %857 = vmatpush2.msra.mxu0 0.0
      %858 = vmatprep.subr.mxu0 0.0
      %859 = vmatpush2.msra.mxu0 0.0
      %860 = vmatprep.subr.mxu0 0.0
      %861 = vmatpush2.msra.mxu0 0.0
      %862 = vmatprep.subr.mxu0 0.0
      %863 = vmatpush2.msra.mxu0 0.0
      %864 = vmatprep.mubr.f32.mxu0 0.0
      %865 = vmatmul.mubr.f32.gmra.mxu0 %v798
      %v866 = vpop.f32.mrf.mxu0
      %v867 = vadd.f32 0.0, %v866
      %v868 = vpop.f32.mrf.mxu0
      %869 = vdwg.mxu0
      %871 = vrot.lane.b32.xlu0 %v533, 32
      %v872 = vpop.permute.xlu0 %871
      %875 = vrot.lane.b32.xlu0 %v708, 64
      %v876 = vpop.permute.xlu0 %875
      %879 = vrot.lane.b32.xlu0 %v867, 96
      %v880 = vpop.permute.xlu0 %879
      %v882 = vsel %vm211, %v374, %v872
      %vm883 = vcmask 523264
      %v884 = vsel %vm883, %v882, %v876
      %vm885 = vcmask 785408
      %v886 = vsel %vm885, %v884, %v880
      %887 = vst [vmem:[%s205] sm:$0xff] %v886
      %p888 = scmp.lt.s32.totalorder %s14, 1
      %s889 = scalar_select %p888, %s14, 1
      %s890 = smul.addr %s889, 8
      %s891 = scalar_lea.vmem %s3, %s890
      // Predicated region
      $region33: #{fwd.18} parent=31 // pred_check
        %p892 = pneg %p110
      $region34: #{fwd.18} parent=31 // pred_check_branch
        %894 = sbr.rel (%p892) target = $region36
      $region35: #{fwd.18} parent=31 // pred_region
        _
      $region36: #{fwd.18} parent=31 // pred_fallthru
        _
    $region32: #{fwd.18} parent=5 // pred_fallthru
      _
    %p895 = scmp.le.s32.totalorder 2, %s9
    // Predicated region
    $region37: #{fwd.18} parent=5 // pred_check
      %p896 = pneg %p895
    $region38: #{fwd.18} parent=5 // pred_check_branch
      %898 = sbr.rel (%p896) target = $region40
    $region39: #{fwd.18} parent=5 // pred_region
      %s899 = ssub.s32 %s9, 2
      // Predicated region
      $region41: #{fwd.18} parent=39 // pred_check
        %p900 = pneg %p116
      $region42: #{fwd.18} parent=39 // pred_check_branch
        %902 = sbr.rel (%p900) target = $region44
      $region43: #{fwd.18} parent=39 // pred_region
        %p903 = scmp.lt.s32.totalorder %s15, 1
        %s904 = scalar_select %p903, %s15, 1
        %s905 = smul.addr %s904, 8
        %s906 = scalar_lea.vmem %s3, %s905
      $region44: #{fwd.18} parent=39 // pred_fallthru
        _
    $region40: #{fwd.18} parent=5 // pred_fallthru
      _
  $region6: #{fwd.18} parent=0 // loop_footer
    %s13 = sadd.s32 1, %s9
  $region7: #{fwd.18} parent=0 // loop_footer_branch
    %8 = sbr.rel target = $region3
  $region8: #{fwd.18} parent=0 // loop_exit
    _

// kernel: fwd.22
$region0: #{fwd.22}
  #allocation0 [shape = 'u32[]', space=smem, size = 0x4, offset = 0x4, fixed_abs, tag = 'smem constant byte address 0x4 - core index']
  #allocation1 [shape = 'u32[144,128]{1,0:T(1,128)}', space=vmem, size = 0x12000, scoped, tag = 'internal scratch']
  %s0 = inlined_call_operand.vmem [shape: f32[2,8,128], index: 0, kind: input, shape index: {}]
  %s1 = inlined_call_operand.vmem [shape: f32[128,64], index: 1, kind: input, shape index: {}]
  %s2 = inlined_call_operand.vmem [shape: f32[1,64], index: 2, kind: input, shape index: {}]
  %s3 = inlined_call_operand.vmem [shape: f32[2,8,64], index: 3, kind: output, shape index: {}]
  %s4 = sld [smem:[#allocation0]]
  $region45: #{fwd.22} parent=0
    _
  %s6 = ssub.s32 1, %s4
  %s7 = scalar_select 0, %s6, %s4
  loop: start=0, step=1, limit=4
  $region2: #{fwd.22} parent=0 // loop_pre_header
    _
  $region3: #{fwd.22} parent=0 // loop_header
    %s9 = sphi 0, %s13
    %p10 = scmp.ge.s32.totalorder %s9, 4
    %s19 = sphi 0, %s21
    %s22 = sphi 0, %s19
    %s23 = sphi 0, %s22
    %s39 = sphi 0, %s23
    %s43 = sphi 0, %s43
    %s45 = sphi 0, %s43
    %s46 = sphi 0, %s45
    %s60 = sphi 0, %s46
    %s64 = sphi 0, %s64
    %s66 = sphi 0, %s64
    %s67 = sphi 0, %s66
    %s81 = sphi 0, %s67
    %s87 = sphi 0, %s89
    %s90 = sphi 0, %s87
    %s91 = sphi 0, %s90
    %s107 = sphi 0, %s91
  $region4: #{fwd.22} parent=0 // loop_header_branch
    %12 = sbr.rel (%p10) target = $region8
  $region5: #{fwd.22} parent=0 // loop_body
    %s14 = ssub.s32 %s9, 1
    %s15 = ssub.s32 %s9, 2
    %s16 = sadd.s32 %s9, 1
    %s17 = ssub.s32 %s9, %s16
    %p18 = scmp.eq.s32.totalorder %s17, 0
    %s20 = sadd.s32 %s19, 1
    %s21 = scalar_select %p18, %s19, %s20
    %p24 = pneg %p18
    %p25 = scmp.eq.s32.totalorder %s9, 1
    %p26 = por %p24, %p25
    %p27 = scmp.ne.s32.totalorder %s19, %s22
    %p28 = scmp.eq.s32.totalorder %s9, 0
    %p29 = por %p27, %p28
    %p30 = scmp.ne.s32.totalorder %s19, %s22
    %p31 = scmp.eq.s32.totalorder %s14, 1
    %p32 = por %p30, %p31
    %p33 = scmp.ne.s32.totalorder %s22, %s23
    %p34 = scmp.eq.s32.totalorder %s14, 0
    %p35 = por %p33, %p34
    %p36 = scmp.ne.s32.totalorder %s22, %s23
    %p37 = scmp.eq.s32.totalorder %s15, 1
    %p38 = por %p36, %p37
    %p40 = scmp.ne.s32.totalorder %s23, %s39
    %p41 = scmp.eq.s32.totalorder %s15, 0
    %p42 = por %p40, %p41
    %s44 = sadd.s32 %s43, 1
    %p47 = scmp.eq.s32.totalorder %s9, 1
    %p48 = scmp.ne.s32.totalorder %s43, %s45
    %p49 = scmp.eq.s32.totalorder %s9, 0
    %p50 = por %p48, %p49
    %p51 = scmp.ne.s32.totalorder %s43, %s45
    %p52 = scmp.eq.s32.totalorder %s14, 1
    %p53 = por %p51, %p52
    %p54 = scmp.ne.s32.totalorder %s45, %s46
    %p55 = scmp.eq.s32.totalorder %s14, 0
    %p56 = por %p54, %p55
    %p57 = scmp.ne.s32.totalorder %s45, %s46
    %p58 = scmp.eq.s32.totalorder %s15, 1
    %p59 = por %p57, %p58
    %p61 = scmp.ne.s32.totalorder %s46, %s60
    %p62 = scmp.eq.s32.totalorder %s15, 0
    %p63 = por %p61, %p62
    %s65 = sadd.s32 %s64, 1
    %p68 = scmp.eq.s32.totalorder %s9, 1
    %p69 = scmp.ne.s32.totalorder %s64, %s66
    %p70 = scmp.eq.s32.totalorder %s9, 0
    %p71 = por %p69, %p70
    %p72 = scmp.ne.s32.totalorder %s64, %s66
    %p73 = scmp.eq.s32.totalorder %s14, 1
    %p74 = por %p72, %p73
    %p75 = scmp.ne.s32.totalorder %s66, %s67
    %p76 = scmp.eq.s32.totalorder %s14, 0
    %p77 = por %p75, %p76
    %p78 = scmp.ne.s32.totalorder %s66, %s67
    %p79 = scmp.eq.s32.totalorder %s15, 1
    %p80 = por %p78, %p79
    %p82 = scmp.ne.s32.totalorder %s67, %s81
    %p83 = scmp.eq.s32.totalorder %s15, 0
    %p84 = por %p82, %p83
    %s85 = ssub.s32 %s9, %s16
    %p86 = scmp.eq.s32.totalorder %s85, 0
    %s88 = sadd.s32 %s87, 1
    %s89 = scalar_select %p86, %s87, %s88
    %p92 = pneg %p86
    %p93 = scmp.eq.s32.totalorder %s9, 1
    %p94 = por %p92, %p93
    %p95 = scmp.ne.s32.totalorder %s87, %s90
    %p96 = scmp.eq.s32.totalorder %s9, 0
    %p97 = por %p95, %p96
    %p98 = scmp.ne.s32.totalorder %s87, %s90
    %p99 = scmp.eq.s32.totalorder %s14, 1
    %p100 = por %p98, %p99
    %p101 = scmp.ne.s32.totalorder %s90, %s91
    %p102 = scmp.eq.s32.totalorder %s14, 0
    %p103 = por %p101, %p102
    %p104 = scmp.ne.s32.totalorder %s90, %s91
    %p105 = scmp.eq.s32.totalorder %s15, 1
    %p106 = por %p104, %p105
    %p108 = scmp.ne.s32.totalorder %s91, %s107
    %p109 = scmp.eq.s32.totalorder %s15, 0
    %p110 = por %p108, %p109
    %p111 = scmp.le.s32.totalorder 1, %s9
    %p112 = scmp.lt.s32.totalorder %s9, 3
    %p113 = pnand %p111, %p112
    %p114 = pneg %p113
    // Predicated region
    $region9: #{fwd.22} parent=5 // pred_check
      _
    $region10: #{fwd.22} parent=5 // pred_check_branch
      %116 = sbr.rel (%p113) target = $region12
    $region11: #{fwd.22} parent=5 // pred_region
      %s117 = ssub.s32 %s9, 1
      // Predicated region
      $region13: #{fwd.22} parent=11 // pred_check
        %p118 = pneg %p56
      $region14: #{fwd.22} parent=11 // pred_check_branch
        %120 = sbr.rel (%p118) target = $region16
      $region15: #{fwd.22} parent=11 // pred_region
        _
      $region16: #{fwd.22} parent=11 // pred_fallthru
        _
      // Predicated region
      $region17: #{fwd.22} parent=11 // pred_check
        %p121 = pneg %p77
      $region18: #{fwd.22} parent=11 // pred_check_branch
        %123 = sbr.rel (%p121) target = $region20
      $region19: #{fwd.22} parent=11 // pred_region
        _
      $region20: #{fwd.22} parent=11 // pred_fallthru
        _
    $region12: #{fwd.22} parent=5 // pred_fallthru
      _
    %p124 = scmp.lt.s32.totalorder %s9, 2
    // Predicated region
    $region21: #{fwd.22} parent=5 // pred_check
      %p125 = pneg %p124
    $region22: #{fwd.22} parent=5 // pred_check_branch
      %127 = sbr.rel (%p125) target = $region24
    $region23: #{fwd.22} parent=5 // pred_region
      // Predicated region
      $region25: #{fwd.22} parent=23 // pred_check
        %p128 = pneg %p29
      $region26: #{fwd.22} parent=23 // pred_check_branch
        %130 = sbr.rel (%p128) target = $region28
      $region27: #{fwd.22} parent=23 // pred_region
        %p131 = scmp.lt.s32.totalorder %s9, 1
        %s132 = scalar_select %p131, %s9, 1
        %s133 = smul.addr %s132, 8
        %s134 = scalar_lea.vmem %s0, %s133
      $region28: #{fwd.22} parent=23 // pred_fallthru
        _
    $region24: #{fwd.22} parent=5 // pred_fallthru
      _
    %p135 = scmp.le.s32.totalorder 1, %s9
    %p136 = scmp.lt.s32.totalorder %s9, 3
    %p137 = pnand %p135, %p136
    %p138 = pneg %p137
    // Predicated region
    $region29: #{fwd.22} parent=5 // pred_check
      _
    $region30: #{fwd.22} parent=5 // pred_check_branch
      %140 = sbr.rel (%p137) target = $region32
    $region31: #{fwd.22} parent=5 // pred_region
      %s141 = ssub.s32 %s9, 1
      %p142 = scmp.lt.s32.totalorder %s14, 1
      %s143 = scalar_select %p142, %s14, 1
      %s144 = smul.addr %s143, 8
      %s145 = scalar_lea.vmem %s0, %s144
      %p146 = pneg %p35
      %p147 = pneg %p32
      %p148 = pneg %p56
      %p149 = pneg %p53
      %p150 = pneg %p77
      %p151 = pneg %p74
      %p152 = pneg %p103
      %p153 = pneg %p100
      %p154 = scmp.lt.s32.totalorder %s14, 1
      %s155 = scalar_select %p154, %s14, 1
      %s156 = smul.addr %s155, 8
      %s157 = scalar_lea.vmem %s3, %s156
      %p158 = scmp.lt.s32.totalorder %s14, 1
      %s159 = scalar_select %p158, %s14, 1
      %s160 = smul.addr %s159, 8
      %s161 = scalar_lea.vmem %s0, %s160
      %p162 = scmp.lt.s32.totalorder %s14, 1
      %s163 = scalar_select %p162, %s14, 1
      %s164 = smul.addr %s163, 8
      %s165 = scalar_lea.vmem %s3, %s164
      %v166 = vld [vmem:[%s161] sm:$0xff]
      %v167 = vld [vmem:[%s1] sm:$0xff]
      %v168 = vld [vmem:[%s1 + $0x8] sm:$0xff]
      %v169 = vld [vmem:[%s1 + $0x10] sm:$0xff]
      %v170 = vld [vmem:[%s1 + $0x18] sm:$0xff]
      %v171 = vld [vmem:[%s1 + $0x20] sm:$0xff]
      %v172 = vld [vmem:[%s1 + $0x28] sm:$0xff]
      %v173 = vld [vmem:[%s1 + $0x30] sm:$0xff]
      %v174 = vld [vmem:[%s1 + $0x38] sm:$0xff]
      %v175 = vld [vmem:[%s1 + $0x40] sm:$0xff]
      %v176 = vld [vmem:[%s1 + $0x48] sm:$0xff]
      %v177 = vld [vmem:[%s1 + $0x50] sm:$0xff]
      %v178 = vld [vmem:[%s1 + $0x58] sm:$0xff]
      %v179 = vld [vmem:[%s1 + $0x60] sm:$0xff]
      %v180 = vld [vmem:[%s1 + $0x68] sm:$0xff]
      %v181 = vld [vmem:[%s1 + $0x70] sm:$0xff]
      %v182 = vld [vmem:[%s1 + $0x78] sm:$0xff]
      %v183 = vld [vmem:[%s2] sm:$0x1]
      %v185 = vlaneseq
      %v186 = vshrl.u32 %v185, 7
      %v187 = vsub.s32 0, %v186
      %v188 = vrot.slane %v183, %v187
      %190 = vmatprep.subr.mxu0 0.0
      %191 = vmatpush1.msra.mxu0 %v182
      %192 = vmatprep.subr.mxu0 0.0
      %193 = vmatpush1.msra.mxu0 %v181
      %194 = vmatprep.subr.mxu0 0.0
      %195 = vmatpush1.msra.mxu0 %v180
      %196 = vmatprep.subr.mxu0 0.0
      %197 = vmatpush1.msra.mxu0 %v179
      %198 = vmatprep.subr.mxu0 0.0
      %199 = vmatpush1.msra.mxu0 %v178
      %200 = vmatprep.subr.mxu0 0.0
      %201 = vmatpush1.msra.mxu0 %v177
      %202 = vmatprep.subr.mxu0 0.0
      %203 = vmatpush1.msra.mxu0 %v176
      %204 = vmatprep.subr.mxu0 0.0
      %205 = vmatpush1.msra.mxu0 %v175
      %206 = vmatprep.subr.mxu0 0.0
      %207 = vmatpush1.msra.mxu0 %v174
      %208 = vmatprep.subr.mxu0 0.0
      %209 = vmatpush1.msra.mxu0 %v173
      %210 = vmatprep.subr.mxu0 0.0
      %211 = vmatpush1.msra.mxu0 %v172
      %212 = vmatprep.subr.mxu0 0.0
      %213 = vmatpush1.msra.mxu0 %v171
      %214 = vmatprep.subr.mxu0 0.0
      %215 = vmatpush1.msra.mxu0 %v170
      %216 = vmatprep.subr.mxu0 0.0
      %217 = vmatpush1.msra.mxu0 %v169
      %218 = vmatprep.subr.mxu0 0.0
      %219 = vmatpush1.msra.mxu0 %v168
      %220 = vmatprep.subr.mxu0 0.0
      %221 = vmatpush1.msra.mxu0 %v167
      %222 = vmatprep.subr.mxu0 0.0
      %223 = vmatpush2.msra.mxu0 0.0
      %224 = vmatprep.subr.mxu0 0.0
      %225 = vmatpush2.msra.mxu0 0.0
      %226 = vmatprep.subr.mxu0 0.0
      %227 = vmatpush2.msra.mxu0 0.0
      %228 = vmatprep.subr.mxu0 0.0
      %229 = vmatpush2.msra.mxu0 0.0
      %230 = vmatprep.subr.mxu0 0.0
      %231 = vmatpush2.msra.mxu0 0.0
      %232 = vmatprep.subr.mxu0 0.0
      %233 = vmatpush2.msra.mxu0 0.0
      %234 = vmatprep.subr.mxu0 0.0
      %235 = vmatpush2.msra.mxu0 0.0
      %236 = vmatprep.subr.mxu0 0.0
      %237 = vmatpush2.msra.mxu0 0.0
      %238 = vmatprep.subr.mxu0 0.0
      %239 = vmatpush2.msra.mxu0 0.0
      %240 = vmatprep.subr.mxu0 0.0
      %241 = vmatpush2.msra.mxu0 0.0
      %242 = vmatprep.subr.mxu0 0.0
      %243 = vmatpush2.msra.mxu0 0.0
      %244 = vmatprep.subr.mxu0 0.0
      %245 = vmatpush2.msra.mxu0 0.0
      %246 = vmatprep.subr.mxu0 0.0
      %247 = vmatpush2.msra.mxu0 0.0
      %248 = vmatprep.subr.mxu0 0.0
      %249 = vmatpush2.msra.mxu0 0.0
      %250 = vmatprep.subr.mxu0 0.0
      %251 = vmatpush2.msra.mxu0 0.0
      %252 = vmatprep.subr.mxu0 0.0
      %253 = vmatpush2.msra.mxu0 0.0
      %254 = vmatprep.mubr.f32.mxu0 0.0
      %255 = vmatmul.mubr.f32.gmra.mxu0 %v166
      %v256 = vpop.f32.mrf.mxu0
      %v257 = vadd.f32 %v188, %v256
      %v258 = vpop.f32.mrf.mxu0
      %259 = vdwg.mxu0
      %vm260 = vcmask 523264
      %261 = vst.msk [vmem:[%s165] sm:$0xff] %vm260, %v257
      %p262 = scmp.lt.s32.totalorder %s14, 1
      %s263 = scalar_select %p262, %s14, 1
      %s264 = smul.addr %s263, 8
      %s265 = scalar_lea.vmem %s3, %s264
      // Predicated region
      $region33: #{fwd.22} parent=31 // pred_check
        %p266 = pneg %p100
      $region34: #{fwd.22} parent=31 // pred_check_branch
        %268 = sbr.rel (%p266) target = $region36
      $region35: #{fwd.22} parent=31 // pred_region
        _
      $region36: #{fwd.22} parent=31 // pred_fallthru
        _
    $region32: #{fwd.22} parent=5 // pred_fallthru
      _
    %p269 = scmp.le.s32.totalorder 2, %s9
    // Predicated region
    $region37: #{fwd.22} parent=5 // pred_check
      %p270 = pneg %p269
    $region38: #{fwd.22} parent=5 // pred_check_branch
      %272 = sbr.rel (%p270) target = $region40
    $region39: #{fwd.22} parent=5 // pred_region
      %s273 = ssub.s32 %s9, 2
      // Predicated region
      $region41: #{fwd.22} parent=39 // pred_check
        %p274 = pneg %p106
      $region42: #{fwd.22} parent=39 // pred_check_branch
        %276 = sbr.rel (%p274) target = $region44
      $region43: #{fwd.22} parent=39 // pred_region
        %p277 = scmp.lt.s32.totalorder %s15, 1
        %s278 = scalar_select %p277, %s15, 1
        %s279 = smul.addr %s278, 8
        %s280 = scalar_lea.vmem %s3, %s279
      $region44: #{fwd.22} parent=39 // pred_fallthru
        _
    $region40: #{fwd.22} parent=5 // pred_fallthru
      _
  $region6: #{fwd.22} parent=0 // loop_footer
    %s13 = sadd.s32 1, %s9
  $region7: #{fwd.22} parent=0 // loop_footer_branch
    %8 = sbr.rel target = $region3
  $region8: #{fwd.22} parent=0 // loop_exit
    _

// kernel: fwd.27
$region0: #{fwd.27}
  #allocation0 [shape = 'u32[]', space=smem, size = 0x4, offset = 0x4, fixed_abs, tag = 'smem constant byte address 0x4 - core index']
  #allocation1 [shape = 'u32[144,128]{1,0:T(1,128)}', space=vmem, size = 0x12000, scoped, tag = 'internal scratch']
  %s0 = inlined_call_operand.vmem [shape: f32[2,8,128], index: 0, kind: input, shape index: {}]
  %s1 = inlined_call_operand.vmem [shape: f32[128,256], index: 1, kind: input, shape index: {}]
  %s2 = inlined_call_operand.vmem [shape: f32[128,256], index: 2, kind: input, shape index: {}]
  %s3 = inlined_call_operand.vmem [shape: f32[256,128], index: 3, kind: input, shape index: {}]
  %s4 = inlined_call_operand.vmem [shape: f32[2,8,128], index: 4, kind: output, shape index: {}]
  %s5 = sld [smem:[#allocation0]]
  $region49: #{fwd.27} parent=0
    _
  %s7 = ssub.s32 1, %s5
  %s8 = scalar_select 0, %s7, %s5
  loop: start=0, step=1, limit=4
  $region2: #{fwd.27} parent=0 // loop_pre_header
    _
  $region3: #{fwd.27} parent=0 // loop_header
    %s10 = sphi 0, %s14
    %p11 = scmp.ge.s32.totalorder %s10, 4
    %s20 = sphi 0, %s22
    %s23 = sphi 0, %s20
    %s24 = sphi 0, %s23
    %s40 = sphi 0, %s24
    %s44 = sphi 0, %s44
    %s46 = sphi 0, %s44
    %s47 = sphi 0, %s46
    %s61 = sphi 0, %s47
    %s65 = sphi 0, %s65
    %s67 = sphi 0, %s65
    %s68 = sphi 0, %s67
    %s82 = sphi 0, %s68
    %s86 = sphi 0, %s86
    %s88 = sphi 0, %s86
    %s89 = sphi 0, %s88
    %s103 = sphi 0, %s89
    %s109 = sphi 0, %s111
    %s112 = sphi 0, %s109
    %s113 = sphi 0, %s112
    %s129 = sphi 0, %s113
  $region4: #{fwd.27} parent=0 // loop_header_branch
    %13 = sbr.rel (%p11) target = $region8
  $region5: #{fwd.27} parent=0 // loop_body
    %s15 = ssub.s32 %s10, 1
    %s16 = ssub.s32 %s10, 2
    %s17 = sadd.s32 %s10, 1
    %s18 = ssub.s32 %s10, %s17
    %p19 = scmp.eq.s32.totalorder %s18, 0
    %s21 = sadd.s32 %s20, 1
    %s22 = scalar_select %p19, %s20, %s21
    %p25 = pneg %p19
    %p26 = scmp.eq.s32.totalorder %s10, 1
    %p27 = por %p25, %p26
    %p28 = scmp.ne.s32.totalorder %s20, %s23
    %p29 = scmp.eq.s32.totalorder %s10, 0
    %p30 = por %p28, %p29
    %p31 = scmp.ne.s32.totalorder %s20, %s23
    %p32 = scmp.eq.s32.totalorder %s15, 1
    %p33 = por %p31, %p32
    %p34 = scmp.ne.s32.totalorder %s23, %s24
    %p35 = scmp.eq.s32.totalorder %s15, 0
    %p36 = por %p34, %p35
    %p37 = scmp.ne.s32.totalorder %s23, %s24
    %p38 = scmp.eq.s32.totalorder %s16, 1
    %p39 = por %p37, %p38
    %p41 = scmp.ne.s32.totalorder %s24, %s40
    %p42 = scmp.eq.s32.totalorder %s16, 0
    %p43 = por %p41, %p42
    %s45 = sadd.s32 %s44, 1
    %p48 = scmp.eq.s32.totalorder %s10, 1
    %p49 = scmp.ne.s32.totalorder %s44, %s46
    %p50 = scmp.eq.s32.totalorder %s10, 0
    %p51 = por %p49, %p50
    %p52 = scmp.ne.s32.totalorder %s44, %s46
    %p53 = scmp.eq.s32.totalorder %s15, 1
    %p54 = por %p52, %p53
    %p55 = scmp.ne.s32.totalorder %s46, %s47
    %p56 = scmp.eq.s32.totalorder %s15, 0
    %p57 = por %p55, %p56
    %p58 = scmp.ne.s32.totalorder %s46, %s47
    %p59 = scmp.eq.s32.totalorder %s16, 1
    %p60 = por %p58, %p59
    %p62 = scmp.ne.s32.totalorder %s47, %s61
    %p63 = scmp.eq.s32.totalorder %s16, 0
    %p64 = por %p62, %p63
    %s66 = sadd.s32 %s65, 1
    %p69 = scmp.eq.s32.totalorder %s10, 1
    %p70 = scmp.ne.s32.totalorder %s65, %s67
    %p71 = scmp.eq.s32.totalorder %s10, 0
    %p72 = por %p70, %p71
    %p73 = scmp.ne.s32.totalorder %s65, %s67
    %p74 = scmp.eq.s32.totalorder %s15, 1
    %p75 = por %p73, %p74
    %p76 = scmp.ne.s32.totalorder %s67, %s68
    %p77 = scmp.eq.s32.totalorder %s15, 0
    %p78 = por %p76, %p77
    %p79 = scmp.ne.s32.totalorder %s67, %s68
    %p80 = scmp.eq.s32.totalorder %s16, 1
    %p81 = por %p79, %p80
    %p83 = scmp.ne.s32.totalorder %s68, %s82
    %p84 = scmp.eq.s32.totalorder %s16, 0
    %p85 = por %p83, %p84
    %s87 = sadd.s32 %s86, 1
    %p90 = scmp.eq.s32.totalorder %s10, 1
    %p91 = scmp.ne.s32.totalorder %s86, %s88
    %p92 = scmp.eq.s32.totalorder %s10, 0
    %p93 = por %p91, %p92
    %p94 = scmp.ne.s32.totalorder %s86, %s88
    %p95 = scmp.eq.s32.totalorder %s15, 1
    %p96 = por %p94, %p95
    %p97 = scmp.ne.s32.totalorder %s88, %s89
    %p98 = scmp.eq.s32.totalorder %s15, 0
    %p99 = por %p97, %p98
    %p100 = scmp.ne.s32.totalorder %s88, %s89
    %p101 = scmp.eq.s32.totalorder %s16, 1
    %p102 = por %p100, %p101
    %p104 = scmp.ne.s32.totalorder %s89, %s103
    %p105 = scmp.eq.s32.totalorder %s16, 0
    %p106 = por %p104, %p105
    %s107 = ssub.s32 %s10, %s17
    %p108 = scmp.eq.s32.totalorder %s107, 0
    %s110 = sadd.s32 %s109, 1
    %s111 = scalar_select %p108, %s109, %s110
    %p114 = pneg %p108
    %p115 = scmp.eq.s32.totalorder %s10, 1
    %p116 = por %p114, %p115
    %p117 = scmp.ne.s32.totalorder %s109, %s112
    %p118 = scmp.eq.s32.totalorder %s10, 0
    %p119 = por %p117, %p118
    %p120 = scmp.ne.s32.totalorder %s109, %s112
    %p121 = scmp.eq.s32.totalorder %s15, 1
    %p122 = por %p120, %p121
    %p123 = scmp.ne.s32.totalorder %s112, %s113
    %p124 = scmp.eq.s32.totalorder %s15, 0
    %p125 = por %p123, %p124
    %p126 = scmp.ne.s32.totalorder %s112, %s113
    %p127 = scmp.eq.s32.totalorder %s16, 1
    %p128 = por %p126, %p127
    %p130 = scmp.ne.s32.totalorder %s113, %s129
    %p131 = scmp.eq.s32.totalorder %s16, 0
    %p132 = por %p130, %p131
    %p133 = scmp.le.s32.totalorder 1, %s10
    %p134 = scmp.lt.s32.totalorder %s10, 3
    %p135 = pnand %p133, %p134
    %p136 = pneg %p135
    // Predicated region
    $region9: #{fwd.27} parent=5 // pred_check
      _
    $region10: #{fwd.27} parent=5 // pred_check_branch
      %138 = sbr.rel (%p135) target = $region12
    $region11: #{fwd.27} parent=5 // pred_region
      %s139 = ssub.s32 %s10, 1
      // Predicated region
      $region13: #{fwd.27} parent=11 // pred_check
        %p140 = pneg %p57
      $region14: #{fwd.27} parent=11 // pred_check_branch
        %142 = sbr.rel (%p140) target = $region16
      $region15: #{fwd.27} parent=11 // pred_region
        _
      $region16: #{fwd.27} parent=11 // pred_fallthru
        _
      // Predicated region
      $region17: #{fwd.27} parent=11 // pred_check
        %p143 = pneg %p78
      $region18: #{fwd.27} parent=11 // pred_check_branch
        %145 = sbr.rel (%p143) target = $region20
      $region19: #{fwd.27} parent=11 // pred_region
        _
      $region20: #{fwd.27} parent=11 // pred_fallthru
        _
      // Predicated region
      $region21: #{fwd.27} parent=11 // pred_check
        %p146 = pneg %p99
      $region22: #{fwd.27} parent=11 // pred_check_branch
        %148 = sbr.rel (%p146) target = $region24
      $region23: #{fwd.27} parent=11 // pred_region
        _
      $region24: #{fwd.27} parent=11 // pred_fallthru
        _
    $region12: #{fwd.27} parent=5 // pred_fallthru
      _
    %p149 = scmp.lt.s32.totalorder %s10, 2
    // Predicated region
    $region25: #{fwd.27} parent=5 // pred_check
      %p150 = pneg %p149
    $region26: #{fwd.27} parent=5 // pred_check_branch
      %152 = sbr.rel (%p150) target = $region28
    $region27: #{fwd.27} parent=5 // pred_region
      // Predicated region
      $region29: #{fwd.27} parent=27 // pred_check
        %p153 = pneg %p30
      $region30: #{fwd.27} parent=27 // pred_check_branch
        %155 = sbr.rel (%p153) target = $region32
      $region31: #{fwd.27} parent=27 // pred_region
        %p156 = scmp.lt.s32.totalorder %s10, 1
        %s157 = scalar_select %p156, %s10, 1
        %s158 = smul.addr %s157, 8
        %s159 = scalar_lea.vmem %s0, %s158
      $region32: #{fwd.27} parent=27 // pred_fallthru
        _
    $region28: #{fwd.27} parent=5 // pred_fallthru
      _
    %p160 = scmp.le.s32.totalorder 1, %s10
    %p161 = scmp.lt.s32.totalorder %s10, 3
    %p162 = pnand %p160, %p161
    %p163 = pneg %p162
    // Predicated region
    $region33: #{fwd.27} parent=5 // pred_check
      _
    $region34: #{fwd.27} parent=5 // pred_check_branch
      %165 = sbr.rel (%p162) target = $region36
    $region35: #{fwd.27} parent=5 // pred_region
      %s166 = ssub.s32 %s10, 1
      %p167 = scmp.lt.s32.totalorder %s15, 1
      %s168 = scalar_select %p167, %s15, 1
      %s169 = smul.addr %s168, 8
      %s170 = scalar_lea.vmem %s0, %s169
      %p171 = pneg %p36
      %p172 = pneg %p33
      %p173 = pneg %p57
      %p174 = pneg %p54
      %p175 = pneg %p78
      %p176 = pneg %p75
      %p177 = pneg %p99
      %p178 = pneg %p96
      %p179 = pneg %p125
      %p180 = pneg %p122
      %p181 = scmp.lt.s32.totalorder %s15, 1
      %s182 = scalar_select %p181, %s15, 1
      %s183 = smul.addr %s182, 8
      %s184 = scalar_lea.vmem %s4, %s183
      %p185 = scmp.lt.s32.totalorder %s15, 1
      %s186 = scalar_select %p185, %s15, 1
      %s187 = smul.addr %s186, 8
      %s188 = scalar_lea.vmem %s0, %s187
      %p189 = scmp.lt.s32.totalorder %s15, 1
      %s190 = scalar_select %p189, %s15, 1
      %s191 = smul.addr %s190, 8
      %s192 = scalar_lea.vmem %s4, %s191
      %v193 = vld [vmem:[%s188] sm:$0xff]
      %v194 = vld [vmem:[%s1] sm:$0xff]
      %v195 = vld [vmem:[%s1 + $0x8] sm:$0xff]
      %v196 = vld [vmem:[%s1 + $0x10] sm:$0xff]
      %v197 = vld [vmem:[%s1 + $0x18] sm:$0xff]
      %v198 = vld [vmem:[%s1 + $0x20] sm:$0xff]
      %v199 = vld [vmem:[%s1 + $0x28] sm:$0xff]
      %v200 = vld [vmem:[%s1 + $0x30] sm:$0xff]
      %v201 = vld [vmem:[%s1 + $0x38] sm:$0xff]
      %v202 = vld [vmem:[%s1 + $0x40] sm:$0xff]
      %v203 = vld [vmem:[%s1 + $0x48] sm:$0xff]
      %v204 = vld [vmem:[%s1 + $0x50] sm:$0xff]
      %v205 = vld [vmem:[%s1 + $0x58] sm:$0xff]
      %v206 = vld [vmem:[%s1 + $0x60] sm:$0xff]
      %v207 = vld [vmem:[%s1 + $0x68] sm:$0xff]
      %v208 = vld [vmem:[%s1 + $0x70] sm:$0xff]
      %v209 = vld [vmem:[%s1 + $0x78] sm:$0xff]
      %v210 = vld [vmem:[%s1 + $0x80] sm:$0xff]
      %v211 = vld [vmem:[%s1 + $0x88] sm:$0xff]
      %v212 = vld [vmem:[%s1 + $0x90] sm:$0xff]
      %v213 = vld [vmem:[%s1 + $0x98] sm:$0xff]
      %v214 = vld [vmem:[%s1 + $0xa0] sm:$0xff]
      %v215 = vld [vmem:[%s1 + $0xa8] sm:$0xff]
      %v216 = vld [vmem:[%s1 + $0xb0] sm:$0xff]
      %v217 = vld [vmem:[%s1 + $0xb8] sm:$0xff]
      %v218 = vld [vmem:[%s1 + $0xc0] sm:$0xff]
      %v219 = vld [vmem:[%s1 + $0xc8] sm:$0xff]
      %v220 = vld [vmem:[%s1 + $0xd0] sm:$0xff]
      %v221 = vld [vmem:[%s1 + $0xd8] sm:$0xff]
      %v222 = vld [vmem:[%s1 + $0xe0] sm:$0xff]
      %v223 = vld [vmem:[%s1 + $0xe8] sm:$0xff]
      %v224 = vld [vmem:[%s1 + $0xf0] sm:$0xff]
      %v225 = vld [vmem:[%s1 + $0xf8] sm:$0xff]
      %226 = vmatprep.subr.mxu0 %v225
      %227 = vmatpush1.msra.mxu0 %v224
      %228 = vmatprep.subr.mxu0 %v223
      %229 = vmatpush1.msra.mxu0 %v222
      %230 = vmatprep.subr.mxu0 %v221
      %231 = vmatpush1.msra.mxu0 %v220
      %232 = vmatprep.subr.mxu0 %v219
      %233 = vmatpush1.msra.mxu0 %v218
      %234 = vmatprep.subr.mxu0 %v217
      %235 = vmatpush1.msra.mxu0 %v216
      %236 = vmatprep.subr.mxu0 %v215
      %237 = vmatpush1.msra.mxu0 %v214
      %238 = vmatprep.subr.mxu0 %v213
      %239 = vmatpush1.msra.mxu0 %v212
      %240 = vmatprep.subr.mxu0 %v211
      %241 = vmatpush1.msra.mxu0 %v210
      %242 = vmatprep.subr.mxu0 %v209
      %243 = vmatpush1.msra.mxu0 %v208
      %244 = vmatprep.subr.mxu0 %v207
      %245 = vmatpush1.msra.mxu0 %v206
      %246 = vmatprep.subr.mxu0 %v205
      %247 = vmatpush1.msra.mxu0 %v204
      %248 = vmatprep.subr.mxu0 %v203
      %249 = vmatpush1.msra.mxu0 %v202
      %250 = vmatprep.subr.mxu0 %v201
      %251 = vmatpush1.msra.mxu0 %v200
      %252 = vmatprep.subr.mxu0 %v199
      %253 = vmatpush1.msra.mxu0 %v198
      %254 = vmatprep.subr.mxu0 %v197
      %255 = vmatpush1.msra.mxu0 %v196
      %256 = vmatprep.subr.mxu0 %v195
      %257 = vmatpush1.msra.mxu0 %v194
      %258 = vmatprep.subr.mxu0 0.0
      %259 = vmatpush2.msra.mxu0 0.0
      %260 = vmatprep.subr.mxu0 0.0
      %261 = vmatpush2.msra.mxu0 0.0
      %262 = vmatprep.subr.mxu0 0.0
      %263 = vmatpush2.msra.mxu0 0.0
      %264 = vmatprep.subr.mxu0 0.0
      %265 = vmatpush2.msra.mxu0 0.0
      %266 = vmatprep.subr.mxu0 0.0
      %267 = vmatpush2.msra.mxu0 0.0
      %268 = vmatprep.subr.mxu0 0.0
      %269 = vmatpush2.msra.mxu0 0.0
      %270 = vmatprep.subr.mxu0 0.0
      %271 = vmatpush2.msra.mxu0 0.0
      %272 = vmatprep.subr.mxu0 0.0
      %273 = vmatpush2.msra.mxu0 0.0
      %274 = vmatprep.subr.mxu0 0.0
      %275 = vmatpush2.msra.mxu0 0.0
      %276 = vmatprep.subr.mxu0 0.0
      %277 = vmatpush2.msra.mxu0 0.0
      %278 = vmatprep.subr.mxu0 0.0
      %279 = vmatpush2.msra.mxu0 0.0
      %280 = vmatprep.subr.mxu0 0.0
      %281 = vmatpush2.msra.mxu0 0.0
      %282 = vmatprep.subr.mxu0 0.0
      %283 = vmatpush2.msra.mxu0 0.0
      %284 = vmatprep.subr.mxu0 0.0
      %285 = vmatpush2.msra.mxu0 0.0
      %286 = vmatprep.subr.mxu0 0.0
      %287 = vmatpush2.msra.mxu0 0.0
      %288 = vmatprep.subr.mxu0 0.0
      %289 = vmatpush2.msra.mxu0 0.0
      %290 = vmatprep.mubr.f32.mxu0 0.0
      %291 = vmatmul.mubr.f32.gmra.mxu0 %v193
      %v292 = vpop.f32.mrf.mxu0
      %v293 = vadd.f32 0.0, %v292
      %v294 = vpop.f32.mrf.mxu0
      %v295 = vadd.f32 0.0, %v294
      %296 = vdwg.mxu0
      %v297 = vld [vmem:[%s2] sm:$0xff]
      %v298 = vld [vmem:[%s2 + $0x8] sm:$0xff]
      %v299 = vld [vmem:[%s2 + $0x10] sm:$0xff]
      %v300 = vld [vmem:[%s2 + $0x18] sm:$0xff]
      %v301 = vld [vmem:[%s2 + $0x20] sm:$0xff]
      %v302 = vld [vmem:[%s2 + $0x28] sm:$0xff]
      %v303 = vld [vmem:[%s2 + $0x30] sm:$0xff]
      %v304 = vld [vmem:[%s2 + $0x38] sm:$0xff]
      %v305 = vld [vmem:[%s2 + $0x40] sm:$0xff]
      %v306 = vld [vmem:[%s2 + $0x48] sm:$0xff]
      %v307 = vld [vmem:[%s2 + $0x50] sm:$0xff]
      %v308 = vld [vmem:[%s2 + $0x58] sm:$0xff]
      %v309 = vld [vmem:[%s2 + $0x60] sm:$0xff]
      %v310 = vld [vmem:[%s2 + $0x68] sm:$0xff]
      %v311 = vld [vmem:[%s2 + $0x70] sm:$0xff]
      %v312 = vld [vmem:[%s2 + $0x78] sm:$0xff]
      %v313 = vld [vmem:[%s2 + $0x80] sm:$0xff]
      %v314 = vld [vmem:[%s2 + $0x88] sm:$0xff]
      %v315 = vld [vmem:[%s2 + $0x90] sm:$0xff]
      %v316 = vld [vmem:[%s2 + $0x98] sm:$0xff]
      %v317 = vld [vmem:[%s2 + $0xa0] sm:$0xff]
      %v318 = vld [vmem:[%s2 + $0xa8] sm:$0xff]
      %v319 = vld [vmem:[%s2 + $0xb0] sm:$0xff]
      %v320 = vld [vmem:[%s2 + $0xb8] sm:$0xff]
      %v321 = vld [vmem:[%s2 + $0xc0] sm:$0xff]
      %v322 = vld [vmem:[%s2 + $0xc8] sm:$0xff]
      %v323 = vld [vmem:[%s2 + $0xd0] sm:$0xff]
      %v324 = vld [vmem:[%s2 + $0xd8] sm:$0xff]
      %v325 = vld [vmem:[%s2 + $0xe0] sm:$0xff]
      %v326 = vld [vmem:[%s2 + $0xe8] sm:$0xff]
      %v327 = vld [vmem:[%s2 + $0xf0] sm:$0xff]
      %v328 = vld [vmem:[%s2 + $0xf8] sm:$0xff]
      %329 = vmatprep.subr.mxu0 %v328
      %330 = vmatpush1.msra.mxu0 %v327
      %331 = vmatprep.subr.mxu0 %v326
      %332 = vmatpush1.msra.mxu0 %v325
      %333 = vmatprep.subr.mxu0 %v324
      %334 = vmatpush1.msra.mxu0 %v323
      %335 = vmatprep.subr.mxu0 %v322
      %336 = vmatpush1.msra.mxu0 %v321
      %337 = vmatprep.subr.mxu0 %v320
      %338 = vmatpush1.msra.mxu0 %v319
      %339 = vmatprep.subr.mxu0 %v318
      %340 = vmatpush1.msra.mxu0 %v317
      %341 = vmatprep.subr.mxu0 %v316
      %342 = vmatpush1.msra.mxu0 %v315
      %343 = vmatprep.subr.mxu0 %v314
      %344 = vmatpush1.msra.mxu0 %v313
      %345 = vmatprep.subr.mxu0 %v312
      %346 = vmatpush1.msra.mxu0 %v311
      %347 = vmatprep.subr.mxu0 %v310
      %348 = vmatpush1.msra.mxu0 %v309
      %349 = vmatprep.subr.mxu0 %v308
      %350 = vmatpush1.msra.mxu0 %v307
      %351 = vmatprep.subr.mxu0 %v306
      %352 = vmatpush1.msra.mxu0 %v305
      %353 = vmatprep.subr.mxu0 %v304
      %354 = vmatpush1.msra.mxu0 %v303
      %355 = vmatprep.subr.mxu0 %v302
      %356 = vmatpush1.msra.mxu0 %v301
      %357 = vmatprep.subr.mxu0 %v300
      %358 = vmatpush1.msra.mxu0 %v299
      %359 = vmatprep.subr.mxu0 %v298
      %360 = vmatpush1.msra.mxu0 %v297
      %361 = vmatprep.subr.mxu0 0.0
      %362 = vmatpush2.msra.mxu0 0.0
      %363 = vmatprep.subr.mxu0 0.0
      %364 = vmatpush2.msra.mxu0 0.0
      %365 = vmatprep.subr.mxu0 0.0
      %366 = vmatpush2.msra.mxu0 0.0
      %367 = vmatprep.subr.mxu0 0.0
      %368 = vmatpush2.msra.mxu0 0.0
      %369 = vmatprep.subr.mxu0 0.0
      %370 = vmatpush2.msra.mxu0 0.0
      %371 = vmatprep.subr.mxu0 0.0
      %372 = vmatpush2.msra.mxu0 0.0
      %373 = vmatprep.subr.mxu0 0.0
      %374 = vmatpush2.msra.mxu0 0.0
      %375 = vmatprep.subr.mxu0 0.0
      %376 = vmatpush2.msra.mxu0 0.0
      %377 = vmatprep.subr.mxu0 0.0
      %378 = vmatpush2.msra.mxu0 0.0
      %379 = vmatprep.subr.mxu0 0.0
      %380 = vmatpush2.msra.mxu0 0.0
      %381 = vmatprep.subr.mxu0 0.0
      %382 = vmatpush2.msra.mxu0 0.0
      %383 = vmatprep.subr.mxu0 0.0
      %384 = vmatpush2.msra.mxu0 0.0
      %385 = vmatprep.subr.mxu0 0.0
      %386 = vmatpush2.msra.mxu0 0.0
      %387 = vmatprep.subr.mxu0 0.0
      %388 = vmatpush2.msra.mxu0 0.0
      %389 = vmatprep.subr.mxu0 0.0
      %390 = vmatpush2.msra.mxu0 0.0
      %391 = vmatprep.subr.mxu0 0.0
      %392 = vmatpush2.msra.mxu0 0.0
      %393 = vmatprep.mubr.f32.mxu0 0.0
      %394 = vmatmul.mubr.f32.gmra.mxu0 %v193
      %v395 = vpop.f32.mrf.mxu0
      %v396 = vadd.f32 0.0, %v395
      %v397 = vpop.f32.mrf.mxu0
      %v398 = vadd.f32 0.0, %v397
      %399 = vdwg.mxu0
      %v400 = vmul.f32 %v293, 0.5
      %v401 = vmul.f32 %v295, 0.5
      %v402 = vmul.f32 %v293, 0.044715
      %v403 = vmul.f32 %v295, 0.044715
      %v404 = vmul.f32 %v402, %v293
      %v405 = vmul.f32 %v403, %v295
      %v406 = vmul.f32 %v404, %v293
      %v407 = vmul.f32 %v405, %v295
      %v408 = vadd.f32 %v293, %v406
      %v409 = vadd.f32 %v295, %v407
      %v410 = vmul.f32 %v408, 0.7978846
      %v411 = vmul.f32 %v409, 0.7978846
      %v412 = vtanh.pop %v410
      %v413 = vtanh.pop %v411
      %v414 = vadd.f32 %v412, 1.0
      %v415 = vadd.f32 %v413, 1.0
      %v416 = vmul.f32 %v400, %v414
      %v417 = vmul.f32 %v401, %v415
      %v418 = vmul.f32 %v416, %v396
      %v419 = vmul.f32 %v417, %v398
      %v420 = vld [vmem:[%s3] sm:$0xff]
      %v421 = vld [vmem:[%s3 + $0x8] sm:$0xff]
      %v422 = vld [vmem:[%s3 + $0x10] sm:$0xff]
      %v423 = vld [vmem:[%s3 + $0x18] sm:$0xff]
      %v424 = vld [vmem:[%s3 + $0x20] sm:$0xff]
      %v425 = vld [vmem:[%s3 + $0x28] sm:$0xff]
      %v426 = vld [vmem:[%s3 + $0x30] sm:$0xff]
      %v427 = vld [vmem:[%s3 + $0x38] sm:$0xff]
      %v428 = vld [vmem:[%s3 + $0x40] sm:$0xff]
      %v429 = vld [vmem:[%s3 + $0x48] sm:$0xff]
      %v430 = vld [vmem:[%s3 + $0x50] sm:$0xff]
      %v431 = vld [vmem:[%s3 + $0x58] sm:$0xff]
      %v432 = vld [vmem:[%s3 + $0x60] sm:$0xff]
      %v433 = vld [vmem:[%s3 + $0x68] sm:$0xff]
      %v434 = vld [vmem:[%s3 + $0x70] sm:$0xff]
      %v435 = vld [vmem:[%s3 + $0x78] sm:$0xff]
      %v436 = vld [vmem:[%s3 + $0x80] sm:$0xff]
      %v437 = vld [vmem:[%s3 + $0x88] sm:$0xff]
      %v438 = vld [vmem:[%s3 + $0x90] sm:$0xff]
      %v439 = vld [vmem:[%s3 + $0x98] sm:$0xff]
      %v440 = vld [vmem:[%s3 + $0xa0] sm:$0xff]
      %v441 = vld [vmem:[%s3 + $0xa8] sm:$0xff]
      %v442 = vld [vmem:[%s3 + $0xb0] sm:$0xff]
      %v443 = vld [vmem:[%s3 + $0xb8] sm:$0xff]
      %v444 = vld [vmem:[%s3 + $0xc0] sm:$0xff]
      %v445 = vld [vmem:[%s3 + $0xc8] sm:$0xff]
      %v446 = vld [vmem:[%s3 + $0xd0] sm:$0xff]
      %v447 = vld [vmem:[%s3 + $0xd8] sm:$0xff]
      %v448 = vld [vmem:[%s3 + $0xe0] sm:$0xff]
      %v449 = vld [vmem:[%s3 + $0xe8] sm:$0xff]
      %v450 = vld [vmem:[%s3 + $0xf0] sm:$0xff]
      %v451 = vld [vmem:[%s3 + $0xf8] sm:$0xff]
      %452 = vmatprep.subr.mxu0 0.0
      %453 = vmatpush1.msra.mxu0 %v435
      %454 = vmatprep.subr.mxu0 0.0
      %455 = vmatpush1.msra.mxu0 %v434
      %456 = vmatprep.subr.mxu0 0.0
      %457 = vmatpush1.msra.mxu0 %v433
      %458 = vmatprep.subr.mxu0 0.0
      %459 = vmatpush1.msra.mxu0 %v432
      %460 = vmatprep.subr.mxu0 0.0
      %461 = vmatpush1.msra.mxu0 %v431
      %462 = vmatprep.subr.mxu0 0.0
      %463 = vmatpush1.msra.mxu0 %v430
      %464 = vmatprep.subr.mxu0 0.0
      %465 = vmatpush1.msra.mxu0 %v429
      %466 = vmatprep.subr.mxu0 0.0
      %467 = vmatpush1.msra.mxu0 %v428
      %468 = vmatprep.subr.mxu0 0.0
      %469 = vmatpush1.msra.mxu0 %v427
      %470 = vmatprep.subr.mxu0 0.0
      %471 = vmatpush1.msra.mxu0 %v426
      %472 = vmatprep.subr.mxu0 0.0
      %473 = vmatpush1.msra.mxu0 %v425
      %474 = vmatprep.subr.mxu0 0.0
      %475 = vmatpush1.msra.mxu0 %v424
      %476 = vmatprep.subr.mxu0 0.0
      %477 = vmatpush1.msra.mxu0 %v423
      %478 = vmatprep.subr.mxu0 0.0
      %479 = vmatpush1.msra.mxu0 %v422
      %480 = vmatprep.subr.mxu0 0.0
      %481 = vmatpush1.msra.mxu0 %v421
      %482 = vmatprep.subr.mxu0 0.0
      %483 = vmatpush1.msra.mxu0 %v420
      %484 = vmatprep.subr.mxu0 0.0
      %485 = vmatpush2.msra.mxu0 %v451
      %486 = vmatprep.subr.mxu0 0.0
      %487 = vmatpush2.msra.mxu0 %v450
      %488 = vmatprep.subr.mxu0 0.0
      %489 = vmatpush2.msra.mxu0 %v449
      %490 = vmatprep.subr.mxu0 0.0
      %491 = vmatpush2.msra.mxu0 %v448
      %492 = vmatprep.subr.mxu0 0.0
      %493 = vmatpush2.msra.mxu0 %v447
      %494 = vmatprep.subr.mxu0 0.0
      %495 = vmatpush2.msra.mxu0 %v446
      %496 = vmatprep.subr.mxu0 0.0
      %497 = vmatpush2.msra.mxu0 %v445
      %498 = vmatprep.subr.mxu0 0.0
      %499 = vmatpush2.msra.mxu0 %v444
      %500 = vmatprep.subr.mxu0 0.0
      %501 = vmatpush2.msra.mxu0 %v443
      %502 = vmatprep.subr.mxu0 0.0
      %503 = vmatpush2.msra.mxu0 %v442
      %504 = vmatprep.subr.mxu0 0.0
      %505 = vmatpush2.msra.mxu0 %v441
      %506 = vmatprep.subr.mxu0 0.0
      %507 = vmatpush2.msra.mxu0 %v440
      %508 = vmatprep.subr.mxu0 0.0
      %509 = vmatpush2.msra.mxu0 %v439
      %510 = vmatprep.subr.mxu0 0.0
      %511 = vmatpush2.msra.mxu0 %v438
      %512 = vmatprep.subr.mxu0 0.0
      %513 = vmatpush2.msra.mxu0 %v437
      %514 = vmatprep.subr.mxu0 0.0
      %515 = vmatpush2.msra.mxu0 %v436
      %516 = vmatprep.mubr.f32.mxu0 %v419
      %517 = vmatmul.mubr.f32.gmra.mxu0 %v418
      %v518 = vpop.f32.mrf.mxu0
      %v519 = vadd.f32 0.0, %v518
      %v520 = vpop.f32.mrf.mxu0
      %521 = vdwg.mxu0
      %522 = vst [vmem:[%s192] sm:$0xff] %v519
      %p523 = scmp.lt.s32.totalorder %s15, 1
      %s524 = scalar_select %p523, %s15, 1
      %s525 = smul.addr %s524, 8
      %s526 = scalar_lea.vmem %s4, %s525
      // Predicated region
      $region37: #{fwd.27} parent=35 // pred_check
        %p527 = pneg %p122
      $region38: #{fwd.27} parent=35 // pred_check_branch
        %529 = sbr.rel (%p527) target = $region40
      $region39: #{fwd.27} parent=35 // pred_region
        _
      $region40: #{fwd.27} parent=35 // pred_fallthru
        _
    $region36: #{fwd.27} parent=5 // pred_fallthru
      _
    %p530 = scmp.le.s32.totalorder 2, %s10
    // Predicated region
    $region41: #{fwd.27} parent=5 // pred_check
      %p531 = pneg %p530
    $region42: #{fwd.27} parent=5 // pred_check_branch
      %533 = sbr.rel (%p531) target = $region44
    $region43: #{fwd.27} parent=5 // pred_region
      %s534 = ssub.s32 %s10, 2
      // Predicated region
      $region45: #{fwd.27} parent=43 // pred_check
        %p535 = pneg %p128
      $region46: #{fwd.27} parent=43 // pred_check_branch
        %537 = sbr.rel (%p535) target = $region48
      $region47: #{fwd.27} parent=43 // pred_region
        %p538 = scmp.lt.s32.totalorder %s16, 1
        %s539 = scalar_select %p538, %s16, 1
        %s540 = smul.addr %s539, 8
        %s541 = scalar_lea.vmem %s4, %s540
      $region48: #{fwd.27} parent=43 // pred_fallthru
        _
    $region44: #{fwd.27} parent=5 // pred_fallthru
      _
  $region6: #{fwd.27} parent=0 // loop_footer
    %s14 = sadd.s32 1, %s10
  $region7: #{fwd.27} parent=0 // loop_footer_branch
    %9 = sbr.rel target = $region3
  $region8: #{fwd.27} parent=0 // loop_exit
    _

// kernel: fwd.24
$region0: #{fwd.24}
  #allocation0 [shape = 'u32[]', space=smem, size = 0x4, offset = 0x4, fixed_abs, tag = 'smem constant byte address 0x4 - core index']
  #allocation1 [shape = 'u32[144,128]{1,0:T(1,128)}', space=vmem, size = 0x12000, scoped, tag = 'internal scratch']
  %s0 = inlined_call_operand.vmem [shape: s32[2,8,1], index: 0, kind: input, shape index: {}]
  %s1 = inlined_call_operand.vmem [shape: f32[1,16], index: 1, kind: input, shape index: {}]
  %s2 = inlined_call_operand.vmem [shape: f32[2,8,128], index: 2, kind: input, shape index: {}]
  %s3 = inlined_call_operand.vmem [shape: f32[2,8,64], index: 3, kind: input, shape index: {}]
  %s4 = inlined_call_operand.vmem [shape: f32[2,8,64], index: 4, kind: input, shape index: {}]
  %s5 = inlined_call_operand.vmem [shape: f32[2,1,8,8], index: 5, kind: input, shape index: {}]
  %s6 = inlined_call_operand.vmem [shape: f32[2,8,128], index: 6, kind: output, shape index: {}]
  %s7 = sld [smem:[#allocation0]]
  $region57: #{fwd.24} parent=0
    _
  %s9 = ssub.s32 1, %s7
  %s10 = scalar_select 0, %s9, %s7
  loop: start=0, step=1, limit=4
  $region2: #{fwd.24} parent=0 // loop_pre_header
    _
  $region3: #{fwd.24} parent=0 // loop_header
    %s12 = sphi 0, %s16
    %p13 = scmp.ge.s32.totalorder %s12, 4
    %s22 = sphi 0, %s24
    %s25 = sphi 0, %s22
    %s26 = sphi 0, %s25
    %s42 = sphi 0, %s26
    %s46 = sphi 0, %s46
    %s48 = sphi 0, %s46
    %s49 = sphi 0, %s48
    %s63 = sphi 0, %s49
    %s69 = sphi 0, %s71
    %s72 = sphi 0, %s69
    %s73 = sphi 0, %s72
    %s89 = sphi 0, %s73
    %s95 = sphi 0, %s97
    %s98 = sphi 0, %s95
    %s99 = sphi 0, %s98
    %s115 = sphi 0, %s99
    %s121 = sphi 0, %s123
    %s124 = sphi 0, %s121
    %s125 = sphi 0, %s124
    %s141 = sphi 0, %s125
    %s147 = sphi 0, %s149
    %s150 = sphi 0, %s147
    %s151 = sphi 0, %s150
    %s167 = sphi 0, %s151
    %s173 = sphi 0, %s175
    %s176 = sphi 0, %s173
    %s177 = sphi 0, %s176
    %s193 = sphi 0, %s177
  $region4: #{fwd.24} parent=0 // loop_header_branch
    %15 = sbr.rel (%p13) target = $region8
  $region5: #{fwd.24} parent=0 // loop_body
    %s17 = ssub.s32 %s12, 1
    %s18 = ssub.s32 %s12, 2
    %s19 = sadd.s32 %s12, 1
    %s20 = ssub.s32 %s12, %s19
    %p21 = scmp.eq.s32.totalorder %s20, 0
    %s23 = sadd.s32 %s22, 1
    %s24 = scalar_select %p21, %s22, %s23
    %p27 = pneg %p21
    %p28 = scmp.eq.s32.totalorder %s12, 1
    %p29 = por %p27, %p28
    %p30 = scmp.ne.s32.totalorder %s22, %s25
    %p31 = scmp.eq.s32.totalorder %s12, 0
    %p32 = por %p30, %p31
    %p33 = scmp.ne.s32.totalorder %s22, %s25
    %p34 = scmp.eq.s32.totalorder %s17, 1
    %p35 = por %p33, %p34
    %p36 = scmp.ne.s32.totalorder %s25, %s26
    %p37 = scmp.eq.s32.totalorder %s17, 0
    %p38 = por %p36, %p37
    %p39 = scmp.ne.s32.totalorder %s25, %s26
    %p40 = scmp.eq.s32.totalorder %s18, 1
    %p41 = por %p39, %p40
    %p43 = scmp.ne.s32.totalorder %s26, %s42
    %p44 = scmp.eq.s32.totalorder %s18, 0
    %p45 = por %p43, %p44
    %s47 = sadd.s32 %s46, 1
    %p50 = scmp.eq.s32.totalorder %s12, 1
    %p51 = scmp.ne.s32.totalorder %s46, %s48
    %p52 = scmp.eq.s32.totalorder %s12, 0
    %p53 = por %p51, %p52
    %p54 = scmp.ne.s32.totalorder %s46, %s48
    %p55 = scmp.eq.s32.totalorder %s17, 1
    %p56 = por %p54, %p55
    %p57 = scmp.ne.s32.totalorder %s48, %s49
    %p58 = scmp.eq.s32.totalorder %s17, 0
    %p59 = por %p57, %p58
    %p60 = scmp.ne.s32.totalorder %s48, %s49
    %p61 = scmp.eq.s32.totalorder %s18, 1
    %p62 = por %p60, %p61
    %p64 = scmp.ne.s32.totalorder %s49, %s63
    %p65 = scmp.eq.s32.totalorder %s18, 0
    %p66 = por %p64, %p65
    %s67 = ssub.s32 %s12, %s19
    %p68 = scmp.eq.s32.totalorder %s67, 0
    %s70 = sadd.s32 %s69, 1
    %s71 = scalar_select %p68, %s69, %s70
    %p74 = pneg %p68
    %p75 = scmp.eq.s32.totalorder %s12, 1
    %p76 = por %p74, %p75
    %p77 = scmp.ne.s32.totalorder %s69, %s72
    %p78 = scmp.eq.s32.totalorder %s12, 0
    %p79 = por %p77, %p78
    %p80 = scmp.ne.s32.totalorder %s69, %s72
    %p81 = scmp.eq.s32.totalorder %s17, 1
    %p82 = por %p80, %p81
    %p83 = scmp.ne.s32.totalorder %s72, %s73
    %p84 = scmp.eq.s32.totalorder %s17, 0
    %p85 = por %p83, %p84
    %p86 = scmp.ne.s32.totalorder %s72, %s73
    %p87 = scmp.eq.s32.totalorder %s18, 1
    %p88 = por %p86, %p87
    %p90 = scmp.ne.s32.totalorder %s73, %s89
    %p91 = scmp.eq.s32.totalorder %s18, 0
    %p92 = por %p90, %p91
    %s93 = ssub.s32 %s12, %s19
    %p94 = scmp.eq.s32.totalorder %s93, 0
    %s96 = sadd.s32 %s95, 1
    %s97 = scalar_select %p94, %s95, %s96
    %p100 = pneg %p94
    %p101 = scmp.eq.s32.totalorder %s12, 1
    %p102 = por %p100, %p101
    %p103 = scmp.ne.s32.totalorder %s95, %s98
    %p104 = scmp.eq.s32.totalorder %s12, 0
    %p105 = por %p103, %p104
    %p106 = scmp.ne.s32.totalorder %s95, %s98
    %p107 = scmp.eq.s32.totalorder %s17, 1
    %p108 = por %p106, %p107
    %p109 = scmp.ne.s32.totalorder %s98, %s99
    %p110 = scmp.eq.s32.totalorder %s17, 0
    %p111 = por %p109, %p110
    %p112 = scmp.ne.s32.totalorder %s98, %s99
    %p113 = scmp.eq.s32.totalorder %s18, 1
    %p114 = por %p112, %p113
    %p116 = scmp.ne.s32.totalorder %s99, %s115
    %p117 = scmp.eq.s32.totalorder %s18, 0
    %p118 = por %p116, %p117
    %s119 = ssub.s32 %s12, %s19
    %p120 = scmp.eq.s32.totalorder %s119, 0
    %s122 = sadd.s32 %s121, 1
    %s123 = scalar_select %p120, %s121, %s122
    %p126 = pneg %p120
    %p127 = scmp.eq.s32.totalorder %s12, 1
    %p128 = por %p126, %p127
    %p129 = scmp.ne.s32.totalorder %s121, %s124
    %p130 = scmp.eq.s32.totalorder %s12, 0
    %p131 = por %p129, %p130
    %p132 = scmp.ne.s32.totalorder %s121, %s124
    %p133 = scmp.eq.s32.totalorder %s17, 1
    %p134 = por %p132, %p133
    %p135 = scmp.ne.s32.totalorder %s124, %s125
    %p136 = scmp.eq.s32.totalorder %s17, 0
    %p137 = por %p135, %p136
    %p138 = scmp.ne.s32.totalorder %s124, %s125
    %p139 = scmp.eq.s32.totalorder %s18, 1
    %p140 = por %p138, %p139
    %p142 = scmp.ne.s32.totalorder %s125, %s141
    %p143 = scmp.eq.s32.totalorder %s18, 0
    %p144 = por %p142, %p143
    %s145 = ssub.s32 %s12, %s19
    %p146 = scmp.eq.s32.totalorder %s145, 0
    %s148 = sadd.s32 %s147, 1
    %s149 = scalar_select %p146, %s147, %s148
    %p152 = pneg %p146
    %p153 = scmp.eq.s32.totalorder %s12, 1
    %p154 = por %p152, %p153
    %p155 = scmp.ne.s32.totalorder %s147, %s150
    %p156 = scmp.eq.s32.totalorder %s12, 0
    %p157 = por %p155, %p156
    %p158 = scmp.ne.s32.totalorder %s147, %s150
    %p159 = scmp.eq.s32.totalorder %s17, 1
    %p160 = por %p158, %p159
    %p161 = scmp.ne.s32.totalorder %s150, %s151
    %p162 = scmp.eq.s32.totalorder %s17, 0
    %p163 = por %p161, %p162
    %p164 = scmp.ne.s32.totalorder %s150, %s151
    %p165 = scmp.eq.s32.totalorder %s18, 1
    %p166 = por %p164, %p165
    %p168 = scmp.ne.s32.totalorder %s151, %s167
    %p169 = scmp.eq.s32.totalorder %s18, 0
    %p170 = por %p168, %p169
    %s171 = ssub.s32 %s12, %s19
    %p172 = scmp.eq.s32.totalorder %s171, 0
    %s174 = sadd.s32 %s173, 1
    %s175 = scalar_select %p172, %s173, %s174
    %p178 = pneg %p172
    %p179 = scmp.eq.s32.totalorder %s12, 1
    %p180 = por %p178, %p179
    %p181 = scmp.ne.s32.totalorder %s173, %s176
    %p182 = scmp.eq.s32.totalorder %s12, 0
    %p183 = por %p181, %p182
    %p184 = scmp.ne.s32.totalorder %s173, %s176
    %p185 = scmp.eq.s32.totalorder %s17, 1
    %p186 = por %p184, %p185
    %p187 = scmp.ne.s32.totalorder %s176, %s177
    %p188 = scmp.eq.s32.totalorder %s17, 0
    %p189 = por %p187, %p188
    %p190 = scmp.ne.s32.totalorder %s176, %s177
    %p191 = scmp.eq.s32.totalorder %s18, 1
    %p192 = por %p190, %p191
    %p194 = scmp.ne.s32.totalorder %s177, %s193
    %p195 = scmp.eq.s32.totalorder %s18, 0
    %p196 = por %p194, %p195
    %p197 = scmp.le.s32.totalorder 1, %s12
    %p198 = scmp.lt.s32.totalorder %s12, 3
    %p199 = pnand %p197, %p198
    %p200 = pneg %p199
    // Predicated region
    $region9: #{fwd.24} parent=5 // pred_check
      _
    $region10: #{fwd.24} parent=5 // pred_check_branch
      %202 = sbr.rel (%p199) target = $region12
    $region11: #{fwd.24} parent=5 // pred_region
      %s203 = ssub.s32 %s12, 1
      // Predicated region
      $region13: #{fwd.24} parent=11 // pred_check
        %p204 = pneg %p59
      $region14: #{fwd.24} parent=11 // pred_check_branch
        %206 = sbr.rel (%p204) target = $region16
      $region15: #{fwd.24} parent=11 // pred_region
        _
      $region16: #{fwd.24} parent=11 // pred_fallthru
        _
    $region12: #{fwd.24} parent=5 // pred_fallthru
      _
    %p207 = scmp.lt.s32.totalorder %s12, 2
    // Predicated region
    $region17: #{fwd.24} parent=5 // pred_check
      %p208 = pneg %p207
    $region18: #{fwd.24} parent=5 // pred_check_branch
      %210 = sbr.rel (%p208) target = $region20
    $region19: #{fwd.24} parent=5 // pred_region
      // Predicated region
      $region21: #{fwd.24} parent=19 // pred_check
        %p211 = pneg %p32
      $region22: #{fwd.24} parent=19 // pred_check_branch
        %213 = sbr.rel (%p211) target = $region24
      $region23: #{fwd.24} parent=19 // pred_region
        %p214 = scmp.lt.s32.totalorder %s12, 1
        %s215 = scalar_select %p214, %s12, 1
        %s216 = smul.addr %s215, 8
        %s217 = scalar_lea.vmem %s0, %s216
      $region24: #{fwd.24} parent=19 // pred_fallthru
        _
      // Predicated region
      $region25: #{fwd.24} parent=19 // pred_check
        %p218 = pneg %p79
      $region26: #{fwd.24} parent=19 // pred_check_branch
        %220 = sbr.rel (%p218) target = $region28
      $region27: #{fwd.24} parent=19 // pred_region
        %p221 = scmp.lt.s32.totalorder %s12, 1
        %s222 = scalar_select %p221, %s12, 1
        %s223 = smul.addr %s222, 8
        %s224 = scalar_lea.vmem %s2, %s223
      $region28: #{fwd.24} parent=19 // pred_fallthru
        _
      // Predicated region
      $region29: #{fwd.24} parent=19 // pred_check
        %p225 = pneg %p105
      $region30: #{fwd.24} parent=19 // pred_check_branch
        %227 = sbr.rel (%p225) target = $region32
      $region31: #{fwd.24} parent=19 // pred_region
        %p228 = scmp.lt.s32.totalorder %s12, 1
        %s229 = scalar_select %p228, %s12, 1
        %s230 = smul.addr %s229, 8
        %s231 = scalar_lea.vmem %s3, %s230
      $region32: #{fwd.24} parent=19 // pred_fallthru
        _
      // Predicated region
      $region33: #{fwd.24} parent=19 // pred_check
        %p232 = pneg %p131
      $region34: #{fwd.24} parent=19 // pred_check_branch
        %234 = sbr.rel (%p232) target = $region36
      $region35: #{fwd.24} parent=19 // pred_region
        %p235 = scmp.lt.s32.totalorder %s12, 1
        %s236 = scalar_select %p235, %s12, 1
        %s237 = smul.addr %s236, 8
        %s238 = scalar_lea.vmem %s4, %s237
      $region36: #{fwd.24} parent=19 // pred_fallthru
        _
      // Predicated region
      $region37: #{fwd.24} parent=19 // pred_check
        %p239 = pneg %p157
      $region38: #{fwd.24} parent=19 // pred_check_branch
        %241 = sbr.rel (%p239) target = $region40
      $region39: #{fwd.24} parent=19 // pred_region
        %p242 = scmp.lt.s32.totalorder %s12, 1
        %s243 = scalar_select %p242, %s12, 1
        %s244 = smul.addr %s243, 8
        %s245 = scalar_lea.vmem %s5, %s244
      $region40: #{fwd.24} parent=19 // pred_fallthru
        _
    $region20: #{fwd.24} parent=5 // pred_fallthru
      _
    %p246 = scmp.le.s32.totalorder 1, %s12
    %p247 = scmp.lt.s32.totalorder %s12, 3
    %p248 = pnand %p246, %p247
    %p249 = pneg %p248
    // Predicated region
    $region41: #{fwd.24} parent=5 // pred_check
      _
    $region42: #{fwd.24} parent=5 // pred_check_branch
      %251 = sbr.rel (%p248) target = $region44
    $region43: #{fwd.24} parent=5 // pred_region
      %s252 = ssub.s32 %s12, 1
      %p253 = scmp.lt.s32.totalorder %s17, 1
      %s254 = scalar_select %p253, %s17, 1
      %s255 = smul.addr %s254, 8
      %s256 = scalar_lea.vmem %s0, %s255
      %p257 = pneg %p38
      %p258 = pneg %p35
      %p259 = pneg %p59
      %p260 = pneg %p56
      %p261 = scmp.lt.s32.totalorder %s17, 1
      %s262 = scalar_select %p261, %s17, 1
      %s263 = smul.addr %s262, 8
      %s264 = scalar_lea.vmem %s2, %s263
      %p265 = pneg %p85
      %p266 = pneg %p82
      %p267 = scmp.lt.s32.totalorder %s17, 1
      %s268 = scalar_select %p267, %s17, 1
      %s269 = smul.addr %s268, 8
      %s270 = scalar_lea.vmem %s3, %s269
      %p271 = pneg %p111
      %p272 = pneg %p108
      %p273 = scmp.lt.s32.totalorder %s17, 1
      %s274 = scalar_select %p273, %s17, 1
      %s275 = smul.addr %s274, 8
      %s276 = scalar_lea.vmem %s4, %s275
      %p277 = pneg %p137
      %p278 = pneg %p134
      %p279 = scmp.lt.s32.totalorder %s17, 1
      %s280 = scalar_select %p279, %s17, 1
      %s281 = smul.addr %s280, 8
      %s282 = scalar_lea.vmem %s5, %s281
      %p283 = pneg %p163
      %p284 = pneg %p160
      %p285 = pneg %p189
      %p286 = pneg %p186
      %p287 = scmp.lt.s32.totalorder %s17, 1
      %s288 = scalar_select %p287, %s17, 1
      %s289 = smul.addr %s288, 8
      %s290 = scalar_lea.vmem %s6, %s289
      %p291 = scmp.lt.s32.totalorder %s17, 1
      %s292 = scalar_select %p291, %s17, 1
      %s293 = smul.addr %s292, 8
      %s294 = scalar_lea.vmem %s0, %s293
      %p295 = scmp.lt.s32.totalorder %s17, 1
      %s296 = scalar_select %p295, %s17, 1
      %s297 = smul.addr %s296, 8
      %s298 = scalar_lea.vmem %s2, %s297
      %p299 = scmp.lt.s32.totalorder %s17, 1
      %s300 = scalar_select %p299, %s17, 1
      %s301 = smul.addr %s300, 8
      %s302 = scalar_lea.vmem %s3, %s301
      %p303 = scmp.lt.s32.totalorder %s17, 1
      %s304 = scalar_select %p303, %s17, 1
      %s305 = smul.addr %s304, 8
      %s306 = scalar_lea.vmem %s4, %s305
      %p307 = scmp.lt.s32.totalorder %s17, 1
      %s308 = scalar_select %p307, %s17, 1
      %s309 = smul.addr %s308, 8
      %s310 = scalar_lea.vmem %s5, %s309
      %p311 = scmp.lt.s32.totalorder %s17, 1
      %s312 = scalar_select %p311, %s17, 1
      %s313 = smul.addr %s312, 8
      %s314 = scalar_lea.vmem %s6, %s313
      %v315 = vld [vmem:[%s294] sm:$0xff]
      %v316 = vcvt.s32.f32 %v315
      %v317 = vld [vmem:[%s1] sm:$0x1]
      %319 = vset.pattern.permute.xlu0 0
      %320 = vperm.xlu0 %319, %v316
      %v321 = vpop.permute.xlu0 %320
      %v324 = vlaneseq
      %v325 = vshrl.u32 %v324, 7
      %v326 = vsub.s32 0, %v325
      %v327 = vrot.slane %v317, %v326
      %v329 = vmul.f32 %v321, %v327
      %v330 = vand.u32 2147483647, %v329
      %vm331 = vcmp.le.f32.partialorder %v330, 0.7853982
      %vm332 = vcmp.lt.s32.totalorder %v329, 0
      %v333 = vand.u32 %v329, 2139095040
      %v334 = vshrl.u32 %v333, 23
      %v335 = vsub.s32 %v334, 127
      %v336 = vand.u32 2147483647, %v329
      %v337 = vand.u32 %v336, 8388607
      %v338 = vor.u32 %v337, 8388608
      %v339 = vsub.s32 0, %v338
      %v340 = vadd.s32 %v335, 1
      %vm341 = vcmp.gt.s32.totalorder %v340, 0
      %v342 = vsel %vm341, %v340, 0
      %v343 = vshrl.u32 %v342, 5
      %v344 = vand.u32 %v342, 31
      %v345 = vsub.s32 32, %v344
      %v346 = vshrl.u32 683565275, %v345
      %v347 = vshll.u32 683565275, %v344
      %v348 = vshrl.u32 2475754826, %v345
      %v349 = vor.u32 %v347, %v348
      %v350 = vshll.u32 2475754826, %v344
      %v351 = vshrl.u32 2131351028, %v345
      %v352 = vor.u32 %v350, %v351
      %v353 = vshll.u32 2131351028, %v344
      %v354 = vshrl.u32 2102212464, %v345
      %v355 = vor.u32 %v353, %v354
      %v356 = vshll.u32 2102212464, %v344
      %v357 = vshrl.u32 920167782, %v345
      %v358 = vor.u32 %v356, %v357
      %v359 = vshll.u32 920167782, %v344
      %v360 = vshrl.u32 1326507024, %v345
      %v361 = vor.u32 %v359, %v360
      %vm362 = vcmp.lt.s32.totalorder %v343, 1
      %vm363 = vcmp.lt.s32.totalorder %v343, 2
      %vm364 = vcmp.lt.s32.totalorder %v343, 3
      %vm365 = vcmp.lt.s32.totalorder %v343, 4
      %v366 = vsel %vm362, %v346, %v349
      %v367 = vsel %vm365, %v355, 2102212464
      %v368 = vsel %vm364, %v352, %v367
      %v369 = vsel %vm363, %v366, %v368
      %v370 = vsel %vm362, %v349, %v352
      %v371 = vsel %vm365, %v358, 920167782
      %v372 = vsel %vm364, %v355, %v371
      %v373 = vsel %vm363, %v370, %v372
      %v374 = vsel %vm362, %v352, %v355
      %v375 = vsel %vm365, %v361, 1326507024
      %v376 = vsel %vm364, %v358, %v375
      %v377 = vsel %vm363, %v374, %v376
      %v378 = vshll.u32 %v338, 8
      %v379 = vmul.u32.u64.compose %v378, %v377
      %v380 = vextract.low.u32 %v379
      %v381 = vextract.high.u32 %v379
      %v382 = vmul.u32.u64.compose %v378, %v373
      %v383 = vextract.low.u32 %v382
      %v384 = vextract.high.u32 %v382
      %v385 = vmul.u32 %v378, %v369
      %v386 = vadd.s32 %v381, %v383
      %vm387 = vc.u32 %v381, %v383
      %v388 = vadd.s32 %v384, 1
      %v389 = vsel %vm387, %v388, %v384
      %v390 = vadd.s32 %v385, %v389
      %v391 = vadd.s32 %v390, 536870912
      %v392 = vshrl.u32 %v391, 30
      %v393 = vshll.u32 %v392, 30
      %v394 = vsub.s32 %v390, %v393
      %vm395 = vcmp.lt.s32.totalorder %v394, 0
      %v396 = vsub.s32 0, %v394
      %v397 = vsel %vm395, %v396, %v394
      %v398 = vclz %v397
      %v399 = vsub.s32 %v398, 2
      %vm400 = vcmp.gt.s32.totalorder 0, %v399
      %v401 = vsel %vm400, 0, %v399
      %v402 = vsub.s32 32, %v401
      %v403 = vshll.u32 %v394, %v401
      %v404 = vshrl.u32 %v386, %v402
      %v405 = vor.u32 %v403, %v404
      %v406 = vsub.s32 4294967266, %v401
      %v407 = vadd.s32 %v406, 127
      %v408 = vshll.u32 %v407, 23
      %v409 = vor.u32 4788187, %v408
      %v410 = vand.u32 2147483647, %v409
      %v412 = vcvt.s32.f32 %v405
      %v413 = vmul.f32 %v412, %v410
      %v414 = vxor.u32 %v413, 2147483648
      %v415 = vsel %vm332, %v414, %v413
      %v416 = vsub.s32 4, %v392
      %v417 = vsel %vm332, %v416, %v392
      %v418 = vsel %vm331, %v329, %v415
      %v419 = vsel %vm331, 0, %v417
      %v420 = vcosq.f32.pop %v418
      %v421 = vsinq.f32.pop %v418
      %vm422 = vweird.f32 %v329
      %v423 = vand.u32 %v419, 3
      %vm424 = vcmp.lt.s32.totalorder %v423, 2
      %vm425 = vcmp.eq.s32.totalorder %v423, 0
      %v426 = vxor.u32 %v421, 2147483648
      %v427 = vsel %vm425, %v420, %v426
      %vm428 = vcmp.eq.s32.totalorder %v423, 2
      %v429 = vxor.u32 %v420, 2147483648
      %v430 = vsel %vm428, %v429, %v421
      %v431 = vsel %vm424, %v427, %v430
      %v432 = vsel %vm422, nan, %v431
      %v433 = vand.u32 2147483647, %v329
      %vm434 = vcmp.le.f32.partialorder %v433, 0.7853982
      %vm435 = vcmp.lt.s32.totalorder %v329, 0
      %v436 = vand.u32 %v329, 2139095040
      %v437 = vshrl.u32 %v436, 23
      %v438 = vsub.s32 %v437, 127
      %v439 = vand.u32 2147483647, %v329
      %v440 = vand.u32 %v439, 8388607
      %v441 = vor.u32 %v440, 8388608
      %v442 = vsub.s32 0, %v441
      %v443 = vadd.s32 %v438, 1
      %vm444 = vcmp.gt.s32.totalorder %v443, 0
      %v445 = vsel %vm444, %v443, 0
      %v446 = vshrl.u32 %v445, 5
      %v447 = vand.u32 %v445, 31
      %v448 = vsub.s32 32, %v447
      %v449 = vshrl.u32 683565275, %v448
      %v450 = vshll.u32 683565275, %v447
      %v451 = vshrl.u32 2475754826, %v448
      %v452 = vor.u32 %v450, %v451
      %v453 = vshll.u32 2475754826, %v447
      %v454 = vshrl.u32 2131351028, %v448
      %v455 = vor.u32 %v453, %v454
      %v456 = vshll.u32 2131351028, %v447
      %v457 = vshrl.u32 2102212464, %v448
      %v458 = vor.u32 %v456, %v457
      %v459 = vshll.u32 2102212464, %v447
      %v460 = vshrl.u32 920167782, %v448
      %v461 = vor.u32 %v459, %v460
      %v462 = vshll.u32 920167782, %v447
      %v463 = vshrl.u32 1326507024, %v448
      %v464 = vor.u32 %v462, %v463
      %vm465 = vcmp.lt.s32.totalorder %v446, 1
      %vm466 = vcmp.lt.s32.totalorder %v446, 2
      %vm467 = vcmp.lt.s32.totalorder %v446, 3
      %vm468 = vcmp.lt.s32.totalorder %v446, 4
      %v469 = vsel %vm465, %v449, %v452
      %v470 = vsel %vm468, %v458, 2102212464
      %v471 = vsel %vm467, %v455, %v470
      %v472 = vsel %vm466, %v469, %v471
      %v473 = vsel %vm465, %v452, %v455
      %v474 = vsel %vm468, %v461, 920167782
      %v475 = vsel %vm467, %v458, %v474
      %v476 = vsel %vm466, %v473, %v475
      %v477 = vsel %vm465, %v455, %v458
      %v478 = vsel %vm468, %v464, 1326507024
      %v479 = vsel %vm467, %v461, %v478
      %v480 = vsel %vm466, %v477, %v479
      %v481 = vshll.u32 %v441, 8
      %v482 = vmul.u32.u64.compose %v481, %v480
      %v483 = vextract.low.u32 %v482
      %v484 = vextract.high.u32 %v482
      %v485 = vmul.u32.u64.compose %v481, %v476
      %v486 = vextract.low.u32 %v485
      %v487 = vextract.high.u32 %v485
      %v488 = vmul.u32 %v481, %v472
      %v489 = vadd.s32 %v484, %v486
      %vm490 = vc.u32 %v484, %v486
      %v491 = vadd.s32 %v487, 1
      %v492 = vsel %vm490, %v491, %v487
      %v493 = vadd.s32 %v488, %v492
      %v494 = vadd.s32 %v493, 536870912
      %v495 = vshrl.u32 %v494, 30
      %v496 = vshll.u32 %v495, 30
      %v497 = vsub.s32 %v493, %v496
      %vm498 = vcmp.lt.s32.totalorder %v497, 0
      %v499 = vsub.s32 0, %v497
      %v500 = vsel %vm498, %v499, %v497
      %v501 = vclz %v500
      %v502 = vsub.s32 %v501, 2
      %vm503 = vcmp.gt.s32.totalorder 0, %v502
      %v504 = vsel %vm503, 0, %v502
      %v505 = vsub.s32 32, %v504
      %v506 = vshll.u32 %v497, %v504
      %v507 = vshrl.u32 %v489, %v505
      %v508 = vor.u32 %v506, %v507
      %v509 = vsub.s32 4294967266, %v504
      %v510 = vadd.s32 %v509, 127
      %v511 = vshll.u32 %v510, 23
      %v512 = vor.u32 4788187, %v511
      %v513 = vand.u32 2147483647, %v512
      %v515 = vcvt.s32.f32 %v508
      %v516 = vmul.f32 %v515, %v513
      %v517 = vxor.u32 %v516, 2147483648
      %v518 = vsel %vm435, %v517, %v516
      %v519 = vsub.s32 4, %v495
      %v520 = vsel %vm435, %v519, %v495
      %v521 = vsel %vm434, %v329, %v518
      %v522 = vsel %vm434, 0, %v520
      %v523 = vcosq.f32.pop %v521
      %v524 = vsinq.f32.pop %v521
      %vm525 = vweird.f32 %v329
      %v526 = vadd.s32 %v522, 3
      %v527 = vand.u32 %v526, 3
      %vm528 = vcmp.lt.s32.totalorder %v527, 2
      %vm529 = vcmp.eq.s32.totalorder %v527, 0
      %v530 = vxor.u32 %v524, 2147483648
      %v531 = vsel %vm529, %v523, %v530
      %vm532 = vcmp.eq.s32.totalorder %v527, 2
      %v533 = vxor.u32 %v523, 2147483648
      %v534 = vsel %vm532, %v533, %v524
      %v535 = vsel %vm528, %v531, %v534
      %v536 = vsel %vm525, nan, %v535
      %v537 = vld [vmem:[%s310] sm:$0xff]
      %v538 = vld [vmem:[%s298] sm:$0xff]
      %v539 = vld [vmem:[%s302] sm:$0xff]
      %v540 = vld [vmem:[%s306] sm:$0xff]
      %v541 = vmul.f32 %v539, %v432
      %543 = vrot.lane.b32.xlu0 %v536, 16
      %v544 = vpop.permute.xlu0 %543
      %v546 = vmul.f32 %v539, %v544
      %548 = vrot.lane.b32.xlu0 %v546, 112
      %v549 = vpop.permute.xlu0 %548
      %v551 = vsub.f32 %v541, %v549
      %553 = vrot.lane.b32.xlu0 %v432, 16
      %v554 = vpop.permute.xlu0 %553
      %v556 = vmul.f32 %v539, %v554
      %v557 = vmul.f32 %v539, %v536
      %559 = vrot.lane.b32.xlu0 %v557, 16
      %v560 = vpop.permute.xlu0 %559
      %v562 = vadd.f32 %v556, %v560
      %vm563 = vcmask 130048
      %v564 = vsel %vm563, %v551, %v562
      %565 = vrot.lane.b32.xlu0 %v432, 32
      %v566 = vpop.permute.xlu0 %565
      %v568 = vmul.f32 %v539, %v566
      %569 = vrot.lane.b32.xlu0 %v536, 48
      %v570 = vpop.permute.xlu0 %569
      %v572 = vmul.f32 %v539, %v570
      %574 = vrot.lane.b32.xlu0 %v572, 112
      %v575 = vpop.permute.xlu0 %574
      %v577 = vsub.f32 %v568, %v575
      %578 = vrot.lane.b32.xlu0 %v432, 48
      %v579 = vpop.permute.xlu0 %578
      %v581 = vmul.f32 %v539, %v579
      %582 = vrot.lane.b32.xlu0 %v536, 32
      %v583 = vpop.permute.xlu0 %582
      %v585 = vmul.f32 %v539, %v583
      %587 = vrot.lane.b32.xlu0 %v585, 16
      %v588 = vpop.permute.xlu0 %587
      %v590 = vadd.f32 %v581, %v588
      %592 = vrot.lane.b32.xlu0 %v577, 96
      %v593 = vpop.permute.xlu0 %592
      %596 = vrot.lane.b32.xlu0 %v590, 96
      %v597 = vpop.permute.xlu0 %596
      %v599 = vsel %vm563, %v593, %v597
      %v600 = vmul.f32 %v538, %v432
      %v601 = vmul.f32 %v538, %v544
      %603 = vrot.lane.b32.xlu0 %v601, 112
      %v604 = vpop.permute.xlu0 %603
      %v606 = vsub.f32 %v600, %v604
      %v607 = vmul.f32 %v538, %v554
      %v608 = vmul.f32 %v538, %v536
      %610 = vrot.lane.b32.xlu0 %v608, 16
      %v611 = vpop.permute.xlu0 %610
      %v613 = vadd.f32 %v607, %v611
      %v614 = vsel %vm563, %v606, %v613
      %vm615 = vcmask 261120
      %v617 = vsel %vm615, %v614, 0
      %v620 = vsel %vm615, %v564, 0
      %622 = vmatprep.subr.mxu0 0.0
      %623 = vmatpush1.xpose.msra.mxu0 0.0
      %624 = vmatprep.subr.mxu0 0.0
      %625 = vmatpush1.xpose.msra.mxu0 0.0
      %626 = vmatprep.subr.mxu0 0.0
      %627 = vmatpush1.xpose.msra.mxu0 0.0
      %628 = vmatprep.subr.mxu0 0.0
      %629 = vmatpush1.xpose.msra.mxu0 0.0
      %630 = vmatprep.subr.mxu0 0.0
      %631 = vmatpush1.xpose.msra.mxu0 0.0
      %632 = vmatprep.subr.mxu0 0.0
      %633 = vmatpush1.xpose.msra.mxu0 0.0
      %634 = vmatprep.subr.mxu0 0.0
      %635 = vmatpush1.xpose.msra.mxu0 0.0
      %636 = vmatprep.subr.mxu0 0.0
      %637 = vmatpush1.xpose.msra.mxu0 0.0
      %638 = vmatprep.subr.mxu0 0.0
      %639 = vmatpush1.xpose.msra.mxu0 0.0
      %640 = vmatprep.subr.mxu0 0.0
      %641 = vmatpush1.xpose.msra.mxu0 0.0
      %642 = vmatprep.subr.mxu0 0.0
      %643 = vmatpush1.xpose.msra.mxu0 0.0
      %644 = vmatprep.subr.mxu0 0.0
      %645 = vmatpush1.xpose.msra.mxu0 0.0
      %646 = vmatprep.subr.mxu0 0.0
      %647 = vmatpush1.xpose.msra.mxu0 0.0
      %648 = vmatprep.subr.mxu0 0.0
      %649 = vmatpush1.xpose.msra.mxu0 0.0
      %650 = vmatprep.subr.mxu0 0.0
      %651 = vmatpush1.xpose.msra.mxu0 0.0
      %652 = vmatprep.subr.mxu0 0.0
      %653 = vmatpush1.xpose.msra.mxu0 %v620
      %654 = vmatprep.subr.mxu0 0.0
      %655 = vmatpush2.xpose.msra.mxu0 0.0
      %656 = vmatprep.subr.mxu0 0.0
      %657 = vmatpush2.xpose.msra.mxu0 0.0
      %658 = vmatprep.subr.mxu0 0.0
      %659 = vmatpush2.xpose.msra.mxu0 0.0
      %660 = vmatprep.subr.mxu0 0.0
      %661 = vmatpush2.xpose.msra.mxu0 0.0
      %662 = vmatprep.subr.mxu0 0.0
      %663 = vmatpush2.xpose.msra.mxu0 0.0
      %664 = vmatprep.subr.mxu0 0.0
      %665 = vmatpush2.xpose.msra.mxu0 0.0
      %666 = vmatprep.subr.mxu0 0.0
      %667 = vmatpush2.xpose.msra.mxu0 0.0
      %668 = vmatprep.subr.mxu0 0.0
      %669 = vmatpush2.xpose.msra.mxu0 0.0
      %670 = vmatprep.subr.mxu0 0.0
      %671 = vmatpush2.xpose.msra.mxu0 0.0
      %672 = vmatprep.subr.mxu0 0.0
      %673 = vmatpush2.xpose.msra.mxu0 0.0
      %674 = vmatprep.subr.mxu0 0.0
      %675 = vmatpush2.xpose.msra.mxu0 0.0
      %676 = vmatprep.subr.mxu0 0.0
      %677 = vmatpush2.xpose.msra.mxu0 0.0
      %678 = vmatprep.subr.mxu0 0.0
      %679 = vmatpush2.xpose.msra.mxu0 0.0
      %680 = vmatprep.subr.mxu0 0.0
      %681 = vmatpush2.xpose.msra.mxu0 0.0
      %682 = vmatprep.subr.mxu0 0.0
      %683 = vmatpush2.xpose.msra.mxu0 0.0
      %684 = vmatprep.subr.mxu0 0.0
      %685 = vmatpush2.xpose.msra.mxu0 0.0
      %686 = vmatprep.mubr.f32.mxu0 0.0
      %687 = vmatmul.mubr.f32.gmra.mxu0 %v617
      %v688 = vpop.f32.mrf.mxu0
      %v689 = vadd.f32 0.0, %v688
      %v690 = vpop.f32.mrf.mxu0
      %691 = vdwg.mxu0
      %v692 = vmul.f32 %v689, 0.17677669
      %v693 = vadd.f32 %v692, %v537
      %vm694 = vcmask 64512
      %v695 = vsel %vm694, %v693, -inf
      %696 = vmax.xlane.f32.xlu0 %v695
      %v697 = vpop.xlane.xlu0 %696
      %v698 = vsub.f32 %v693, %v697
      %v699 = vmul.f32 %v698, 1.442695
      %v700 = vpow.pop %v699
      %v701 = vsel %vm694, %v700, 0.0
      %702 = vadd.xlane.f32.xlu0 %v701
      %v703 = vpop.xlane.xlu0 %702
      %v704 = vrcp.pop %v703
      %v705 = vmul.f32 %v700, %v704
      %v707 = vsel %vm694, %v705, 0
      %709 = vmatprep.subr.mxu0 0.0
      %710 = vmatpush1.msra.mxu0 0.0
      %711 = vmatprep.subr.mxu0 0.0
      %712 = vmatpush1.msra.mxu0 0.0
      %713 = vmatprep.subr.mxu0 0.0
      %714 = vmatpush1.msra.mxu0 0.0
      %715 = vmatprep.subr.mxu0 0.0
      %716 = vmatpush1.msra.mxu0 0.0
      %717 = vmatprep.subr.mxu0 0.0
      %718 = vmatpush1.msra.mxu0 0.0
      %719 = vmatprep.subr.mxu0 0.0
      %720 = vmatpush1.msra.mxu0 0.0
      %721 = vmatprep.subr.mxu0 0.0
      %722 = vmatpush1.msra.mxu0 0.0
      %723 = vmatprep.subr.mxu0 0.0
      %724 = vmatpush1.msra.mxu0 0.0
      %725 = vmatprep.subr.mxu0 0.0
      %726 = vmatpush1.msra.mxu0 0.0
      %727 = vmatprep.subr.mxu0 0.0
      %728 = vmatpush1.msra.mxu0 0.0
      %729 = vmatprep.subr.mxu0 0.0
      %730 = vmatpush1.msra.mxu0 0.0
      %731 = vmatprep.subr.mxu0 0.0
      %732 = vmatpush1.msra.mxu0 0.0
      %733 = vmatprep.subr.mxu0 0.0
      %734 = vmatpush1.msra.mxu0 0.0
      %735 = vmatprep.subr.mxu0 0.0
      %736 = vmatpush1.msra.mxu0 0.0
      %737 = vmatprep.subr.mxu0 0.0
      %738 = vmatpush1.msra.mxu0 0.0
      %739 = vmatprep.subr.mxu0 0.0
      %740 = vmatpush1.msra.mxu0 %v540
      %741 = vmatprep.subr.mxu0 0.0
      %742 = vmatpush2.msra.mxu0 0.0
      %743 = vmatprep.subr.mxu0 0.0
      %744 = vmatpush2.msra.mxu0 0.0
      %745 = vmatprep.subr.mxu0 0.0
      %746 = vmatpush2.msra.mxu0 0.0
      %747 = vmatprep.subr.mxu0 0.0
      %748 = vmatpush2.msra.mxu0 0.0
      %749 = vmatprep.subr.mxu0 0.0
      %750 = vmatpush2.msra.mxu0 0.0
      %751 = vmatprep.subr.mxu0 0.0
      %752 = vmatpush2.msra.mxu0 0.0
      %753 = vmatprep.subr.mxu0 0.0
      %754 = vmatpush2.msra.mxu0 0.0
      %755 = vmatprep.subr.mxu0 0.0
      %756 = vmatpush2.msra.mxu0 0.0
      %757 = vmatprep.subr.mxu0 0.0
      %758 = vmatpush2.msra.mxu0 0.0
      %759 = vmatprep.subr.mxu0 0.0
      %760 = vmatpush2.msra.mxu0 0.0
      %761 = vmatprep.subr.mxu0 0.0
      %762 = vmatpush2.msra.mxu0 0.0
      %763 = vmatprep.subr.mxu0 0.0
      %764 = vmatpush2.msra.mxu0 0.0
      %765 = vmatprep.subr.mxu0 0.0
      %766 = vmatpush2.msra.mxu0 0.0
      %767 = vmatprep.subr.mxu0 0.0
      %768 = vmatpush2.msra.mxu0 0.0
      %769 = vmatprep.subr.mxu0 0.0
      %770 = vmatpush2.msra.mxu0 0.0
      %771 = vmatprep.subr.mxu0 0.0
      %772 = vmatpush2.msra.mxu0 0.0
      %773 = vmatprep.mubr.f32.mxu0 0.0
      %774 = vmatmul.mubr.f32.gmra.mxu0 %v707
      %v775 = vpop.f32.mrf.mxu0
      %v776 = vadd.f32 0.0, %v775
      %v777 = vpop.f32.mrf.mxu0
      %778 = vdwg.mxu0
      %v779 = vmul.f32 %v538, %v566
      %v780 = vmul.f32 %v538, %v570
      %782 = vrot.lane.b32.xlu0 %v780, 112
      %v783 = vpop.permute.xlu0 %782
      %v785 = vsub.f32 %v779, %v783
      %v786 = vmul.f32 %v538, %v579
      %v787 = vmul.f32 %v538, %v583
      %789 = vrot.lane.b32.xlu0 %v787, 16
      %v790 = vpop.permute.xlu0 %789
      %v792 = vadd.f32 %v786, %v790
      %794 = vrot.lane.b32.xlu0 %v785, 96
      %v795 = vpop.permute.xlu0 %794
      %798 = vrot.lane.b32.xlu0 %v792, 96
      %v799 = vpop.permute.xlu0 %798
      %v801 = vsel %vm563, %v795, %v799
      %v803 = vsel %vm615, %v801, 0
      %805 = vmatprep.subr.mxu0 0.0
      %806 = vmatpush1.xpose.msra.mxu0 0.0
      %807 = vmatprep.subr.mxu0 0.0
      %808 = vmatpush1.xpose.msra.mxu0 0.0
      %809 = vmatprep.subr.mxu0 0.0
      %810 = vmatpush1.xpose.msra.mxu0 0.0
      %811 = vmatprep.subr.mxu0 0.0
      %812 = vmatpush1.xpose.msra.mxu0 0.0
      %813 = vmatprep.subr.mxu0 0.0
      %814 = vmatpush1.xpose.msra.mxu0 0.0
      %815 = vmatprep.subr.mxu0 0.0
      %816 = vmatpush1.xpose.msra.mxu0 0.0
      %817 = vmatprep.subr.mxu0 0.0
      %818 = vmatpush1.xpose.msra.mxu0 0.0
      %819 = vmatprep.subr.mxu0 0.0
      %820 = vmatpush1.xpose.msra.mxu0 0.0
      %821 = vmatprep.subr.mxu0 0.0
      %822 = vmatpush1.xpose.msra.mxu0 0.0
      %823 = vmatprep.subr.mxu0 0.0
      %824 = vmatpush1.xpose.msra.mxu0 0.0
      %825 = vmatprep.subr.mxu0 0.0
      %826 = vmatpush1.xpose.msra.mxu0 0.0
      %827 = vmatprep.subr.mxu0 0.0
      %828 = vmatpush1.xpose.msra.mxu0 0.0
      %829 = vmatprep.subr.mxu0 0.0
      %830 = vmatpush1.xpose.msra.mxu0 0.0
      %831 = vmatprep.subr.mxu0 0.0
      %832 = vmatpush1.xpose.msra.mxu0 0.0
      %833 = vmatprep.subr.mxu0 0.0
      %834 = vmatpush1.xpose.msra.mxu0 0.0
      %835 = vmatprep.subr.mxu0 0.0
      %836 = vmatpush1.xpose.msra.mxu0 %v620
      %837 = vmatprep.subr.mxu0 0.0
      %838 = vmatpush2.xpose.msra.mxu0 0.0
      %839 = vmatprep.subr.mxu0 0.0
      %840 = vmatpush2.xpose.msra.mxu0 0.0
      %841 = vmatprep.subr.mxu0 0.0
      %842 = vmatpush2.xpose.msra.mxu0 0.0
      %843 = vmatprep.subr.mxu0 0.0
      %844 = vmatpush2.xpose.msra.mxu0 0.0
      %845 = vmatprep.subr.mxu0 0.0
      %846 = vmatpush2.xpose.msra.mxu0 0.0
      %847 = vmatprep.subr.mxu0 0.0
      %848 = vmatpush2.xpose.msra.mxu0 0.0
      %849 = vmatprep.subr.mxu0 0.0
      %850 = vmatpush2.xpose.msra.mxu0 0.0
      %851 = vmatprep.subr.mxu0 0.0
      %852 = vmatpush2.xpose.msra.mxu0 0.0
      %853 = vmatprep.subr.mxu0 0.0
      %854 = vmatpush2.xpose.msra.mxu0 0.0
      %855 = vmatprep.subr.mxu0 0.0
      %856 = vmatpush2.xpose.msra.mxu0 0.0
      %857 = vmatprep.subr.mxu0 0.0
      %858 = vmatpush2.xpose.msra.mxu0 0.0
      %859 = vmatprep.subr.mxu0 0.0
      %860 = vmatpush2.xpose.msra.mxu0 0.0
      %861 = vmatprep.subr.mxu0 0.0
      %862 = vmatpush2.xpose.msra.mxu0 0.0
      %863 = vmatprep.subr.mxu0 0.0
      %864 = vmatpush2.xpose.msra.mxu0 0.0
      %865 = vmatprep.subr.mxu0 0.0
      %866 = vmatpush2.xpose.msra.mxu0 0.0
      %867 = vmatprep.subr.mxu0 0.0
      %868 = vmatpush2.xpose.msra.mxu0 0.0
      %869 = vmatprep.mubr.f32.mxu0 0.0
      %870 = vmatmul.mubr.f32.gmra.mxu0 %v803
      %v871 = vpop.f32.mrf.mxu0
      %v872 = vadd.f32 0.0, %v871
      %v873 = vpop.f32.mrf.mxu0
      %874 = vdwg.mxu0
      %v875 = vmul.f32 %v872, 0.17677669
      %v876 = vadd.f32 %v875, %v537
      %v877 = vsel %vm694, %v876, -inf
      %878 = vmax.xlane.f32.xlu0 %v877
      %v879 = vpop.xlane.xlu0 %878
      %v880 = vsub.f32 %v876, %v879
      %v881 = vmul.f32 %v880, 1.442695
      %v882 = vpow.pop %v881
      %v883 = vsel %vm694, %v882, 0.0
      %884 = vadd.xlane.f32.xlu0 %v883
      %v885 = vpop.xlane.xlu0 %884
      %v886 = vrcp.pop %v885
      %v887 = vmul.f32 %v882, %v886
      %v889 = vsel %vm694, %v887, 0
      %891 = vmatprep.subr.mxu0 0.0
      %892 = vmatpush1.msra.mxu0 0.0
      %893 = vmatprep.subr.mxu0 0.0
      %894 = vmatpush1.msra.mxu0 0.0
      %895 = vmatprep.subr.mxu0 0.0
      %896 = vmatpush1.msra.mxu0 0.0
      %897 = vmatprep.subr.mxu0 0.0
      %898 = vmatpush1.msra.mxu0 0.0
      %899 = vmatprep.subr.mxu0 0.0
      %900 = vmatpush1.msra.mxu0 0.0
      %901 = vmatprep.subr.mxu0 0.0
      %902 = vmatpush1.msra.mxu0 0.0
      %903 = vmatprep.subr.mxu0 0.0
      %904 = vmatpush1.msra.mxu0 0.0
      %905 = vmatprep.subr.mxu0 0.0
      %906 = vmatpush1.msra.mxu0 0.0
      %907 = vmatprep.subr.mxu0 0.0
      %908 = vmatpush1.msra.mxu0 0.0
      %909 = vmatprep.subr.mxu0 0.0
      %910 = vmatpush1.msra.mxu0 0.0
      %911 = vmatprep.subr.mxu0 0.0
      %912 = vmatpush1.msra.mxu0 0.0
      %913 = vmatprep.subr.mxu0 0.0
      %914 = vmatpush1.msra.mxu0 0.0
      %915 = vmatprep.subr.mxu0 0.0
      %916 = vmatpush1.msra.mxu0 0.0
      %917 = vmatprep.subr.mxu0 0.0
      %918 = vmatpush1.msra.mxu0 0.0
      %919 = vmatprep.subr.mxu0 0.0
      %920 = vmatpush1.msra.mxu0 0.0
      %921 = vmatprep.subr.mxu0 0.0
      %922 = vmatpush1.msra.mxu0 %v540
      %923 = vmatprep.subr.mxu0 0.0
      %924 = vmatpush2.msra.mxu0 0.0
      %925 = vmatprep.subr.mxu0 0.0
      %926 = vmatpush2.msra.mxu0 0.0
      %927 = vmatprep.subr.mxu0 0.0
      %928 = vmatpush2.msra.mxu0 0.0
      %929 = vmatprep.subr.mxu0 0.0
      %930 = vmatpush2.msra.mxu0 0.0
      %931 = vmatprep.subr.mxu0 0.0
      %932 = vmatpush2.msra.mxu0 0.0
      %933 = vmatprep.subr.mxu0 0.0
      %934 = vmatpush2.msra.mxu0 0.0
      %935 = vmatprep.subr.mxu0 0.0
      %936 = vmatpush2.msra.mxu0 0.0
      %937 = vmatprep.subr.mxu0 0.0
      %938 = vmatpush2.msra.mxu0 0.0
      %939 = vmatprep.subr.mxu0 0.0
      %940 = vmatpush2.msra.mxu0 0.0
      %941 = vmatprep.subr.mxu0 0.0
      %942 = vmatpush2.msra.mxu0 0.0
      %943 = vmatprep.subr.mxu0 0.0
      %944 = vmatpush2.msra.mxu0 0.0
      %945 = vmatprep.subr.mxu0 0.0
      %946 = vmatpush2.msra.mxu0 0.0
      %947 = vmatprep.subr.mxu0 0.0
      %948 = vmatpush2.msra.mxu0 0.0
      %949 = vmatprep.subr.mxu0 0.0
      %950 = vmatpush2.msra.mxu0 0.0
      %951 = vmatprep.subr.mxu0 0.0
      %952 = vmatpush2.msra.mxu0 0.0
      %953 = vmatprep.subr.mxu0 0.0
      %954 = vmatpush2.msra.mxu0 0.0
      %955 = vmatprep.mubr.f32.mxu0 0.0
      %956 = vmatmul.mubr.f32.gmra.mxu0 %v889
      %v957 = vpop.f32.mrf.mxu0
      %v958 = vadd.f32 0.0, %v957
      %v959 = vpop.f32.mrf.mxu0
      %960 = vdwg.mxu0
      %961 = vrot.lane.b32.xlu0 %v432, 64
      %v962 = vpop.permute.xlu0 %961
      %v964 = vmul.f32 %v538, %v962
      %965 = vrot.lane.b32.xlu0 %v536, 80
      %v966 = vpop.permute.xlu0 %965
      %v968 = vmul.f32 %v538, %v966
      %970 = vrot.lane.b32.xlu0 %v968, 112
      %v971 = vpop.permute.xlu0 %970
      %v973 = vsub.f32 %v964, %v971
      %974 = vrot.lane.b32.xlu0 %v432, 80
      %v975 = vpop.permute.xlu0 %974
      %v977 = vmul.f32 %v538, %v975
      %978 = vrot.lane.b32.xlu0 %v536, 64
      %v979 = vpop.permute.xlu0 %978
      %v981 = vmul.f32 %v538, %v979
      %983 = vrot.lane.b32.xlu0 %v981, 16
      %v984 = vpop.permute.xlu0 %983
      %v986 = vadd.f32 %v977, %v984
      %988 = vrot.lane.b32.xlu0 %v973, 64
      %v989 = vpop.permute.xlu0 %988
      %992 = vrot.lane.b32.xlu0 %v986, 64
      %v993 = vpop.permute.xlu0 %992
      %v995 = vsel %vm563, %v989, %v993
      %v997 = vsel %vm615, %v995, 0
      %v1000 = vsel %vm615, %v599, 0
      %1002 = vmatprep.subr.mxu0 0.0
      %1003 = vmatpush1.xpose.msra.mxu0 0.0
      %1004 = vmatprep.subr.mxu0 0.0
      %1005 = vmatpush1.xpose.msra.mxu0 0.0
      %1006 = vmatprep.subr.mxu0 0.0
      %1007 = vmatpush1.xpose.msra.mxu0 0.0
      %1008 = vmatprep.subr.mxu0 0.0
      %1009 = vmatpush1.xpose.msra.mxu0 0.0
      %1010 = vmatprep.subr.mxu0 0.0
      %1011 = vmatpush1.xpose.msra.mxu0 0.0
      %1012 = vmatprep.subr.mxu0 0.0
      %1013 = vmatpush1.xpose.msra.mxu0 0.0
      %1014 = vmatprep.subr.mxu0 0.0
      %1015 = vmatpush1.xpose.msra.mxu0 0.0
      %1016 = vmatprep.subr.mxu0 0.0
      %1017 = vmatpush1.xpose.msra.mxu0 0.0
      %1018 = vmatprep.subr.mxu0 0.0
      %1019 = vmatpush1.xpose.msra.mxu0 0.0
      %1020 = vmatprep.subr.mxu0 0.0
      %1021 = vmatpush1.xpose.msra.mxu0 0.0
      %1022 = vmatprep.subr.mxu0 0.0
      %1023 = vmatpush1.xpose.msra.mxu0 0.0
      %1024 = vmatprep.subr.mxu0 0.0
      %1025 = vmatpush1.xpose.msra.mxu0 0.0
      %1026 = vmatprep.subr.mxu0 0.0
      %1027 = vmatpush1.xpose.msra.mxu0 0.0
      %1028 = vmatprep.subr.mxu0 0.0
      %1029 = vmatpush1.xpose.msra.mxu0 0.0
      %1030 = vmatprep.subr.mxu0 0.0
      %1031 = vmatpush1.xpose.msra.mxu0 0.0
      %1032 = vmatprep.subr.mxu0 0.0
      %1033 = vmatpush1.xpose.msra.mxu0 %v1000
      %1034 = vmatprep.subr.mxu0 0.0
      %1035 = vmatpush2.xpose.msra.mxu0 0.0
      %1036 = vmatprep.subr.mxu0 0.0
      %1037 = vmatpush2.xpose.msra.mxu0 0.0
      %1038 = vmatprep.subr.mxu0 0.0
      %1039 = vmatpush2.xpose.msra.mxu0 0.0
      %1040 = vmatprep.subr.mxu0 0.0
      %1041 = vmatpush2.xpose.msra.mxu0 0.0
      %1042 = vmatprep.subr.mxu0 0.0
      %1043 = vmatpush2.xpose.msra.mxu0 0.0
      %1044 = vmatprep.subr.mxu0 0.0
      %1045 = vmatpush2.xpose.msra.mxu0 0.0
      %1046 = vmatprep.subr.mxu0 0.0
      %1047 = vmatpush2.xpose.msra.mxu0 0.0
      %1048 = vmatprep.subr.mxu0 0.0
      %1049 = vmatpush2.xpose.msra.mxu0 0.0
      %1050 = vmatprep.subr.mxu0 0.0
      %1051 = vmatpush2.xpose.msra.mxu0 0.0
      %1052 = vmatprep.subr.mxu0 0.0
      %1053 = vmatpush2.xpose.msra.mxu0 0.0
      %1054 = vmatprep.subr.mxu0 0.0
      %1055 = vmatpush2.xpose.msra.mxu0 0.0
      %1056 = vmatprep.subr.mxu0 0.0
      %1057 = vmatpush2.xpose.msra.mxu0 0.0
      %1058 = vmatprep.subr.mxu0 0.0
      %1059 = vmatpush2.xpose.msra.mxu0 0.0
      %1060 = vmatprep.subr.mxu0 0.0
      %1061 = vmatpush2.xpose.msra.mxu0 0.0
      %1062 = vmatprep.subr.mxu0 0.0
      %1063 = vmatpush2.xpose.msra.mxu0 0.0
      %1064 = vmatprep.subr.mxu0 0.0
      %1065 = vmatpush2.xpose.msra.mxu0 0.0
      %1066 = vmatprep.mubr.f32.mxu0 0.0
      %1067 = vmatmul.mubr.f32.gmra.mxu0 %v997
      %v1068 = vpop.f32.mrf.mxu0
      %v1069 = vadd.f32 0.0, %v1068
      %v1070 = vpop.f32.mrf.mxu0
      %1071 = vdwg.mxu0
      %v1072 = vmul.f32 %v1069, 0.17677669
      %v1073 = vadd.f32 %v1072, %v537
      %v1074 = vsel %vm694, %v1073, -inf
      %1075 = vmax.xlane.f32.xlu0 %v1074
      %v1076 = vpop.xlane.xlu0 %1075
      %v1077 = vsub.f32 %v1073, %v1076
      %v1078 = vmul.f32 %v1077, 1.442695
      %v1079 = vpow.pop %v1078
      %v1080 = vsel %vm694, %v1079, 0.0
      %1081 = vadd.xlane.f32.xlu0 %v1080
      %v1082 = vpop.xlane.xlu0 %1081
      %v1083 = vrcp.pop %v1082
      %v1084 = vmul.f32 %v1079, %v1083
      %1086 = vrot.lane.b32.xlu0 %v540, 96
      %v1087 = vpop.permute.xlu0 %1086
      %v1090 = vsel %vm694, %v1084, 0
      %1092 = vmatprep.subr.mxu0 0.0
      %1093 = vmatpush1.msra.mxu0 0.0
      %1094 = vmatprep.subr.mxu0 0.0
      %1095 = vmatpush1.msra.mxu0 0.0
      %1096 = vmatprep.subr.mxu0 0.0
      %1097 = vmatpush1.msra.mxu0 0.0
      %1098 = vmatprep.subr.mxu0 0.0
      %1099 = vmatpush1.msra.mxu0 0.0
      %1100 = vmatprep.subr.mxu0 0.0
      %1101 = vmatpush1.msra.mxu0 0.0
      %1102 = vmatprep.subr.mxu0 0.0
      %1103 = vmatpush1.msra.mxu0 0.0
      %1104 = vmatprep.subr.mxu0 0.0
      %1105 = vmatpush1.msra.mxu0 0.0
      %1106 = vmatprep.subr.mxu0 0.0
      %1107 = vmatpush1.msra.mxu0 0.0
      %1108 = vmatprep.subr.mxu0 0.0
      %1109 = vmatpush1.msra.mxu0 0.0
      %1110 = vmatprep.subr.mxu0 0.0
      %1111 = vmatpush1.msra.mxu0 0.0
      %1112 = vmatprep.subr.mxu0 0.0
      %1113 = vmatpush1.msra.mxu0 0.0
      %1114 = vmatprep.subr.mxu0 0.0
      %1115 = vmatpush1.msra.mxu0 0.0
      %1116 = vmatprep.subr.mxu0 0.0
      %1117 = vmatpush1.msra.mxu0 0.0
      %1118 = vmatprep.subr.mxu0 0.0
      %1119 = vmatpush1.msra.mxu0 0.0
      %1120 = vmatprep.subr.mxu0 0.0
      %1121 = vmatpush1.msra.mxu0 0.0
      %1122 = vmatprep.subr.mxu0 0.0
      %1123 = vmatpush1.msra.mxu0 %v1087
      %1124 = vmatprep.subr.mxu0 0.0
      %1125 = vmatpush2.msra.mxu0 0.0
      %1126 = vmatprep.subr.mxu0 0.0
      %1127 = vmatpush2.msra.mxu0 0.0
      %1128 = vmatprep.subr.mxu0 0.0
      %1129 = vmatpush2.msra.mxu0 0.0
      %1130 = vmatprep.subr.mxu0 0.0
      %1131 = vmatpush2.msra.mxu0 0.0
      %1132 = vmatprep.subr.mxu0 0.0
      %1133 = vmatpush2.msra.mxu0 0.0
      %1134 = vmatprep.subr.mxu0 0.0
      %1135 = vmatpush2.msra.mxu0 0.0
      %1136 = vmatprep.subr.mxu0 0.0
      %1137 = vmatpush2.msra.mxu0 0.0
      %1138 = vmatprep.subr.mxu0 0.0
      %1139 = vmatpush2.msra.mxu0 0.0
      %1140 = vmatprep.subr.mxu0 0.0
      %1141 = vmatpush2.msra.mxu0 0.0
      %1142 = vmatprep.subr.mxu0 0.0
      %1143 = vmatpush2.msra.mxu0 0.0
      %1144 = vmatprep.subr.mxu0 0.0
      %1145 = vmatpush2.msra.mxu0 0.0
      %1146 = vmatprep.subr.mxu0 0.0
      %1147 = vmatpush2.msra.mxu0 0.0
      %1148 = vmatprep.subr.mxu0 0.0
      %1149 = vmatpush2.msra.mxu0 0.0
      %1150 = vmatprep.subr.mxu0 0.0
      %1151 = vmatpush2.msra.mxu0 0.0
      %1152 = vmatprep.subr.mxu0 0.0
      %1153 = vmatpush2.msra.mxu0 0.0
      %1154 = vmatprep.subr.mxu0 0.0
      %1155 = vmatpush2.msra.mxu0 0.0
      %1156 = vmatprep.mubr.f32.mxu0 0.0
      %1157 = vmatmul.mubr.f32.gmra.mxu0 %v1090
      %v1158 = vpop.f32.mrf.mxu0
      %v1159 = vadd.f32 0.0, %v1158
      %v1160 = vpop.f32.mrf.mxu0
      %1161 = vdwg.mxu0
      %1162 = vrot.lane.b32.xlu0 %v432, 96
      %v1163 = vpop.permute.xlu0 %1162
      %v1165 = vmul.f32 %v538, %v1163
      %1166 = vrot.lane.b32.xlu0 %v536, 112
      %v1167 = vpop.permute.xlu0 %1166
      %v1169 = vmul.f32 %v538, %v1167
      %1171 = vrot.lane.b32.xlu0 %v1169, 112
      %v1172 = vpop.permute.xlu0 %1171
      %v1174 = vsub.f32 %v1165, %v1172
      %1175 = vrot.lane.b32.xlu0 %v432, 112
      %v1176 = vpop.permute.xlu0 %1175
      %v1178 = vmul.f32 %v538, %v1176
      %1179 = vrot.lane.b32.xlu0 %v536, 96
      %v1180 = vpop.permute.xlu0 %1179
      %v1182 = vmul.f32 %v538, %v1180
      %1184 = vrot.lane.b32.xlu0 %v1182, 16
      %v1185 = vpop.permute.xlu0 %1184
      %v1187 = vadd.f32 %v1178, %v1185
      %1189 = vrot.lane.b32.xlu0 %v1174, 32
      %v1190 = vpop.permute.xlu0 %1189
      %1193 = vrot.lane.b32.xlu0 %v1187, 32
      %v1194 = vpop.permute.xlu0 %1193
      %v1196 = vsel %vm563, %v1190, %v1194
      %v1198 = vsel %vm615, %v1196, 0
      %1200 = vmatprep.subr.mxu0 0.0
      %1201 = vmatpush1.xpose.msra.mxu0 0.0
      %1202 = vmatprep.subr.mxu0 0.0
      %1203 = vmatpush1.xpose.msra.mxu0 0.0
      %1204 = vmatprep.subr.mxu0 0.0
      %1205 = vmatpush1.xpose.msra.mxu0 0.0
      %1206 = vmatprep.subr.mxu0 0.0
      %1207 = vmatpush1.xpose.msra.mxu0 0.0
      %1208 = vmatprep.subr.mxu0 0.0
      %1209 = vmatpush1.xpose.msra.mxu0 0.0
      %1210 = vmatprep.subr.mxu0 0.0
      %1211 = vmatpush1.xpose.msra.mxu0 0.0
      %1212 = vmatprep.subr.mxu0 0.0
      %1213 = vmatpush1.xpose.msra.mxu0 0.0
      %1214 = vmatprep.subr.mxu0 0.0
      %1215 = vmatpush1.xpose.msra.mxu0 0.0
      %1216 = vmatprep.subr.mxu0 0.0
      %1217 = vmatpush1.xpose.msra.mxu0 0.0
      %1218 = vmatprep.subr.mxu0 0.0
      %1219 = vmatpush1.xpose.msra.mxu0 0.0
      %1220 = vmatprep.subr.mxu0 0.0
      %1221 = vmatpush1.xpose.msra.mxu0 0.0
      %1222 = vmatprep.subr.mxu0 0.0
      %1223 = vmatpush1.xpose.msra.mxu0 0.0
      %1224 = vmatprep.subr.mxu0 0.0
      %1225 = vmatpush1.xpose.msra.mxu0 0.0
      %1226 = vmatprep.subr.mxu0 0.0
      %1227 = vmatpush1.xpose.msra.mxu0 0.0
      %1228 = vmatprep.subr.mxu0 0.0
      %1229 = vmatpush1.xpose.msra.mxu0 0.0
      %1230 = vmatprep.subr.mxu0 0.0
      %1231 = vmatpush1.xpose.msra.mxu0 %v1000
      %1232 = vmatprep.subr.mxu0 0.0
      %1233 = vmatpush2.xpose.msra.mxu0 0.0
      %1234 = vmatprep.subr.mxu0 0.0
      %1235 = vmatpush2.xpose.msra.mxu0 0.0
      %1236 = vmatprep.subr.mxu0 0.0
      %1237 = vmatpush2.xpose.msra.mxu0 0.0
      %1238 = vmatprep.subr.mxu0 0.0
      %1239 = vmatpush2.xpose.msra.mxu0 0.0
      %1240 = vmatprep.subr.mxu0 0.0
      %1241 = vmatpush2.xpose.msra.mxu0 0.0
      %1242 = vmatprep.subr.mxu0 0.0
      %1243 = vmatpush2.xpose.msra.mxu0 0.0
      %1244 = vmatprep.subr.mxu0 0.0
      %1245 = vmatpush2.xpose.msra.mxu0 0.0
      %1246 = vmatprep.subr.mxu0 0.0
      %1247 = vmatpush2.xpose.msra.mxu0 0.0
      %1248 = vmatprep.subr.mxu0 0.0
      %1249 = vmatpush2.xpose.msra.mxu0 0.0
      %1250 = vmatprep.subr.mxu0 0.0
      %1251 = vmatpush2.xpose.msra.mxu0 0.0
      %1252 = vmatprep.subr.mxu0 0.0
      %1253 = vmatpush2.xpose.msra.mxu0 0.0
      %1254 = vmatprep.subr.mxu0 0.0
      %1255 = vmatpush2.xpose.msra.mxu0 0.0
      %1256 = vmatprep.subr.mxu0 0.0
      %1257 = vmatpush2.xpose.msra.mxu0 0.0
      %1258 = vmatprep.subr.mxu0 0.0
      %1259 = vmatpush2.xpose.msra.mxu0 0.0
      %1260 = vmatprep.subr.mxu0 0.0
      %1261 = vmatpush2.xpose.msra.mxu0 0.0
      %1262 = vmatprep.subr.mxu0 0.0
      %1263 = vmatpush2.xpose.msra.mxu0 0.0
      %1264 = vmatprep.mubr.f32.mxu0 0.0
      %1265 = vmatmul.mubr.f32.gmra.mxu0 %v1198
      %v1266 = vpop.f32.mrf.mxu0
      %v1267 = vadd.f32 0.0, %v1266
      %v1268 = vpop.f32.mrf.mxu0
      %1269 = vdwg.mxu0
      %v1270 = vmul.f32 %v1267, 0.17677669
      %v1271 = vadd.f32 %v1270, %v537
      %v1272 = vsel %vm694, %v1271, -inf
      %1273 = vmax.xlane.f32.xlu0 %v1272
      %v1274 = vpop.xlane.xlu0 %1273
      %v1275 = vsub.f32 %v1271, %v1274
      %v1276 = vmul.f32 %v1275, 1.442695
      %v1277 = vpow.pop %v1276
      %v1278 = vsel %vm694, %v1277, 0.0
      %1279 = vadd.xlane.f32.xlu0 %v1278
      %v1280 = vpop.xlane.xlu0 %1279
      %v1281 = vrcp.pop %v1280
      %v1282 = vmul.f32 %v1277, %v1281
      %v1284 = vsel %vm694, %v1282, 0
      %1286 = vmatprep.subr.mxu0 0.0
      %1287 = vmatpush1.msra.mxu0 0.0
      %1288 = vmatprep.subr.mxu0 0.0
      %1289 = vmatpush1.msra.mxu0 0.0
      %1290 = vmatprep.subr.mxu0 0.0
      %1291 = vmatpush1.msra.mxu0 0.0
      %1292 = vmatprep.subr.mxu0 0.0
      %1293 = vmatpush1.msra.mxu0 0.0
      %1294 = vmatprep.subr.mxu0 0.0
      %1295 = vmatpush1.msra.mxu0 0.0
      %1296 = vmatprep.subr.mxu0 0.0
      %1297 = vmatpush1.msra.mxu0 0.0
      %1298 = vmatprep.subr.mxu0 0.0
      %1299 = vmatpush1.msra.mxu0 0.0
      %1300 = vmatprep.subr.mxu0 0.0
      %1301 = vmatpush1.msra.mxu0 0.0
      %1302 = vmatprep.subr.mxu0 0.0
      %1303 = vmatpush1.msra.mxu0 0.0
      %1304 = vmatprep.subr.mxu0 0.0
      %1305 = vmatpush1.msra.mxu0 0.0
      %1306 = vmatprep.subr.mxu0 0.0
      %1307 = vmatpush1.msra.mxu0 0.0
      %1308 = vmatprep.subr.mxu0 0.0
      %1309 = vmatpush1.msra.mxu0 0.0
      %1310 = vmatprep.subr.mxu0 0.0
      %1311 = vmatpush1.msra.mxu0 0.0
      %1312 = vmatprep.subr.mxu0 0.0
      %1313 = vmatpush1.msra.mxu0 0.0
      %1314 = vmatprep.subr.mxu0 0.0
      %1315 = vmatpush1.msra.mxu0 0.0
      %1316 = vmatprep.subr.mxu0 0.0
      %1317 = vmatpush1.msra.mxu0 %v1087
      %1318 = vmatprep.subr.mxu0 0.0
      %1319 = vmatpush2.msra.mxu0 0.0
      %1320 = vmatprep.subr.mxu0 0.0
      %1321 = vmatpush2.msra.mxu0 0.0
      %1322 = vmatprep.subr.mxu0 0.0
      %1323 = vmatpush2.msra.mxu0 0.0
      %1324 = vmatprep.subr.mxu0 0.0
      %1325 = vmatpush2.msra.mxu0 0.0
      %1326 = vmatprep.subr.mxu0 0.0
      %1327 = vmatpush2.msra.mxu0 0.0
      %1328 = vmatprep.subr.mxu0 0.0
      %1329 = vmatpush2.msra.mxu0 0.0
      %1330 = vmatprep.subr.mxu0 0.0
      %1331 = vmatpush2.msra.mxu0 0.0
      %1332 = vmatprep.subr.mxu0 0.0
      %1333 = vmatpush2.msra.mxu0 0.0
      %1334 = vmatprep.subr.mxu0 0.0
      %1335 = vmatpush2.msra.mxu0 0.0
      %1336 = vmatprep.subr.mxu0 0.0
      %1337 = vmatpush2.msra.mxu0 0.0
      %1338 = vmatprep.subr.mxu0 0.0
      %1339 = vmatpush2.msra.mxu0 0.0
      %1340 = vmatprep.subr.mxu0 0.0
      %1341 = vmatpush2.msra.mxu0 0.0
      %1342 = vmatprep.subr.mxu0 0.0
      %1343 = vmatpush2.msra.mxu0 0.0
      %1344 = vmatprep.subr.mxu0 0.0
      %1345 = vmatpush2.msra.mxu0 0.0
      %1346 = vmatprep.subr.mxu0 0.0
      %1347 = vmatpush2.msra.mxu0 0.0
      %1348 = vmatprep.subr.mxu0 0.0
      %1349 = vmatpush2.msra.mxu0 0.0
      %1350 = vmatprep.mubr.f32.mxu0 0.0
      %1351 = vmatmul.mubr.f32.gmra.mxu0 %v1284
      %v1352 = vpop.f32.mrf.mxu0
      %v1353 = vadd.f32 0.0, %v1352
      %v1354 = vpop.f32.mrf.mxu0
      %1355 = vdwg.mxu0
      %1357 = vrot.lane.b32.xlu0 %v958, 32
      %v1358 = vpop.permute.xlu0 %1357
      %1361 = vrot.lane.b32.xlu0 %v1159, 64
      %v1362 = vpop.permute.xlu0 %1361
      %1365 = vrot.lane.b32.xlu0 %v1353, 96
      %v1366 = vpop.permute.xlu0 %1365
      %v1368 = vsel %vm615, %v776, %v1358
      %vm1369 = vcmask 523264
      %v1370 = vsel %vm1369, %v1368, %v1362
      %vm1371 = vcmask 785408
      %v1372 = vsel %vm1371, %v1370, %v1366
      %1373 = vst [vmem:[%s314] sm:$0xff] %v1372
      %p1374 = scmp.lt.s32.totalorder %s17, 1
      %s1375 = scalar_select %p1374, %s17, 1
      %s1376 = smul.addr %s1375, 8
      %s1377 = scalar_lea.vmem %s6, %s1376
      // Predicated region
      $region45: #{fwd.24} parent=43 // pred_check
        %p1378 = pneg %p186
      $region46: #{fwd.24} parent=43 // pred_check_branch
        %1380 = sbr.rel (%p1378) target = $region48
      $region47: #{fwd.24} parent=43 // pred_region
        _
      $region48: #{fwd.24} parent=43 // pred_fallthru
        _
    $region44: #{fwd.24} parent=5 // pred_fallthru
      _
    %p1381 = scmp.le.s32.totalorder 2, %s12
    // Predicated region
    $region49: #{fwd.24} parent=5 // pred_check
      %p1382 = pneg %p1381
    $region50: #{fwd.24} parent=5 // pred_check_branch
      %1384 = sbr.rel (%p1382) target = $region52
    $region51: #{fwd.24} parent=5 // pred_region
      %s1385 = ssub.s32 %s12, 2
      // Predicated region
      $region53: #{fwd.24} parent=51 // pred_check
        %p1386 = pneg %p192
      $region54: #{fwd.24} parent=51 // pred_check_branch
        %1388 = sbr.rel (%p1386) target = $region56
      $region55: #{fwd.24} parent=51 // pred_region
        %p1389 = scmp.lt.s32.totalorder %s18, 1
        %s1390 = scalar_select %p1389, %s18, 1
        %s1391 = smul.addr %s1390, 8
        %s1392 = scalar_lea.vmem %s6, %s1391
      $region56: #{fwd.24} parent=51 // pred_fallthru
        _
    $region52: #{fwd.24} parent=5 // pred_fallthru
      _
  $region6: #{fwd.24} parent=0 // loop_footer
    %s16 = sadd.s32 1, %s12
  $region7: #{fwd.24} parent=0 // loop_footer_branch
    %11 = sbr.rel target = $region3
  $region8: #{fwd.24} parent=0 // loop_exit
    _

</llo_original>
